<compile_context>
chip_gen: v5e
topology: v5e:2x2
jax: 0.10.0
libtpu: 0.0.40
codegen_flags: <defaults>
</compile_context>

<pallas_src>
import functools

import jax
import jax.numpy as jnp
from jax.experimental import pallas as pl
from jax.experimental.pallas import tpu as pltpu

LN_EPS = 1e-5            # PyTorch nn.LayerNorm default eps
IN_DIM = 8 * 3           # 24
OUT_DIM = 11 * 11 * 11   # 1331


def _round_up(x, m):
    return ((x + m - 1) // m) * m


def _dqn_kernel(x_ref, w1_ref, w2_ref, w3_ref, w4_ref, w5_ref, vec_ref, o_ref,
                *, offs):
    """x_ref: (Bt, 24) f32; w*: bf16 (VMEM-resident); vec_ref: packed f32 slab."""

    def vec(name):
        off, width = offs[name]              # static, lane-aligned offsets
        return vec_ref[:, off:off + width]   # (1, width) f32

    def dot(h, w_ref):
        # bf16 x bf16 on the MXU, f32 accumulation.
        return jnp.dot(h.astype(jnp.bfloat16), w_ref[...],
                       preferred_element_type=jnp.float32)

    def ln(h, gamma, beta):
        # PyTorch LayerNorm (biased variance, f32 math). Kept two-pass for
        # numerics; VALU is not the binding slot here (DMA / stores dominate).
        mu = jnp.mean(h, axis=-1, keepdims=True)
        var = jnp.mean(jnp.square(h - mu), axis=-1, keepdims=True)
        return (h - mu) * jax.lax.rsqrt(var + LN_EPS) * gamma + beta

    x = x_ref[...]

    h = jnp.maximum(ln(dot(x, w1_ref) + vec("b1"), vec("g1"), vec("bb1")), 0.0)
    h = jnp.maximum(ln(dot(h, w2_ref) + vec("b2"), vec("g2"), vec("bb2")), 0.0)
    h = jnp.maximum(ln(dot(h, w3_ref) + vec("b3"), vec("g3"), vec("bb3")), 0.0)
    h = jnp.maximum(dot(h, w4_ref) + vec("b4"), 0.0)
    # fc5 (no activation): true 1331-wide output -> single masked-tail store.
    o_ref[...] = (dot(h, w5_ref) + vec("b5")).astype(o_ref.dtype)


def _pack_param_vectors(named):
    """Pack (name, (1,N)) f32 vectors into one slab, each padded to 128 lanes."""
    offs, cols, cur = {}, [], 0
    for name, arr in named:
        arr = jnp.asarray(arr, jnp.float32).reshape(1, -1)
        w = arr.shape[1]
        wp = _round_up(w, 128)
        offs[name] = (cur, w)
        if wp != w:
            arr = jnp.pad(arr, ((0, 0), (0, wp - w)))
        cols.append(arr)
        cur += wp
    return jnp.concatenate(cols, axis=1), offs


def prepare_params(params):
    """One-time parameter prep. Run at parameter-load time, NOT per forward.

    Casts weights to bf16 (halves the dominant weight DMA; dots accumulate in
    f32) and packs the 11 tiny bias / LayerNorm vectors into one lane-aligned
    f32 slab so the kernel sees a single DMA + static in-kernel slices.
    """
    weights = tuple(jnp.asarray(params[f"w{i}"], jnp.bfloat16) for i in range(1, 6))
    vec_slab, offs = _pack_param_vectors([
        ("b1", params["b1"]), ("g1", params["g1"]), ("bb1", params["bb1"]),
        ("b2", params["b2"]), ("g2", params["g2"]), ("bb2", params["bb2"]),
        ("b3", params["b3"]), ("g3", params["g3"]), ("bb3", params["bb3"]),
        ("b4", params["b4"]), ("b5", params["b5"]),
    ])
    return weights, vec_slab, offs


def _pick_batch_block(B):
    """Big tiles for HBM efficiency; >= 2 tiles (when B >= 64) so both v7x TCs run."""
    B8 = _round_up(max(B, 1), 8)
    if B8 < 64:
        return B8                                   # single tile, no padding
    return min(_round_up(pl.cdiv(B8, 2), 8), 512)   # >= 2 grid steps, cap at 512


def dqn_linear_forward(x, prepared, *, batch_block=None,
                       out_dtype=jnp.float32, vmem_limit_bytes=24 << 20):
    """Fused DqnLinear forward. `prepared` comes from prepare_params().

    On v5e (write-bandwidth bound) pass out_dtype=jnp.bfloat16 if the Q-value
    consumer tolerates it — it halves the dominant 5.3 KB/row output write.
    """
    weights, vec_slab, offs = prepared
    B = x.shape[0]

    if batch_block is None:
        batch_block = _pick_batch_block(B)
    B_pad = _round_up(B, batch_block)
    x_p = x if B_pad == B else jnp.pad(x, ((0, B_pad - B), (0, 0)))

    grid = (B_pad // batch_block,)
    const = lambda i: (0, 0)   # weights / param slab: fetched once, stay resident

    def build(resident_kwargs):
        return pl.pallas_call(
            functools.partial(_dqn_kernel, offs=offs),
            out_shape=jax.ShapeDtypeStruct((B_pad, OUT_DIM), out_dtype),
            grid=grid,
            in_specs=(
                [pl.BlockSpec((batch_block, IN_DIM), lambda i: (i, 0))]
                + [pl.BlockSpec(w.shape, const, **resident_kwargs) for w in weights]
                + [pl.BlockSpec(vec_slab.shape, const, **resident_kwargs)]
            ),
            out_specs=pl.BlockSpec((batch_block, OUT_DIM), lambda i: (i, 0)),
            compiler_params=pltpu.CompilerParams(
                dimension_semantics=("parallel",),
                vmem_limit_bytes=vmem_limit_bytes,
            ),
        )

    try:
        # Constant-index blocks are DMA'd once; request single buffering so the
        # default double-buffer doesn't waste VMEM (matters at larger hidden_size).
        out = build(dict(pipeline_mode=pl.Buffered(1)))(x_p, *weights, vec_slab)
    except Exception:
        # Fallback if this jax build rejects pipeline_mode on a top-level
        # pallas_call; constant index_maps still keep the weights resident.
        out = build({})(x_p, *weights, vec_slab)

    # TODO(synk): for a small-batch online DQN loop, keep the ~0.8 MB of bf16
    # weights resident across calls (cross-call prefetch / memory-space
    # constraint) instead of re-DMAing them every step.
    # TODO(synk): at much larger hidden_size, tile fc5 along N and re-budget
    # VMEM for v7x's 64 MiB core; int8 weights are a v6e-only further option.
    return out if B_pad == B else out[:B]


def make_params(hidden_size, key):
    """Deterministic synthetic f32 parameters matching DqnLinear(hidden_size)."""
    H = hidden_size
    dims = [
        (IN_DIM, H),       # fc1
        (H, 2 * H),        # fc2
        (2 * H, 4 * H),    # fc3
        (4 * H, 8 * H),    # fc4
        (8 * H, OUT_DIM),  # fc5
    ]
    keys = jax.random.split(key, 2 * len(dims))
    params = {}
    for i, (fan_in, fan_out) in enumerate(dims, start=1):
        bound = 1.0 / (fan_in ** 0.5)  # PyTorch default nn.Linear init range
        params[f"w{i}"] = jax.random.uniform(
            keys[2 * (i - 1)], (fan_in, fan_out), jnp.float32, -bound, bound)
        params[f"b{i}"] = jax.random.uniform(
            keys[2 * (i - 1) + 1], (1, fan_out), jnp.float32, -bound, bound)
    # LayerNorm affine params (gamma=1, beta=0, as nn.LayerNorm initializes).
    for i, n in ((1, H), (2, 2 * H), (3, 4 * H)):
        params[f"g{i}"] = jnp.ones((1, n), jnp.float32)
        params[f"bb{i}"] = jnp.zeros((1, n), jnp.float32)
    return params


def reference_forward(x, p):
    """Pure-JAX reference mirroring the kernel's bf16-weight / f32-acc math."""
    def dot(h, w):
        return jnp.dot(h.astype(jnp.bfloat16), w.astype(jnp.bfloat16),
                       preferred_element_type=jnp.float32)

    def ln(h, g, b):
        mu = jnp.mean(h, axis=-1, keepdims=True)
        var = jnp.mean(jnp.square(h - mu), axis=-1, keepdims=True)
        return (h - mu) * jax.lax.rsqrt(var + LN_EPS) * g + b

    h = jnp.maximum(ln(dot(x, p["w1"]) + p["b1"], p["g1"], p["bb1"]), 0.0)
    h = jnp.maximum(ln(dot(h, p["w2"]) + p["b2"], p["g2"], p["bb2"]), 0.0)
    h = jnp.maximum(ln(dot(h, p["w3"]) + p["b3"], p["g3"], p["bb3"]), 0.0)
    h = jnp.maximum(dot(h, p["w4"]) + p["b4"], 0.0)
    return dot(h, p["w5"]) + p["b5"]


if __name__ == "__main__":
    hidden_size = 32
    key = jax.random.PRNGKey(0)
    kx, kx2, kp = jax.random.split(key, 3)
    params = make_params(hidden_size, kp)
    prepared = prepare_params(params)          # one-time, outside the hot path

    # Small single-tile case (grid = 1).
    x = jax.random.normal(kx, (8, IN_DIM), jnp.float32)
    out = jax.block_until_ready(dqn_linear_forward(x, prepared))
    ref = reference_forward(x, params)
    assert out.shape == (8, OUT_DIM), out.shape
    assert jnp.allclose(out, ref, atol=2e-3, rtol=2e-3), \
        float(jnp.max(jnp.abs(out - ref)))

    # Awkward batch: exercises batch padding + a >= 2-step "parallel" grid.
    x2 = jax.random.normal(kx2, (200, IN_DIM), jnp.float32)
    out2 = jax.block_until_ready(dqn_linear_forward(x2, prepared))
    ref2 = reference_forward(x2, params)
    assert out2.shape == (200, OUT_DIM), out2.shape
    assert jnp.allclose(out2, ref2, atol=2e-3, rtol=2e-3), \
        float(jnp.max(jnp.abs(out2 - ref2)))

    print("KERNEL_OK")
</pallas_src>

<mosaic_0001>
module attributes {stable_mosaic.version = 11 : i64} {
  func.func @_dqn_kernel(%arg0: i32, %arg1: memref<8x24xf32, #tpu.memory_space<vmem>>, %arg2: memref<24x32xbf16, #tpu.memory_space<vmem>>, %arg3: memref<32x64xbf16, #tpu.memory_space<vmem>>, %arg4: memref<64x128xbf16, #tpu.memory_space<vmem>>, %arg5: memref<128x256xbf16, #tpu.memory_space<vmem>>, %arg6: memref<256x1331xbf16, #tpu.memory_space<vmem>>, %arg7: memref<1x2816xf32, #tpu.memory_space<vmem>>, %arg8: memref<8x1331xf32, #tpu.memory_space<vmem>>) attributes {dimension_semantics = [#tpu.dimension_semantics<parallel>], iteration_bounds = array<i64: 1>, scalar_prefetch = 0 : i64, scratch_operands = 0 : i64, tpu.core_type = #tpu.core_type<tc>, window_params = [{transform_indices = @transform_0, window_bounds = array<i64: 8, 24>}, {pipeline_mode = #tpu.pipeline_mode<synchronous>, transform_indices = @transform_1, window_bounds = array<i64: 24, 32>}, {pipeline_mode = #tpu.pipeline_mode<synchronous>, transform_indices = @transform_2, window_bounds = array<i64: 32, 64>}, {pipeline_mode = #tpu.pipeline_mode<synchronous>, transform_indices = @transform_3, window_bounds = array<i64: 64, 128>}, {pipeline_mode = #tpu.pipeline_mode<synchronous>, transform_indices = @transform_4, window_bounds = array<i64: 128, 256>}, {pipeline_mode = #tpu.pipeline_mode<synchronous>, transform_indices = @transform_5, window_bounds = array<i64: 256, 1331>}, {pipeline_mode = #tpu.pipeline_mode<synchronous>, transform_indices = @transform_6, window_bounds = array<i64: 1, 2816>}, {transform_indices = @transform_7, window_bounds = array<i64: 8, 1331>}]} {
    %c0 = arith.constant 0 : index
    %c0_0 = arith.constant 0 : index
    %0 = vector.load %arg1[%c0, %c0_0] : memref<8x24xf32, #tpu.memory_space<vmem>>, vector<8x24xf32>
    %1 = arith.truncf %0 : vector<8x24xf32> to vector<8x24xbf16>
    %c0_1 = arith.constant 0 : index
    %c0_2 = arith.constant 0 : index
    %2 = vector.load %arg2[%c0_1, %c0_2] : memref<24x32xbf16, #tpu.memory_space<vmem>>, vector<24x32xbf16>
    %cst = arith.constant dense<0.000000e+00> : vector<8x32xf32>
    %3 = tpu.matmul %1, %2, %cst {dimension_numbers = #tpu.dot_dimension_numbers<[1], [0], [0], [1], [0, 0, 1, 1], [], []>} : vector<8x24xbf16>, vector<24x32xbf16>, vector<8x32xf32> -> vector<8x32xf32>
    %c0_3 = arith.constant 0 : index
    %c0_4 = arith.constant 0 : index
    %4 = vector.load %arg7[%c0_3, %c0_4] : memref<1x2816xf32, #tpu.memory_space<vmem>>, vector<1x32xf32>
    %5 = vector.broadcast %4 : vector<1x32xf32> to vector<8x32xf32>
    %6 = arith.addf %3, %5 : vector<8x32xf32>
    %c0_5 = arith.constant 0 : index
    %c128 = arith.constant 128 : index
    %7 = vector.load %arg7[%c0_5, %c128] : memref<1x2816xf32, #tpu.memory_space<vmem>>, vector<1x32xf32>
    %c0_6 = arith.constant 0 : index
    %c256 = arith.constant 256 : index
    %8 = vector.load %arg7[%c0_6, %c256] : memref<1x2816xf32, #tpu.memory_space<vmem>>, vector<1x32xf32>
    %cst_7 = arith.constant dense<0.000000e+00> : vector<8xf32>
    %9 = vector.multi_reduction <add>, %6, %cst_7 [1] : vector<8x32xf32> to vector<8xf32>
    %10 = vector.shape_cast %9 : vector<8xf32> to vector<8x1xf32>
    %cst_8 = arith.constant 3.200000e+01 : f32
    %11 = vector.broadcast %cst_8 : f32 to vector<8x1xf32>
    %12 = arith.divf %10, %11 : vector<8x1xf32>
    %13 = vector.broadcast %12 : vector<8x1xf32> to vector<8x32xf32>
    %14 = arith.subf %6, %13 : vector<8x32xf32>
    %15 = arith.mulf %14, %14 : vector<8x32xf32>
    %cst_9 = arith.constant dense<0.000000e+00> : vector<8xf32>
    %16 = vector.multi_reduction <add>, %15, %cst_9 [1] : vector<8x32xf32> to vector<8xf32>
    %17 = vector.shape_cast %16 : vector<8xf32> to vector<8x1xf32>
    %cst_10 = arith.constant 3.200000e+01 : f32
    %18 = vector.broadcast %cst_10 : f32 to vector<8x1xf32>
    %19 = arith.divf %17, %18 : vector<8x1xf32>
    %20 = vector.broadcast %12 : vector<8x1xf32> to vector<8x32xf32>
    %21 = arith.subf %6, %20 : vector<8x32xf32>
    %cst_11 = arith.constant 9.99999974E-6 : f32
    %22 = vector.broadcast %cst_11 : f32 to vector<8x1xf32>
    %23 = arith.addf %19, %22 : vector<8x1xf32>
    %24 = math.rsqrt %23 : vector<8x1xf32>
    %25 = vector.broadcast %24 : vector<8x1xf32> to vector<8x32xf32>
    %26 = arith.mulf %21, %25 : vector<8x32xf32>
    %27 = vector.broadcast %7 : vector<1x32xf32> to vector<8x32xf32>
    %28 = arith.mulf %26, %27 : vector<8x32xf32>
    %29 = vector.broadcast %8 : vector<1x32xf32> to vector<8x32xf32>
    %30 = arith.addf %28, %29 : vector<8x32xf32>
    %cst_12 = arith.constant 0.000000e+00 : f32
    %31 = vector.broadcast %cst_12 : f32 to vector<8x32xf32>
    %32 = arith.maximumf %30, %31 : vector<8x32xf32>
    %33 = arith.truncf %32 : vector<8x32xf32> to vector<8x32xbf16>
    %c0_13 = arith.constant 0 : index
    %c0_14 = arith.constant 0 : index
    %34 = vector.load %arg3[%c0_13, %c0_14] : memref<32x64xbf16, #tpu.memory_space<vmem>>, vector<32x64xbf16>
    %cst_15 = arith.constant dense<0.000000e+00> : vector<8x64xf32>
    %35 = tpu.matmul %33, %34, %cst_15 {dimension_numbers = #tpu.dot_dimension_numbers<[1], [0], [0], [1], [0, 0, 1, 1], [], []>} : vector<8x32xbf16>, vector<32x64xbf16>, vector<8x64xf32> -> vector<8x64xf32>
    %c0_16 = arith.constant 0 : index
    %c384 = arith.constant 384 : index
    %36 = vector.load %arg7[%c0_16, %c384] : memref<1x2816xf32, #tpu.memory_space<vmem>>, vector<1x64xf32>
    %37 = vector.broadcast %36 : vector<1x64xf32> to vector<8x64xf32>
    %38 = arith.addf %35, %37 : vector<8x64xf32>
    %c0_17 = arith.constant 0 : index
    %c512 = arith.constant 512 : index
    %39 = vector.load %arg7[%c0_17, %c512] : memref<1x2816xf32, #tpu.memory_space<vmem>>, vector<1x64xf32>
    %c0_18 = arith.constant 0 : index
    %c640 = arith.constant 640 : index
    %40 = vector.load %arg7[%c0_18, %c640] : memref<1x2816xf32, #tpu.memory_space<vmem>>, vector<1x64xf32>
    %cst_19 = arith.constant dense<0.000000e+00> : vector<8xf32>
    %41 = vector.multi_reduction <add>, %38, %cst_19 [1] : vector<8x64xf32> to vector<8xf32>
    %42 = vector.shape_cast %41 : vector<8xf32> to vector<8x1xf32>
    %cst_20 = arith.constant 6.400000e+01 : f32
    %43 = vector.broadcast %cst_20 : f32 to vector<8x1xf32>
    %44 = arith.divf %42, %43 : vector<8x1xf32>
    %45 = vector.broadcast %44 : vector<8x1xf32> to vector<8x64xf32>
    %46 = arith.subf %38, %45 : vector<8x64xf32>
    %47 = arith.mulf %46, %46 : vector<8x64xf32>
    %cst_21 = arith.constant dense<0.000000e+00> : vector<8xf32>
    %48 = vector.multi_reduction <add>, %47, %cst_21 [1] : vector<8x64xf32> to vector<8xf32>
    %49 = vector.shape_cast %48 : vector<8xf32> to vector<8x1xf32>
    %cst_22 = arith.constant 6.400000e+01 : f32
    %50 = vector.broadcast %cst_22 : f32 to vector<8x1xf32>
    %51 = arith.divf %49, %50 : vector<8x1xf32>
    %52 = vector.broadcast %44 : vector<8x1xf32> to vector<8x64xf32>
    %53 = arith.subf %38, %52 : vector<8x64xf32>
    %cst_23 = arith.constant 9.99999974E-6 : f32
    %54 = vector.broadcast %cst_23 : f32 to vector<8x1xf32>
    %55 = arith.addf %51, %54 : vector<8x1xf32>
    %56 = math.rsqrt %55 : vector<8x1xf32>
    %57 = vector.broadcast %56 : vector<8x1xf32> to vector<8x64xf32>
    %58 = arith.mulf %53, %57 : vector<8x64xf32>
    %59 = vector.broadcast %39 : vector<1x64xf32> to vector<8x64xf32>
    %60 = arith.mulf %58, %59 : vector<8x64xf32>
    %61 = vector.broadcast %40 : vector<1x64xf32> to vector<8x64xf32>
    %62 = arith.addf %60, %61 : vector<8x64xf32>
    %cst_24 = arith.constant 0.000000e+00 : f32
    %63 = vector.broadcast %cst_24 : f32 to vector<8x64xf32>
    %64 = arith.maximumf %62, %63 : vector<8x64xf32>
    %65 = arith.truncf %64 : vector<8x64xf32> to vector<8x64xbf16>
    %c0_25 = arith.constant 0 : index
    %c0_26 = arith.constant 0 : index
    %66 = vector.load %arg4[%c0_25, %c0_26] : memref<64x128xbf16, #tpu.memory_space<vmem>>, vector<64x128xbf16>
    %cst_27 = arith.constant dense<0.000000e+00> : vector<8x128xf32>
    %67 = tpu.matmul %65, %66, %cst_27 {dimension_numbers = #tpu.dot_dimension_numbers<[1], [0], [0], [1], [0, 0, 1, 1], [], []>} : vector<8x64xbf16>, vector<64x128xbf16>, vector<8x128xf32> -> vector<8x128xf32>
    %c0_28 = arith.constant 0 : index
    %c768 = arith.constant 768 : index
    %68 = vector.load %arg7[%c0_28, %c768] : memref<1x2816xf32, #tpu.memory_space<vmem>>, vector<1x128xf32>
    %69 = vector.broadcast %68 : vector<1x128xf32> to vector<8x128xf32>
    %70 = arith.addf %67, %69 : vector<8x128xf32>
    %c0_29 = arith.constant 0 : index
    %c896 = arith.constant 896 : index
    %71 = vector.load %arg7[%c0_29, %c896] : memref<1x2816xf32, #tpu.memory_space<vmem>>, vector<1x128xf32>
    %c0_30 = arith.constant 0 : index
    %c1024 = arith.constant 1024 : index
    %72 = vector.load %arg7[%c0_30, %c1024] : memref<1x2816xf32, #tpu.memory_space<vmem>>, vector<1x128xf32>
    %cst_31 = arith.constant dense<0.000000e+00> : vector<8xf32>
    %73 = vector.multi_reduction <add>, %70, %cst_31 [1] : vector<8x128xf32> to vector<8xf32>
    %74 = vector.shape_cast %73 : vector<8xf32> to vector<8x1xf32>
    %cst_32 = arith.constant 1.280000e+02 : f32
    %75 = vector.broadcast %cst_32 : f32 to vector<8x1xf32>
    %76 = arith.divf %74, %75 : vector<8x1xf32>
    %77 = vector.broadcast %76 : vector<8x1xf32> to vector<8x128xf32>
    %78 = arith.subf %70, %77 : vector<8x128xf32>
    %79 = arith.mulf %78, %78 : vector<8x128xf32>
    %cst_33 = arith.constant dense<0.000000e+00> : vector<8xf32>
    %80 = vector.multi_reduction <add>, %79, %cst_33 [1] : vector<8x128xf32> to vector<8xf32>
    %81 = vector.shape_cast %80 : vector<8xf32> to vector<8x1xf32>
    %cst_34 = arith.constant 1.280000e+02 : f32
    %82 = vector.broadcast %cst_34 : f32 to vector<8x1xf32>
    %83 = arith.divf %81, %82 : vector<8x1xf32>
    %84 = vector.broadcast %76 : vector<8x1xf32> to vector<8x128xf32>
    %85 = arith.subf %70, %84 : vector<8x128xf32>
    %cst_35 = arith.constant 9.99999974E-6 : f32
    %86 = vector.broadcast %cst_35 : f32 to vector<8x1xf32>
    %87 = arith.addf %83, %86 : vector<8x1xf32>
    %88 = math.rsqrt %87 : vector<8x1xf32>
    %89 = vector.broadcast %88 : vector<8x1xf32> to vector<8x128xf32>
    %90 = arith.mulf %85, %89 : vector<8x128xf32>
    %91 = vector.broadcast %71 : vector<1x128xf32> to vector<8x128xf32>
    %92 = arith.mulf %90, %91 : vector<8x128xf32>
    %93 = vector.broadcast %72 : vector<1x128xf32> to vector<8x128xf32>
    %94 = arith.addf %92, %93 : vector<8x128xf32>
    %cst_36 = arith.constant 0.000000e+00 : f32
    %95 = vector.broadcast %cst_36 : f32 to vector<8x128xf32>
    %96 = arith.maximumf %94, %95 : vector<8x128xf32>
    %97 = arith.truncf %96 : vector<8x128xf32> to vector<8x128xbf16>
    %c0_37 = arith.constant 0 : index
    %c0_38 = arith.constant 0 : index
    %98 = vector.load %arg5[%c0_37, %c0_38] : memref<128x256xbf16, #tpu.memory_space<vmem>>, vector<128x256xbf16>
    %cst_39 = arith.constant dense<0.000000e+00> : vector<8x256xf32>
    %99 = tpu.matmul %97, %98, %cst_39 {dimension_numbers = #tpu.dot_dimension_numbers<[1], [0], [0], [1], [0, 0, 1, 1], [], []>} : vector<8x128xbf16>, vector<128x256xbf16>, vector<8x256xf32> -> vector<8x256xf32>
    %c0_40 = arith.constant 0 : index
    %c1152 = arith.constant 1152 : index
    %100 = vector.load %arg7[%c0_40, %c1152] : memref<1x2816xf32, #tpu.memory_space<vmem>>, vector<1x256xf32>
    %101 = vector.broadcast %100 : vector<1x256xf32> to vector<8x256xf32>
    %102 = arith.addf %99, %101 : vector<8x256xf32>
    %cst_41 = arith.constant 0.000000e+00 : f32
    %103 = vector.broadcast %cst_41 : f32 to vector<8x256xf32>
    %104 = arith.maximumf %102, %103 : vector<8x256xf32>
    %105 = arith.truncf %104 : vector<8x256xf32> to vector<8x256xbf16>
    %c0_42 = arith.constant 0 : index
    %c0_43 = arith.constant 0 : index
    %106 = vector.load %arg6[%c0_42, %c0_43] : memref<256x1331xbf16, #tpu.memory_space<vmem>>, vector<256x1331xbf16>
    %cst_44 = arith.constant dense<0.000000e+00> : vector<8x1331xf32>
    %107 = tpu.matmul %105, %106, %cst_44 {dimension_numbers = #tpu.dot_dimension_numbers<[1], [0], [0], [1], [0, 0, 1, 1], [], []>} : vector<8x256xbf16>, vector<256x1331xbf16>, vector<8x1331xf32> -> vector<8x1331xf32>
    %c0_45 = arith.constant 0 : index
    %c1408 = arith.constant 1408 : index
    %108 = vector.load %arg7[%c0_45, %c1408] : memref<1x2816xf32, #tpu.memory_space<vmem>>, vector<1x1331xf32>
    %109 = vector.broadcast %108 : vector<1x1331xf32> to vector<8x1331xf32>
    %110 = arith.addf %107, %109 : vector<8x1331xf32>
    %c0_46 = arith.constant 0 : index
    %c0_47 = arith.constant 0 : index
    %111 = vector.load %arg8[%c0_46, %c0_47] : memref<8x1331xf32, #tpu.memory_space<vmem>>, vector<8x1331xf32>
    tpu.vector_store %arg8[%c0_46, %c0_47], %110 {strides = array<i32>} : memref<8x1331xf32, #tpu.memory_space<vmem>>, vector<8x1331xf32>,
    return
  }
  func.func @transform_0(%arg0: i32) -> (i32, i32) {
    %c0_i32 = arith.constant 0 : i32
    %c0_i32_0 = arith.constant 0 : i32
    return %arg0, %c0_i32 : i32, i32
  }
  func.func @transform_1(%arg0: i32) -> (i32, i32) {
    %c0_i32 = arith.constant 0 : i32
    %c0_i32_0 = arith.constant 0 : i32
    %c0_i32_1 = arith.constant 0 : i32
    return %c0_i32, %c0_i32_0 : i32, i32
  }
  func.func @transform_2(%arg0: i32) -> (i32, i32) {
    %c0_i32 = arith.constant 0 : i32
    %c0_i32_0 = arith.constant 0 : i32
    %c0_i32_1 = arith.constant 0 : i32
    return %c0_i32, %c0_i32_0 : i32, i32
  }
  func.func @transform_3(%arg0: i32) -> (i32, i32) {
    %c0_i32 = arith.constant 0 : i32
    %c0_i32_0 = arith.constant 0 : i32
    %c0_i32_1 = arith.constant 0 : i32
    return %c0_i32, %c0_i32_0 : i32, i32
  }
  func.func @transform_4(%arg0: i32) -> (i32, i32) {
    %c0_i32 = arith.constant 0 : i32
    %c0_i32_0 = arith.constant 0 : i32
    %c0_i32_1 = arith.constant 0 : i32
    return %c0_i32, %c0_i32_0 : i32, i32
  }
  func.func @transform_5(%arg0: i32) -> (i32, i32) {
    %c0_i32 = arith.constant 0 : i32
    %c0_i32_0 = arith.constant 0 : i32
    %c0_i32_1 = arith.constant 0 : i32
    return %c0_i32, %c0_i32_0 : i32, i32
  }
  func.func @transform_6(%arg0: i32) -> (i32, i32) {
    %c0_i32 = arith.constant 0 : i32
    %c0_i32_0 = arith.constant 0 : i32
    %c0_i32_1 = arith.constant 0 : i32
    return %c0_i32, %c0_i32_0 : i32, i32
  }
  func.func @transform_7(%arg0: i32) -> (i32, i32) {
    %c0_i32 = arith.constant 0 : i32
    %c0_i32_0 = arith.constant 0 : i32
    return %arg0, %c0_i32 : i32, i32
  }
}

module attributes {stable_mosaic.version = 11 : i64} {
  func.func @_dqn_kernel(%arg0: i32, %arg1: memref<8x24xf32, #tpu.memory_space<vmem>>, %arg2: memref<24x32xbf16, #tpu.memory_space<vmem>>, %arg3: memref<32x64xbf16, #tpu.memory_space<vmem>>, %arg4: memref<64x128xbf16, #tpu.memory_space<vmem>>, %arg5: memref<128x256xbf16, #tpu.memory_space<vmem>>, %arg6: memref<256x1331xbf16, #tpu.memory_space<vmem>>, %arg7: memref<1x2816xf32, #tpu.memory_space<vmem>>, %arg8: memref<8x1331xf32, #tpu.memory_space<vmem>>) attributes {dimension_semantics = [#tpu.dimension_semantics<parallel>], iteration_bounds = array<i64: 1>, scalar_prefetch = 0 : i64, scratch_operands = 0 : i64, tpu.core_type = #tpu.core_type<tc>, window_params = [{transform_indices = @transform_0, window_bounds = array<i64: 8, 24>}, {pipeline_mode = #tpu.pipeline_mode<synchronous>, transform_indices = @transform_1, window_bounds = array<i64: 24, 32>}, {pipeline_mode = #tpu.pipeline_mode<synchronous>, transform_indices = @transform_2, window_bounds = array<i64: 32, 64>}, {pipeline_mode = #tpu.pipeline_mode<synchronous>, transform_indices = @transform_3, window_bounds = array<i64: 64, 128>}, {pipeline_mode = #tpu.pipeline_mode<synchronous>, transform_indices = @transform_4, window_bounds = array<i64: 128, 256>}, {pipeline_mode = #tpu.pipeline_mode<synchronous>, transform_indices = @transform_5, window_bounds = array<i64: 256, 1331>}, {pipeline_mode = #tpu.pipeline_mode<synchronous>, transform_indices = @transform_6, window_bounds = array<i64: 1, 2816>}, {transform_indices = @transform_7, window_bounds = array<i64: 8, 1331>}]} {
    %c0 = arith.constant 0 : index
    %c0_0 = arith.constant 0 : index
    %0 = vector.load %arg1[%c0, %c0_0] : memref<8x24xf32, #tpu.memory_space<vmem>>, vector<8x24xf32>
    %1 = arith.truncf %0 : vector<8x24xf32> to vector<8x24xbf16>
    %c0_1 = arith.constant 0 : index
    %c0_2 = arith.constant 0 : index
    %2 = vector.load %arg2[%c0_1, %c0_2] : memref<24x32xbf16, #tpu.memory_space<vmem>>, vector<24x32xbf16>
    %cst = arith.constant dense<0.000000e+00> : vector<8x32xf32>
    %3 = tpu.matmul %1, %2, %cst {dimension_numbers = #tpu.dot_dimension_numbers<[1], [0], [0], [1], [0, 0, 1, 1], [], []>} : vector<8x24xbf16>, vector<24x32xbf16>, vector<8x32xf32> -> vector<8x32xf32>
    %c0_3 = arith.constant 0 : index
    %c0_4 = arith.constant 0 : index
    %4 = vector.load %arg7[%c0_3, %c0_4] : memref<1x2816xf32, #tpu.memory_space<vmem>>, vector<1x32xf32>
    %5 = vector.broadcast %4 : vector<1x32xf32> to vector<8x32xf32>
    %6 = arith.addf %3, %5 : vector<8x32xf32>
    %c0_5 = arith.constant 0 : index
    %c128 = arith.constant 128 : index
    %7 = vector.load %arg7[%c0_5, %c128] : memref<1x2816xf32, #tpu.memory_space<vmem>>, vector<1x32xf32>
    %c0_6 = arith.constant 0 : index
    %c256 = arith.constant 256 : index
    %8 = vector.load %arg7[%c0_6, %c256] : memref<1x2816xf32, #tpu.memory_space<vmem>>, vector<1x32xf32>
    %cst_7 = arith.constant dense<0.000000e+00> : vector<8xf32>
    %9 = vector.multi_reduction <add>, %6, %cst_7 [1] : vector<8x32xf32> to vector<8xf32>
    %10 = vector.shape_cast %9 : vector<8xf32> to vector<8x1xf32>
    %cst_8 = arith.constant 3.200000e+01 : f32
    %11 = vector.broadcast %cst_8 : f32 to vector<8x1xf32>
    %12 = arith.divf %10, %11 : vector<8x1xf32>
    %13 = vector.broadcast %12 : vector<8x1xf32> to vector<8x32xf32>
    %14 = arith.subf %6, %13 : vector<8x32xf32>
    %15 = arith.mulf %14, %14 : vector<8x32xf32>
    %cst_9 = arith.constant dense<0.000000e+00> : vector<8xf32>
    %16 = vector.multi_reduction <add>, %15, %cst_9 [1] : vector<8x32xf32> to vector<8xf32>
    %17 = vector.shape_cast %16 : vector<8xf32> to vector<8x1xf32>
    %cst_10 = arith.constant 3.200000e+01 : f32
    %18 = vector.broadcast %cst_10 : f32 to vector<8x1xf32>
    %19 = arith.divf %17, %18 : vector<8x1xf32>
    %20 = vector.broadcast %12 : vector<8x1xf32> to vector<8x32xf32>
    %21 = arith.subf %6, %20 : vector<8x32xf32>
    %cst_11 = arith.constant 9.99999974E-6 : f32
    %22 = vector.broadcast %cst_11 : f32 to vector<8x1xf32>
    %23 = arith.addf %19, %22 : vector<8x1xf32>
    %24 = math.rsqrt %23 : vector<8x1xf32>
    %25 = vector.broadcast %24 : vector<8x1xf32> to vector<8x32xf32>
    %26 = arith.mulf %21, %25 : vector<8x32xf32>
    %27 = vector.broadcast %7 : vector<1x32xf32> to vector<8x32xf32>
    %28 = arith.mulf %26, %27 : vector<8x32xf32>
    %29 = vector.broadcast %8 : vector<1x32xf32> to vector<8x32xf32>
    %30 = arith.addf %28, %29 : vector<8x32xf32>
    %cst_12 = arith.constant 0.000000e+00 : f32
    %31 = vector.broadcast %cst_12 : f32 to vector<8x32xf32>
    %32 = arith.maximumf %30, %31 : vector<8x32xf32>
    %33 = arith.truncf %32 : vector<8x32xf32> to vector<8x32xbf16>
    %c0_13 = arith.constant 0 : index
    %c0_14 = arith.constant 0 : index
    %34 = vector.load %arg3[%c0_13, %c0_14] : memref<32x64xbf16, #tpu.memory_space<vmem>>, vector<32x64xbf16>
    %cst_15 = arith.constant dense<0.000000e+00> : vector<8x64xf32>
    %35 = tpu.matmul %33, %34, %cst_15 {dimension_numbers = #tpu.dot_dimension_numbers<[1], [0], [0], [1], [0, 0, 1, 1], [], []>} : vector<8x32xbf16>, vector<32x64xbf16>, vector<8x64xf32> -> vector<8x64xf32>
    %c0_16 = arith.constant 0 : index
    %c384 = arith.constant 384 : index
    %36 = vector.load %arg7[%c0_16, %c384] : memref<1x2816xf32, #tpu.memory_space<vmem>>, vector<1x64xf32>
    %37 = vector.broadcast %36 : vector<1x64xf32> to vector<8x64xf32>
    %38 = arith.addf %35, %37 : vector<8x64xf32>
    %c0_17 = arith.constant 0 : index
    %c512 = arith.constant 512 : index
    %39 = vector.load %arg7[%c0_17, %c512] : memref<1x2816xf32, #tpu.memory_space<vmem>>, vector<1x64xf32>
    %c0_18 = arith.constant 0 : index
    %c640 = arith.constant 640 : index
    %40 = vector.load %arg7[%c0_18, %c640] : memref<1x2816xf32, #tpu.memory_space<vmem>>, vector<1x64xf32>
    %cst_19 = arith.constant dense<0.000000e+00> : vector<8xf32>
    %41 = vector.multi_reduction <add>, %38, %cst_19 [1] : vector<8x64xf32> to vector<8xf32>
    %42 = vector.shape_cast %41 : vector<8xf32> to vector<8x1xf32>
    %cst_20 = arith.constant 6.400000e+01 : f32
    %43 = vector.broadcast %cst_20 : f32 to vector<8x1xf32>
    %44 = arith.divf %42, %43 : vector<8x1xf32>
    %45 = vector.broadcast %44 : vector<8x1xf32> to vector<8x64xf32>
    %46 = arith.subf %38, %45 : vector<8x64xf32>
    %47 = arith.mulf %46, %46 : vector<8x64xf32>
    %cst_21 = arith.constant dense<0.000000e+00> : vector<8xf32>
    %48 = vector.multi_reduction <add>, %47, %cst_21 [1] : vector<8x64xf32> to vector<8xf32>
    %49 = vector.shape_cast %48 : vector<8xf32> to vector<8x1xf32>
    %cst_22 = arith.constant 6.400000e+01 : f32
    %50 = vector.broadcast %cst_22 : f32 to vector<8x1xf32>
    %51 = arith.divf %49, %50 : vector<8x1xf32>
    %52 = vector.broadcast %44 : vector<8x1xf32> to vector<8x64xf32>
    %53 = arith.subf %38, %52 : vector<8x64xf32>
    %cst_23 = arith.constant 9.99999974E-6 : f32
    %54 = vector.broadcast %cst_23 : f32 to vector<8x1xf32>
    %55 = arith.addf %51, %54 : vector<8x1xf32>
    %56 = math.rsqrt %55 : vector<8x1xf32>
    %57 = vector.broadcast %56 : vector<8x1xf32> to vector<8x64xf32>
    %58 = arith.mulf %53, %57 : vector<8x64xf32>
    %59 = vector.broadcast %39 : vector<1x64xf32> to vector<8x64xf32>
    %60 = arith.mulf %58, %59 : vector<8x64xf32>
    %61 = vector.broadcast %40 : vector<1x64xf32> to vector<8x64xf32>
    %62 = arith.addf %60, %61 : vector<8x64xf32>
    %cst_24 = arith.constant 0.000000e+00 : f32
    %63 = vector.broadcast %cst_24 : f32 to vector<8x64xf32>
    %64 = arith.maximumf %62, %63 : vector<8x64xf32>
    %65 = arith.truncf %64 : vector<8x64xf32> to vector<8x64xbf16>
    %c0_25 = arith.constant 0 : index
    %c0_26 = arith.constant 0 : index
    %66 = vector.load %arg4[%c0_25, %c0_26] : memref<64x128xbf16, #tpu.memory_space<vmem>>, vector<64x128xbf16>
    %cst_27 = arith.constant dense<0.000000e+00> : vector<8x128xf32>
    %67 = tpu.matmul %65, %66, %cst_27 {dimension_numbers = #tpu.dot_dimension_numbers<[1], [0], [0], [1], [0, 0, 1, 1], [], []>} : vector<8x64xbf16>, vector<64x128xbf16>, vector<8x128xf32> -> vector<8x128xf32>
    %c0_28 = arith.constant 0 : index
    %c768 = arith.constant 768 : index
    %68 = vector.load %arg7[%c0_28, %c768] : memref<1x2816xf32, #tpu.memory_space<vmem>>, vector<1x128xf32>
    %69 = vector.broadcast %68 : vector<1x128xf32> to vector<8x128xf32>
    %70 = arith.addf %67, %69 : vector<8x128xf32>
    %c0_29 = arith.constant 0 : index
    %c896 = arith.constant 896 : index
    %71 = vector.load %arg7[%c0_29, %c896] : memref<1x2816xf32, #tpu.memory_space<vmem>>, vector<1x128xf32>
    %c0_30 = arith.constant 0 : index
    %c1024 = arith.constant 1024 : index
    %72 = vector.load %arg7[%c0_30, %c1024] : memref<1x2816xf32, #tpu.memory_space<vmem>>, vector<1x128xf32>
    %cst_31 = arith.constant dense<0.000000e+00> : vector<8xf32>
    %73 = vector.multi_reduction <add>, %70, %cst_31 [1] : vector<8x128xf32> to vector<8xf32>
    %74 = vector.shape_cast %73 : vector<8xf32> to vector<8x1xf32>
    %cst_32 = arith.constant 1.280000e+02 : f32
    %75 = vector.broadcast %cst_32 : f32 to vector<8x1xf32>
    %76 = arith.divf %74, %75 : vector<8x1xf32>
    %77 = vector.broadcast %76 : vector<8x1xf32> to vector<8x128xf32>
    %78 = arith.subf %70, %77 : vector<8x128xf32>
    %79 = arith.mulf %78, %78 : vector<8x128xf32>
    %cst_33 = arith.constant dense<0.000000e+00> : vector<8xf32>
    %80 = vector.multi_reduction <add>, %79, %cst_33 [1] : vector<8x128xf32> to vector<8xf32>
    %81 = vector.shape_cast %80 : vector<8xf32> to vector<8x1xf32>
    %cst_34 = arith.constant 1.280000e+02 : f32
    %82 = vector.broadcast %cst_34 : f32 to vector<8x1xf32>
    %83 = arith.divf %81, %82 : vector<8x1xf32>
    %84 = vector.broadcast %76 : vector<8x1xf32> to vector<8x128xf32>
    %85 = arith.subf %70, %84 : vector<8x128xf32>
    %cst_35 = arith.constant 9.99999974E-6 : f32
    %86 = vector.broadcast %cst_35 : f32 to vector<8x1xf32>
    %87 = arith.addf %83, %86 : vector<8x1xf32>
    %88 = math.rsqrt %87 : vector<8x1xf32>
    %89 = vector.broadcast %88 : vector<8x1xf32> to vector<8x128xf32>
    %90 = arith.mulf %85, %89 : vector<8x128xf32>
    %91 = vector.broadcast %71 : vector<1x128xf32> to vector<8x128xf32>
    %92 = arith.mulf %90, %91 : vector<8x128xf32>
    %93 = vector.broadcast %72 : vector<1x128xf32> to vector<8x128xf32>
    %94 = arith.addf %92, %93 : vector<8x128xf32>
    %cst_36 = arith.constant 0.000000e+00 : f32
    %95 = vector.broadcast %cst_36 : f32 to vector<8x128xf32>
    %96 = arith.maximumf %94, %95 : vector<8x128xf32>
    %97 = arith.truncf %96 : vector<8x128xf32> to vector<8x128xbf16>
    %c0_37 = arith.constant 0 : index
    %c0_38 = arith.constant 0 : index
    %98 = vector.load %arg5[%c0_37, %c0_38] : memref<128x256xbf16, #tpu.memory_space<vmem>>, vector<128x256xbf16>
    %cst_39 = arith.constant dense<0.000000e+00> : vector<8x256xf32>
    %99 = tpu.matmul %97, %98, %cst_39 {dimension_numbers = #tpu.dot_dimension_numbers<[1], [0], [0], [1], [0, 0, 1, 1], [], []>} : vector<8x128xbf16>, vector<128x256xbf16>, vector<8x256xf32> -> vector<8x256xf32>
    %c0_40 = arith.constant 0 : index
    %c1152 = arith.constant 1152 : index
    %100 = vector.load %arg7[%c0_40, %c1152] : memref<1x2816xf32, #tpu.memory_space<vmem>>, vector<1x256xf32>
    %101 = vector.broadcast %100 : vector<1x256xf32> to vector<8x256xf32>
    %102 = arith.addf %99, %101 : vector<8x256xf32>
    %cst_41 = arith.constant 0.000000e+00 : f32
    %103 = vector.broadcast %cst_41 : f32 to vector<8x256xf32>
    %104 = arith.maximumf %102, %103 : vector<8x256xf32>
    %105 = arith.truncf %104 : vector<8x256xf32> to vector<8x256xbf16>
    %c0_42 = arith.constant 0 : index
    %c0_43 = arith.constant 0 : index
    %106 = vector.load %arg6[%c0_42, %c0_43] : memref<256x1331xbf16, #tpu.memory_space<vmem>>, vector<256x1331xbf16>
    %cst_44 = arith.constant dense<0.000000e+00> : vector<8x1331xf32>
    %107 = tpu.matmul %105, %106, %cst_44 {dimension_numbers = #tpu.dot_dimension_numbers<[1], [0], [0], [1], [0, 0, 1, 1], [], []>} : vector<8x256xbf16>, vector<256x1331xbf16>, vector<8x1331xf32> -> vector<8x1331xf32>
    %c0_45 = arith.constant 0 : index
    %c1408 = arith.constant 1408 : index
    %108 = vector.load %arg7[%c0_45, %c1408] : memref<1x2816xf32, #tpu.memory_space<vmem>>, vector<1x1331xf32>
    %109 = vector.broadcast %108 : vector<1x1331xf32> to vector<8x1331xf32>
    %110 = arith.addf %107, %109 : vector<8x1331xf32>
    %c0_46 = arith.constant 0 : index
    %c0_47 = arith.constant 0 : index
    %111 = vector.load %arg8[%c0_46, %c0_47] : memref<8x1331xf32, #tpu.memory_space<vmem>>, vector<8x1331xf32>
    tpu.vector_store %arg8[%c0_46, %c0_47], %110 {strides = array<i32>} : memref<8x1331xf32, #tpu.memory_space<vmem>>, vector<8x1331xf32>,
    return
  }
  func.func @transform_0(%arg0: i32) -> (i32, i32) {
    %c0_i32 = arith.constant 0 : i32
    %c0_i32_0 = arith.constant 0 : i32
    return %arg0, %c0_i32 : i32, i32
  }
  func.func @transform_1(%arg0: i32) -> (i32, i32) {
    %c0_i32 = arith.constant 0 : i32
    %c0_i32_0 = arith.constant 0 : i32
    %c0_i32_1 = arith.constant 0 : i32
    return %c0_i32, %c0_i32_0 : i32, i32
  }
  func.func @transform_2(%arg0: i32) -> (i32, i32) {
    %c0_i32 = arith.constant 0 : i32
    %c0_i32_0 = arith.constant 0 : i32
    %c0_i32_1 = arith.constant 0 : i32
    return %c0_i32, %c0_i32_0 : i32, i32
  }
  func.func @transform_3(%arg0: i32) -> (i32, i32) {
    %c0_i32 = arith.constant 0 : i32
    %c0_i32_0 = arith.constant 0 : i32
    %c0_i32_1 = arith.constant 0 : i32
    return %c0_i32, %c0_i32_0 : i32, i32
  }
  func.func @transform_4(%arg0: i32) -> (i32, i32) {
    %c0_i32 = arith.constant 0 : i32
    %c0_i32_0 = arith.constant 0 : i32
    %c0_i32_1 = arith.constant 0 : i32
    return %c0_i32, %c0_i32_0 : i32, i32
  }
  func.func @transform_5(%arg0: i32) -> (i32, i32) {
    %c0_i32 = arith.constant 0 : i32
    %c0_i32_0 = arith.constant 0 : i32
    %c0_i32_1 = arith.constant 0 : i32
    return %c0_i32, %c0_i32_0 : i32, i32
  }
  func.func @transform_6(%arg0: i32) -> (i32, i32) {
    %c0_i32 = arith.constant 0 : i32
    %c0_i32_0 = arith.constant 0 : i32
    %c0_i32_1 = arith.constant 0 : i32
    return %c0_i32, %c0_i32_0 : i32, i32
  }
  func.func @transform_7(%arg0: i32) -> (i32, i32) {
    %c0_i32 = arith.constant 0 : i32
    %c0_i32_0 = arith.constant 0 : i32
    return %arg0, %c0_i32 : i32, i32
  }
}

</mosaic_0001>

<llo_original>
// kernel: tpu_custom_call.1
$region0: #{tpu_custom_call.1}
  #allocation0 [shape = 'u32[]', space=smem, size = 0x4, offset = 0x4, fixed_abs, tag = 'smem constant byte address 0x4 - core index']
  #allocation1 [shape = 'u32[72,128]{1,0:T(1,128)}', space=vmem, size = 0x9000, scoped, tag = 'internal scratch']
  %s0 = inlined_call_operand.vmem [shape: f32[8,24], index: 0, kind: input, shape index: {}]
  %s1 = inlined_call_operand.vmem [shape: bf16[24,32], index: 1, kind: input, shape index: {}]
  %s2 = inlined_call_operand.vmem [shape: bf16[32,64], index: 2, kind: input, shape index: {}]
  %s3 = inlined_call_operand.vmem [shape: bf16[64,128], index: 3, kind: input, shape index: {}]
  %s4 = inlined_call_operand.vmem [shape: bf16[128,256], index: 4, kind: input, shape index: {}]
  %s5 = inlined_call_operand.vmem [shape: bf16[256,1331], index: 5, kind: input, shape index: {}]
  %s6 = inlined_call_operand.vmem [shape: f32[1,2816], index: 6, kind: input, shape index: {}]
  %s7 = inlined_call_operand.hbm [shape: f32[8,1331], index: 7, kind: output, shape index: {}]
  %s8 = sld [smem:[#allocation0]]
  $region38: #{tpu_custom_call.1} parent=0
    _
  %s10 = ssub.s32 1, %s8
  %s11 = scalar_select 0, %s10, %s8
  $region1: #{tpu_custom_call.1} parent=0
    #allocation2 [shape = 'u8[45056]{0}', space=vmem, size = 0xb000, scoped, tag = 'output window, operand 0, single buffered']
    #allocation3 [shape = 's32[1]{0}', space=sflag, size = 0x4, scoped, tag = 'scoped memory for tpu_custom_call.1']
    %12 = vsyncpa [#allocation3], 0
    // Predicated region
    $region2: #{tpu_custom_call.1} parent=1 // pred_check
      _
    $region3: #{tpu_custom_call.1} parent=1 // pred_check_branch
      %14 = sbr.rel (0) target = $region5
    $region4: #{tpu_custom_call.1} parent=1 // pred_region
      _
    $region5: #{tpu_custom_call.1} parent=1 // pred_fallthru
      _
    // Predicated region
    $region6: #{tpu_custom_call.1} parent=1 // pred_check
      _
    $region7: #{tpu_custom_call.1} parent=1 // pred_check_branch
      %16 = sbr.rel (0) target = $region9
    $region8: #{tpu_custom_call.1} parent=1 // pred_region
      _
    $region9: #{tpu_custom_call.1} parent=1 // pred_fallthru
      _
    // Predicated region
    $region10: #{tpu_custom_call.1} parent=1 // pred_check
      _
    $region11: #{tpu_custom_call.1} parent=1 // pred_check_branch
      %18 = sbr.rel (0) target = $region13
    $region12: #{tpu_custom_call.1} parent=1 // pred_region
      _
    $region13: #{tpu_custom_call.1} parent=1 // pred_fallthru
      _
    // Predicated region
    $region14: #{tpu_custom_call.1} parent=1 // pred_check
      _
    $region15: #{tpu_custom_call.1} parent=1 // pred_check_branch
      %20 = sbr.rel (0) target = $region17
    $region16: #{tpu_custom_call.1} parent=1 // pred_region
      _
    $region17: #{tpu_custom_call.1} parent=1 // pred_fallthru
      _
    // Predicated region
    $region18: #{tpu_custom_call.1} parent=1 // pred_check
      _
    $region19: #{tpu_custom_call.1} parent=1 // pred_check_branch
      %22 = sbr.rel (0) target = $region21
    $region20: #{tpu_custom_call.1} parent=1 // pred_region
      _
    $region21: #{tpu_custom_call.1} parent=1 // pred_fallthru
      _
    // Predicated region
    $region22: #{tpu_custom_call.1} parent=1 // pred_check
      _
    $region23: #{tpu_custom_call.1} parent=1 // pred_check_branch
      %24 = sbr.rel (0) target = $region25
    $region24: #{tpu_custom_call.1} parent=1 // pred_region
      _
    $region25: #{tpu_custom_call.1} parent=1 // pred_fallthru
      _
    // Predicated region
    $region26: #{tpu_custom_call.1} parent=1 // pred_check
      _
    $region27: #{tpu_custom_call.1} parent=1 // pred_check_branch
      %26 = sbr.rel (0) target = $region29
    $region28: #{tpu_custom_call.1} parent=1 // pred_region
      _
    $region29: #{tpu_custom_call.1} parent=1 // pred_fallthru
      _
    %v28 = vld [vmem:[%s0] sm:$0xff]
    %v29 = vpack.c.bf16 %v28, %v28
    %v30 = vld [vmem:[%s1] sm:$0xf]
    %v31 = vld [vmem:[%s1 + $0x4] sm:$0xf]
    %v32 = vld [vmem:[%s1 + $0x8] sm:$0xf]
    %v33 = vld [vmem:[%s6] sm:$0x1]
    %v35 = vperm.slane %v33, 0
    %v40 = vunpack.c.l.b16 %v30
    %v41 = vunpack.c.l.b16 %v31
    %v42 = vunpack.c.l.b16 %v32
    %v43 = vpack.c.b16 %v41, %v40
    %v44 = vpack.c.b16 %v42, %v42
    %vm46 = vcmask 195584
    %v48 = vsel %vm46, %v29, 0
    %vm50 = vcmask 1043456
    %v52 = vsel %vm50, %v44, 0
    %54 = vmatpush.bf16.msra.mxu0 0
    %55 = vmatpush.bf16.msra.mxu0 0
    %56 = vmatpush.bf16.msra.mxu0 0
    %57 = vmatpush.bf16.msra.mxu0 0
    %58 = vmatpush.bf16.msra.mxu0 0
    %59 = vmatpush.bf16.msra.mxu0 0
    %60 = vmatpush.bf16.msra.mxu0 %v52
    %61 = vmatpush.bf16.msra.mxu0 %v43
    %62 = vmatmul.bf16.gmra.mxu0 %v48
    %v63 = vpop.f32.mrf.mxu0
    %v64 = vadd.f32 %v35, %v63
    %v65 = vpop.f32.mrf.mxu0
    %66 = vdwg.mxu0
    %v67 = vld [vmem:[%s6 + $0x1] sm:$0x1]
    %v68 = vld [vmem:[%s6 + $0x2] sm:$0x1]
    %vm69 = vcmask 261120
    %v70 = vsel %vm69, %v64, 0.0
    %71 = vadd.xlane.f32.xlu0 %v70
    %v72 = vpop.xlane.xlu0 %71
    %v73 = vrcp.pop 32.0
    %v74 = vmul.f32 32.0, %v73
    %v75 = vsub.f32 1.0, %v74
    %v76 = vmul.f32 %v73, %v75
    %v77 = vadd.f32 %v73, %v76
    %vm78 = vweird.f32 %v73
    %v79 = vsel %vm78, %v73, %v77
    %v80 = vmul.f32 %v72, %v79
    %v81 = vsub.f32 %v64, %v80
    %v82 = vmul.f32 %v81, %v81
    %v83 = vsel %vm69, %v82, 0.0
    %84 = vadd.xlane.f32.xlu0 %v83
    %v85 = vpop.xlane.xlu0 %84
    %v86 = vmul.f32 %v85, %v79
    %v87 = vadd.f32 %v86, 1e-05
    %v88 = vrsqrt.pop %v87
    %v89 = vmul.f32 %v88, %v87
    %v90 = vmul.f32 %v89, %v88
    %v91 = vmul.f32 0.5, %v90
    %v92 = vsub.f32 1.5, %v91
    %v93 = vmul.f32 %v88, %v92
    %vm94 = vweird.f32 %v87
    %vm95 = vweird.f32 %v88
    %vm96 = vmor %vm94, %vm95
    %v97 = vsel %vm96, %v88, %v93
    %v98 = vmul.f32 %v81, %v97
    %v100 = vperm.slane %v67, 0
    %v102 = vmul.f32 %v98, %v100
    %v104 = vperm.slane %v68, 0
    %v106 = vadd.f32 %v102, %v104
    %v107 = vmax.f32 %v106, 0.0
    %v108 = vpack.c.bf16 %v107, %v107
    %v109 = vld [vmem:[%s2] sm:$0xf]
    %v110 = vld [vmem:[%s2 + $0x4] sm:$0xf]
    %v111 = vld [vmem:[%s2 + $0x8] sm:$0xf]
    %v112 = vld [vmem:[%s2 + $0xc] sm:$0xf]
    %v113 = vld [vmem:[%s6 + $0x3] sm:$0x1]
    %v115 = vperm.slane %v113, 0
    %v121 = vunpack.c.l.b16 %v109
    %v122 = vunpack.c.l.b16 %v110
    %v123 = vunpack.c.l.b16 %v111
    %v124 = vunpack.c.l.b16 %v112
    %v125 = vpack.c.b16 %v122, %v121
    %v126 = vpack.c.b16 %v124, %v123
    %v130 = vsel %vm69, %v108, 0
    %132 = vmatpush.bf16.msra.mxu0 0
    %133 = vmatpush.bf16.msra.mxu0 0
    %134 = vmatpush.bf16.msra.mxu0 0
    %135 = vmatpush.bf16.msra.mxu0 0
    %136 = vmatpush.bf16.msra.mxu0 0
    %137 = vmatpush.bf16.msra.mxu0 0
    %138 = vmatpush.bf16.msra.mxu0 %v126
    %139 = vmatpush.bf16.msra.mxu0 %v125
    %140 = vmatmul.bf16.gmra.mxu0 %v130
    %v141 = vpop.f32.mrf.mxu0
    %v142 = vadd.f32 %v115, %v141
    %v143 = vpop.f32.mrf.mxu0
    %144 = vdwg.mxu0
    %v145 = vld [vmem:[%s6 + $0x4] sm:$0x1]
    %v146 = vld [vmem:[%s6 + $0x5] sm:$0x1]
    %vm147 = vcmask 523264
    %v148 = vsel %vm147, %v142, 0.0
    %149 = vadd.xlane.f32.xlu0 %v148
    %v150 = vpop.xlane.xlu0 %149
    %v151 = vrcp.pop 64.0
    %v152 = vmul.f32 64.0, %v151
    %v153 = vsub.f32 1.0, %v152
    %v154 = vmul.f32 %v151, %v153
    %v155 = vadd.f32 %v151, %v154
    %vm156 = vweird.f32 %v151
    %v157 = vsel %vm156, %v151, %v155
    %v158 = vmul.f32 %v150, %v157
    %v159 = vsub.f32 %v142, %v158
    %v160 = vmul.f32 %v159, %v159
    %v161 = vsel %vm147, %v160, 0.0
    %162 = vadd.xlane.f32.xlu0 %v161
    %v163 = vpop.xlane.xlu0 %162
    %v164 = vmul.f32 %v163, %v157
    %v165 = vadd.f32 %v164, 1e-05
    %v166 = vrsqrt.pop %v165
    %v167 = vmul.f32 %v166, %v165
    %v168 = vmul.f32 %v167, %v166
    %v169 = vmul.f32 0.5, %v168
    %v170 = vsub.f32 1.5, %v169
    %v171 = vmul.f32 %v166, %v170
    %vm172 = vweird.f32 %v165
    %vm173 = vweird.f32 %v166
    %vm174 = vmor %vm172, %vm173
    %v175 = vsel %vm174, %v166, %v171
    %v176 = vmul.f32 %v159, %v175
    %v178 = vperm.slane %v145, 0
    %v180 = vmul.f32 %v176, %v178
    %v182 = vperm.slane %v146, 0
    %v184 = vadd.f32 %v180, %v182
    %v185 = vmax.f32 %v184, 0.0
    %v186 = vpack.c.bf16 %v185, %v185
    %v187 = vld [vmem:[%s3] sm:$0xf]
    %v188 = vld [vmem:[%s3 + $0x4] sm:$0xf]
    %v189 = vld [vmem:[%s3 + $0x8] sm:$0xf]
    %v190 = vld [vmem:[%s3 + $0xc] sm:$0xf]
    %v191 = vld [vmem:[%s3 + $0x10] sm:$0xf]
    %v192 = vld [vmem:[%s3 + $0x14] sm:$0xf]
    %v193 = vld [vmem:[%s3 + $0x18] sm:$0xf]
    %v194 = vld [vmem:[%s3 + $0x1c] sm:$0xf]
    %v195 = vld [vmem:[%s6 + $0x6] sm:$0x1]
    %v197 = vperm.slane %v195, 0
    %v207 = vunpack.c.l.b16 %v187
    %v208 = vunpack.c.l.b16 %v188
    %v209 = vunpack.c.l.b16 %v189
    %v210 = vunpack.c.l.b16 %v190
    %v211 = vunpack.c.l.b16 %v191
    %v212 = vunpack.c.l.b16 %v192
    %v213 = vunpack.c.l.b16 %v193
    %v214 = vunpack.c.l.b16 %v194
    %v215 = vpack.c.b16 %v208, %v207
    %v216 = vpack.c.b16 %v210, %v209
    %v217 = vpack.c.b16 %v212, %v211
    %v218 = vpack.c.b16 %v214, %v213
    %v224 = vsel %vm147, %v186, 0
    %226 = vmatpush.bf16.msra.mxu0 0
    %227 = vmatpush.bf16.msra.mxu0 0
    %228 = vmatpush.bf16.msra.mxu0 0
    %229 = vmatpush.bf16.msra.mxu0 0
    %230 = vmatpush.bf16.msra.mxu0 %v218
    %231 = vmatpush.bf16.msra.mxu0 %v217
    %232 = vmatpush.bf16.msra.mxu0 %v216
    %233 = vmatpush.bf16.msra.mxu0 %v215
    %234 = vmatmul.bf16.gmra.mxu0 %v224
    %v235 = vpop.f32.mrf.mxu0
    %v236 = vadd.f32 %v197, %v235
    %v237 = vpop.f32.mrf.mxu0
    %238 = vdwg.mxu0
    %v239 = vld [vmem:[%s6 + $0x7] sm:$0x1]
    %v240 = vld [vmem:[%s6 + $0x8] sm:$0x1]
    %241 = vadd.xlane.f32.xlu0 %v236
    %v242 = vpop.xlane.xlu0 %241
    %v243 = vrcp.pop 128.0
    %v244 = vmul.f32 128.0, %v243
    %v245 = vsub.f32 1.0, %v244
    %v246 = vmul.f32 %v243, %v245
    %v247 = vadd.f32 %v243, %v246
    %vm248 = vweird.f32 %v243
    %v249 = vsel %vm248, %v243, %v247
    %v250 = vmul.f32 %v242, %v249
    %v251 = vsub.f32 %v236, %v250
    %v252 = vmul.f32 %v251, %v251
    %253 = vadd.xlane.f32.xlu0 %v252
    %v254 = vpop.xlane.xlu0 %253
    %v255 = vmul.f32 %v254, %v249
    %v256 = vadd.f32 %v255, 1e-05
    %v257 = vrsqrt.pop %v256
    %v258 = vmul.f32 %v257, %v256
    %v259 = vmul.f32 %v258, %v257
    %v260 = vmul.f32 0.5, %v259
    %v261 = vsub.f32 1.5, %v260
    %v262 = vmul.f32 %v257, %v261
    %vm263 = vweird.f32 %v256
    %vm264 = vweird.f32 %v257
    %vm265 = vmor %vm263, %vm264
    %v266 = vsel %vm265, %v257, %v262
    %v267 = vmul.f32 %v251, %v266
    %v269 = vperm.slane %v239, 0
    %v271 = vmul.f32 %v267, %v269
    %v273 = vperm.slane %v240, 0
    %v275 = vadd.f32 %v271, %v273
    %v276 = vmax.f32 %v275, 0.0
    %v277 = vpack.c.bf16 %v276, %v276
    %v278 = vld [vmem:[%s4] sm:$0xff]
    %v279 = vld [vmem:[%s4 + $0x8] sm:$0xff]
    %v280 = vld [vmem:[%s4 + $0x10] sm:$0xff]
    %v281 = vld [vmem:[%s4 + $0x18] sm:$0xff]
    %v282 = vld [vmem:[%s4 + $0x20] sm:$0xff]
    %v283 = vld [vmem:[%s4 + $0x28] sm:$0xff]
    %v284 = vld [vmem:[%s4 + $0x30] sm:$0xff]
    %v285 = vld [vmem:[%s4 + $0x38] sm:$0xff]
    %v286 = vld [vmem:[%s4 + $0x40] sm:$0xff]
    %v287 = vld [vmem:[%s4 + $0x48] sm:$0xff]
    %v288 = vld [vmem:[%s4 + $0x50] sm:$0xff]
    %v289 = vld [vmem:[%s4 + $0x58] sm:$0xff]
    %v290 = vld [vmem:[%s4 + $0x60] sm:$0xff]
    %v291 = vld [vmem:[%s4 + $0x68] sm:$0xff]
    %v292 = vld [vmem:[%s4 + $0x70] sm:$0xff]
    %v293 = vld [vmem:[%s4 + $0x78] sm:$0xff]
    %v294 = vld [vmem:[%s6 + $0x9] sm:$0x3]
    %v296 = vperm.slane %v294, 0
    %v297 = vperm.slane %v294, 1
    %v316 = vunpack.c.l.b16 %v278
    %v317 = vunpack.c.h.b16 %v278
    %v318 = vunpack.c.l.b16 %v279
    %v319 = vunpack.c.h.b16 %v279
    %v320 = vunpack.c.l.b16 %v280
    %v321 = vunpack.c.h.b16 %v280
    %v322 = vunpack.c.l.b16 %v281
    %v323 = vunpack.c.h.b16 %v281
    %v324 = vunpack.c.l.b16 %v282
    %v325 = vunpack.c.h.b16 %v282
    %v326 = vunpack.c.l.b16 %v283
    %v327 = vunpack.c.h.b16 %v283
    %v328 = vunpack.c.l.b16 %v284
    %v329 = vunpack.c.h.b16 %v284
    %v330 = vunpack.c.l.b16 %v285
    %v331 = vunpack.c.h.b16 %v285
    %v332 = vunpack.c.l.b16 %v286
    %v333 = vunpack.c.h.b16 %v286
    %v334 = vunpack.c.l.b16 %v287
    %v335 = vunpack.c.h.b16 %v287
    %v336 = vunpack.c.l.b16 %v288
    %v337 = vunpack.c.h.b16 %v288
    %v338 = vunpack.c.l.b16 %v289
    %v339 = vunpack.c.h.b16 %v289
    %v340 = vunpack.c.l.b16 %v290
    %v341 = vunpack.c.h.b16 %v290
    %v342 = vunpack.c.l.b16 %v291
    %v343 = vunpack.c.h.b16 %v291
    %v344 = vunpack.c.l.b16 %v292
    %v345 = vunpack.c.h.b16 %v292
    %v346 = vunpack.c.l.b16 %v293
    %v347 = vunpack.c.h.b16 %v293
    %v348 = vpack.c.b16 %v318, %v316
    %v349 = vpack.c.b16 %v319, %v317
    %v350 = vpack.c.b16 %v322, %v320
    %v351 = vpack.c.b16 %v323, %v321
    %v352 = vpack.c.b16 %v326, %v324
    %v353 = vpack.c.b16 %v327, %v325
    %v354 = vpack.c.b16 %v330, %v328
    %v355 = vpack.c.b16 %v331, %v329
    %v356 = vpack.c.b16 %v334, %v332
    %v357 = vpack.c.b16 %v335, %v333
    %v358 = vpack.c.b16 %v338, %v336
    %v359 = vpack.c.b16 %v339, %v337
    %v360 = vpack.c.b16 %v342, %v340
    %v361 = vpack.c.b16 %v343, %v341
    %v362 = vpack.c.b16 %v346, %v344
    %v363 = vpack.c.b16 %v347, %v345
    %380 = vmatpush.bf16.msra.mxu0 %v362
    %381 = vmatpush.bf16.msra.mxu0 %v360
    %382 = vmatpush.bf16.msra.mxu0 %v358
    %383 = vmatpush.bf16.msra.mxu0 %v356
    %384 = vmatpush.bf16.msra.mxu0 %v354
    %385 = vmatpush.bf16.msra.mxu0 %v352
    %386 = vmatpush.bf16.msra.mxu0 %v350
    %387 = vmatpush.bf16.msra.mxu0 %v348
    %388 = vmatmul.bf16.gmra.mxu0 %v277
    %v389 = vpop.f32.mrf.mxu0
    %v390 = vadd.f32 %v296, %v389
    %v391 = vpop.f32.mrf.mxu0
    %392 = vdwg.mxu0
    %393 = vmatpush.bf16.msra.mxu0 %v363
    %394 = vmatpush.bf16.msra.mxu0 %v361
    %395 = vmatpush.bf16.msra.mxu0 %v359
    %396 = vmatpush.bf16.msra.mxu0 %v357
    %397 = vmatpush.bf16.msra.mxu0 %v355
    %398 = vmatpush.bf16.msra.mxu0 %v353
    %399 = vmatpush.bf16.msra.mxu0 %v351
    %400 = vmatpush.bf16.msra.mxu0 %v349
    %401 = vmatmul.bf16.gmra.mxu0 %v277
    %v402 = vpop.f32.mrf.mxu0
    %v403 = vadd.f32 %v297, %v402
    %v404 = vpop.f32.mrf.mxu0
    %405 = vdwg.mxu0
    %v406 = vmax.f32 %v390, 0.0
    %v407 = vmax.f32 %v403, 0.0
    %v408 = vpack.c.bf16 %v406, %v406
    %v409 = vpack.c.bf16 %v407, %v407
    %v410 = vld [vmem:[%s5] sm:$0xff]
    %v411 = vld [vmem:[%s5 + $0x8] sm:$0xff]
    %v412 = vld [vmem:[%s5 + $0x10] sm:$0xff]
    %v413 = vld [vmem:[%s5 + $0x18] sm:$0xff]
    %v414 = vld [vmem:[%s5 + $0x20] sm:$0xff]
    %v415 = vld [vmem:[%s5 + $0x28] sm:$0xf]
    %v416 = vld [vmem:[%s5 + $0x2c] sm:$0xff]
    %v417 = vld [vmem:[%s5 + $0x34] sm:$0xff]
    %v418 = vld [vmem:[%s5 + $0x3c] sm:$0xff]
    %v419 = vld [vmem:[%s5 + $0x44] sm:$0xff]
    %v420 = vld [vmem:[%s5 + $0x4c] sm:$0xff]
    %v421 = vld [vmem:[%s5 + $0x54] sm:$0xf]
    %v422 = vld [vmem:[%s5 + $0x58] sm:$0xff]
    %v423 = vld [vmem:[%s5 + $0x60] sm:$0xff]
    %v424 = vld [vmem:[%s5 + $0x68] sm:$0xff]
    %v425 = vld [vmem:[%s5 + $0x70] sm:$0xff]
    %v426 = vld [vmem:[%s5 + $0x78] sm:$0xff]
    %v427 = vld [vmem:[%s5 + $0x80] sm:$0xf]
    %v428 = vld [vmem:[%s5 + $0x84] sm:$0xff]
    %v429 = vld [vmem:[%s5 + $0x8c] sm:$0xff]
    %v430 = vld [vmem:[%s5 + $0x94] sm:$0xff]
    %v431 = vld [vmem:[%s5 + $0x9c] sm:$0xff]
    %v432 = vld [vmem:[%s5 + $0xa4] sm:$0xff]
    %v433 = vld [vmem:[%s5 + $0xac] sm:$0xf]
    %v434 = vld [vmem:[%s5 + $0xb0] sm:$0xff]
    %v435 = vld [vmem:[%s5 + $0xb8] sm:$0xff]
    %v436 = vld [vmem:[%s5 + $0xc0] sm:$0xff]
    %v437 = vld [vmem:[%s5 + $0xc8] sm:$0xff]
    %v438 = vld [vmem:[%s5 + $0xd0] sm:$0xff]
    %v439 = vld [vmem:[%s5 + $0xd8] sm:$0xf]
    %v440 = vld [vmem:[%s5 + $0xdc] sm:$0xff]
    %v441 = vld [vmem:[%s5 + $0xe4] sm:$0xff]
    %v442 = vld [vmem:[%s5 + $0xec] sm:$0xff]
    %v443 = vld [vmem:[%s5 + $0xf4] sm:$0xff]
    %v444 = vld [vmem:[%s5 + $0xfc] sm:$0xff]
    %v445 = vld [vmem:[%s5 + $0x104] sm:$0xf]
    %v446 = vld [vmem:[%s5 + $0x108] sm:$0xff]
    %v447 = vld [vmem:[%s5 + $0x110] sm:$0xff]
    %v448 = vld [vmem:[%s5 + $0x118] sm:$0xff]
    %v449 = vld [vmem:[%s5 + $0x120] sm:$0xff]
    %v450 = vld [vmem:[%s5 + $0x128] sm:$0xff]
    %v451 = vld [vmem:[%s5 + $0x130] sm:$0xf]
    %v452 = vld [vmem:[%s5 + $0x134] sm:$0xff]
    %v453 = vld [vmem:[%s5 + $0x13c] sm:$0xff]
    %v454 = vld [vmem:[%s5 + $0x144] sm:$0xff]
    %v455 = vld [vmem:[%s5 + $0x14c] sm:$0xff]
    %v456 = vld [vmem:[%s5 + $0x154] sm:$0xff]
    %v457 = vld [vmem:[%s5 + $0x15c] sm:$0xf]
    %v458 = vld [vmem:[%s5 + $0x160] sm:$0xff]
    %v459 = vld [vmem:[%s5 + $0x168] sm:$0xff]
    %v460 = vld [vmem:[%s5 + $0x170] sm:$0xff]
    %v461 = vld [vmem:[%s5 + $0x178] sm:$0xff]
    %v462 = vld [vmem:[%s5 + $0x180] sm:$0xff]
    %v463 = vld [vmem:[%s5 + $0x188] sm:$0xf]
    %v464 = vld [vmem:[%s5 + $0x18c] sm:$0xff]
    %v465 = vld [vmem:[%s5 + $0x194] sm:$0xff]
    %v466 = vld [vmem:[%s5 + $0x19c] sm:$0xff]
    %v467 = vld [vmem:[%s5 + $0x1a4] sm:$0xff]
    %v468 = vld [vmem:[%s5 + $0x1ac] sm:$0xff]
    %v469 = vld [vmem:[%s5 + $0x1b4] sm:$0xf]
    %v470 = vld [vmem:[%s5 + $0x1b8] sm:$0xff]
    %v471 = vld [vmem:[%s5 + $0x1c0] sm:$0xff]
    %v472 = vld [vmem:[%s5 + $0x1c8] sm:$0xff]
    %v473 = vld [vmem:[%s5 + $0x1d0] sm:$0xff]
    %v474 = vld [vmem:[%s5 + $0x1d8] sm:$0xff]
    %v475 = vld [vmem:[%s5 + $0x1e0] sm:$0xf]
    %v476 = vld [vmem:[%s5 + $0x1e4] sm:$0xff]
    %v477 = vld [vmem:[%s5 + $0x1ec] sm:$0xff]
    %v478 = vld [vmem:[%s5 + $0x1f4] sm:$0xff]
    %v479 = vld [vmem:[%s5 + $0x1fc] sm:$0xff]
    %v480 = vld [vmem:[%s5 + $0x204] sm:$0xff]
    %v481 = vld [vmem:[%s5 + $0x20c] sm:$0xf]
    %v482 = vld [vmem:[%s5 + $0x210] sm:$0xff]
    %v483 = vld [vmem:[%s5 + $0x218] sm:$0xff]
    %v484 = vld [vmem:[%s5 + $0x220] sm:$0xff]
    %v485 = vld [vmem:[%s5 + $0x228] sm:$0xff]
    %v486 = vld [vmem:[%s5 + $0x230] sm:$0xff]
    %v487 = vld [vmem:[%s5 + $0x238] sm:$0xf]
    %v488 = vld [vmem:[%s5 + $0x23c] sm:$0xff]
    %v489 = vld [vmem:[%s5 + $0x244] sm:$0xff]
    %v490 = vld [vmem:[%s5 + $0x24c] sm:$0xff]
    %v491 = vld [vmem:[%s5 + $0x254] sm:$0xff]
    %v492 = vld [vmem:[%s5 + $0x25c] sm:$0xff]
    %v493 = vld [vmem:[%s5 + $0x264] sm:$0xf]
    %v494 = vld [vmem:[%s5 + $0x268] sm:$0xff]
    %v495 = vld [vmem:[%s5 + $0x270] sm:$0xff]
    %v496 = vld [vmem:[%s5 + $0x278] sm:$0xff]
    %v497 = vld [vmem:[%s5 + $0x280] sm:$0xff]
    %v498 = vld [vmem:[%s5 + $0x288] sm:$0xff]
    %v499 = vld [vmem:[%s5 + $0x290] sm:$0xf]
    %v500 = vld [vmem:[%s5 + $0x294] sm:$0xff]
    %v501 = vld [vmem:[%s5 + $0x29c] sm:$0xff]
    %v502 = vld [vmem:[%s5 + $0x2a4] sm:$0xff]
    %v503 = vld [vmem:[%s5 + $0x2ac] sm:$0xff]
    %v504 = vld [vmem:[%s5 + $0x2b4] sm:$0xff]
    %v505 = vld [vmem:[%s5 + $0x2bc] sm:$0xf]
    %v506 = vld [vmem:[%s5 + $0x2c0] sm:$0xff]
    %v507 = vld [vmem:[%s5 + $0x2c8] sm:$0xff]
    %v508 = vld [vmem:[%s5 + $0x2d0] sm:$0xff]
    %v509 = vld [vmem:[%s5 + $0x2d8] sm:$0xff]
    %v510 = vld [vmem:[%s5 + $0x2e0] sm:$0xff]
    %v511 = vld [vmem:[%s5 + $0x2e8] sm:$0xf]
    %v512 = vld [vmem:[%s5 + $0x2ec] sm:$0xff]
    %v513 = vld [vmem:[%s5 + $0x2f4] sm:$0xff]
    %v514 = vld [vmem:[%s5 + $0x2fc] sm:$0xff]
    %v515 = vld [vmem:[%s5 + $0x304] sm:$0xff]
    %v516 = vld [vmem:[%s5 + $0x30c] sm:$0xff]
    %v517 = vld [vmem:[%s5 + $0x314] sm:$0xf]
    %v518 = vld [vmem:[%s5 + $0x318] sm:$0xff]
    %v519 = vld [vmem:[%s5 + $0x320] sm:$0xff]
    %v520 = vld [vmem:[%s5 + $0x328] sm:$0xff]
    %v521 = vld [vmem:[%s5 + $0x330] sm:$0xff]
    %v522 = vld [vmem:[%s5 + $0x338] sm:$0xff]
    %v523 = vld [vmem:[%s5 + $0x340] sm:$0xf]
    %v524 = vld [vmem:[%s5 + $0x344] sm:$0xff]
    %v525 = vld [vmem:[%s5 + $0x34c] sm:$0xff]
    %v526 = vld [vmem:[%s5 + $0x354] sm:$0xff]
    %v527 = vld [vmem:[%s5 + $0x35c] sm:$0xff]
    %v528 = vld [vmem:[%s5 + $0x364] sm:$0xff]
    %v529 = vld [vmem:[%s5 + $0x36c] sm:$0xf]
    %v530 = vld [vmem:[%s5 + $0x370] sm:$0xff]
    %v531 = vld [vmem:[%s5 + $0x378] sm:$0xff]
    %v532 = vld [vmem:[%s5 + $0x380] sm:$0xff]
    %v533 = vld [vmem:[%s5 + $0x388] sm:$0xff]
    %v534 = vld [vmem:[%s5 + $0x390] sm:$0xff]
    %v535 = vld [vmem:[%s5 + $0x398] sm:$0xf]
    %v536 = vld [vmem:[%s5 + $0x39c] sm:$0xff]
    %v537 = vld [vmem:[%s5 + $0x3a4] sm:$0xff]
    %v538 = vld [vmem:[%s5 + $0x3ac] sm:$0xff]
    %v539 = vld [vmem:[%s5 + $0x3b4] sm:$0xff]
    %v540 = vld [vmem:[%s5 + $0x3bc] sm:$0xff]
    %v541 = vld [vmem:[%s5 + $0x3c4] sm:$0xf]
    %v542 = vld [vmem:[%s5 + $0x3c8] sm:$0xff]
    %v543 = vld [vmem:[%s5 + $0x3d0] sm:$0xff]
    %v544 = vld [vmem:[%s5 + $0x3d8] sm:$0xff]
    %v545 = vld [vmem:[%s5 + $0x3e0] sm:$0xff]
    %v546 = vld [vmem:[%s5 + $0x3e8] sm:$0xff]
    %v547 = vld [vmem:[%s5 + $0x3f0] sm:$0xf]
    %v548 = vld [vmem:[%s5 + $0x3f4] sm:$0xff]
    %v549 = vld [vmem:[%s5 + $0x3fc] sm:$0xff]
    %v550 = vld [vmem:[%s5 + $0x404] sm:$0xff]
    %v551 = vld [vmem:[%s5 + $0x40c] sm:$0xff]
    %v552 = vld [vmem:[%s5 + $0x414] sm:$0xff]
    %v553 = vld [vmem:[%s5 + $0x41c] sm:$0xf]
    %v554 = vld [vmem:[%s5 + $0x420] sm:$0xff]
    %v555 = vld [vmem:[%s5 + $0x428] sm:$0xff]
    %v556 = vld [vmem:[%s5 + $0x430] sm:$0xff]
    %v557 = vld [vmem:[%s5 + $0x438] sm:$0xff]
    %v558 = vld [vmem:[%s5 + $0x440] sm:$0xff]
    %v559 = vld [vmem:[%s5 + $0x448] sm:$0xf]
    %v560 = vld [vmem:[%s5 + $0x44c] sm:$0xff]
    %v561 = vld [vmem:[%s5 + $0x454] sm:$0xff]
    %v562 = vld [vmem:[%s5 + $0x45c] sm:$0xff]
    %v563 = vld [vmem:[%s5 + $0x464] sm:$0xff]
    %v564 = vld [vmem:[%s5 + $0x46c] sm:$0xff]
    %v565 = vld [vmem:[%s5 + $0x474] sm:$0xf]
    %v566 = vld [vmem:[%s5 + $0x478] sm:$0xff]
    %v567 = vld [vmem:[%s5 + $0x480] sm:$0xff]
    %v568 = vld [vmem:[%s5 + $0x488] sm:$0xff]
    %v569 = vld [vmem:[%s5 + $0x490] sm:$0xff]
    %v570 = vld [vmem:[%s5 + $0x498] sm:$0xff]
    %v571 = vld [vmem:[%s5 + $0x4a0] sm:$0xf]
    %v572 = vld [vmem:[%s5 + $0x4a4] sm:$0xff]
    %v573 = vld [vmem:[%s5 + $0x4ac] sm:$0xff]
    %v574 = vld [vmem:[%s5 + $0x4b4] sm:$0xff]
    %v575 = vld [vmem:[%s5 + $0x4bc] sm:$0xff]
    %v576 = vld [vmem:[%s5 + $0x4c4] sm:$0xff]
    %v577 = vld [vmem:[%s5 + $0x4cc] sm:$0xf]
    %v578 = vld [vmem:[%s5 + $0x4d0] sm:$0xff]
    %v579 = vld [vmem:[%s5 + $0x4d8] sm:$0xff]
    %v580 = vld [vmem:[%s5 + $0x4e0] sm:$0xff]
    %v581 = vld [vmem:[%s5 + $0x4e8] sm:$0xff]
    %v582 = vld [vmem:[%s5 + $0x4f0] sm:$0xff]
    %v583 = vld [vmem:[%s5 + $0x4f8] sm:$0xf]
    %v584 = vld [vmem:[%s5 + $0x4fc] sm:$0xff]
    %v585 = vld [vmem:[%s5 + $0x504] sm:$0xff]
    %v586 = vld [vmem:[%s5 + $0x50c] sm:$0xff]
    %v587 = vld [vmem:[%s5 + $0x514] sm:$0xff]
    %v588 = vld [vmem:[%s5 + $0x51c] sm:$0xff]
    %v589 = vld [vmem:[%s5 + $0x524] sm:$0xf]
    %v590 = vld [vmem:[%s5 + $0x528] sm:$0xff]
    %v591 = vld [vmem:[%s5 + $0x530] sm:$0xff]
    %v592 = vld [vmem:[%s5 + $0x538] sm:$0xff]
    %v593 = vld [vmem:[%s5 + $0x540] sm:$0xff]
    %v594 = vld [vmem:[%s5 + $0x548] sm:$0xff]
    %v595 = vld [vmem:[%s5 + $0x550] sm:$0xf]
    %v596 = vld [vmem:[%s5 + $0x554] sm:$0xff]
    %v597 = vld [vmem:[%s5 + $0x55c] sm:$0xff]
    %v598 = vld [vmem:[%s5 + $0x564] sm:$0xff]
    %v599 = vld [vmem:[%s5 + $0x56c] sm:$0xff]
    %v600 = vld [vmem:[%s5 + $0x574] sm:$0xff]
    %v601 = vld [vmem:[%s5 + $0x57c] sm:$0xf]
    %v602 = vld [vmem:[%s6 + $0xb] sm:$0xff]
    %v603 = vld [vmem:[%s6 + $0x13] sm:$0x7]
    %v606 = vperm.slane %v602, 0
    %v607 = vperm.slane %v602, 1
    %v608 = vperm.slane %v602, 2
    %v609 = vperm.slane %v602, 3
    %v610 = vperm.slane %v602, 4
    %v611 = vperm.slane %v602, 5
    %v612 = vperm.slane %v602, 6
    %v613 = vperm.slane %v602, 7
    %v614 = vperm.slane %v603, 0
    %v615 = vperm.slane %v603, 1
    %v616 = vperm.slane %v603, 2
    %v820 = vunpack.c.l.b16 %v410
    %v821 = vunpack.c.h.b16 %v410
    %v822 = vunpack.c.l.b16 %v411
    %v823 = vunpack.c.h.b16 %v411
    %v824 = vunpack.c.l.b16 %v412
    %v825 = vunpack.c.h.b16 %v412
    %v826 = vunpack.c.l.b16 %v413
    %v827 = vunpack.c.h.b16 %v413
    %v828 = vunpack.c.l.b16 %v414
    %v829 = vunpack.c.h.b16 %v414
    %v830 = vunpack.c.l.b16 %v415
    %v831 = vunpack.c.l.b16 %v416
    %v832 = vunpack.c.h.b16 %v416
    %v833 = vunpack.c.l.b16 %v417
    %v834 = vunpack.c.h.b16 %v417
    %v835 = vunpack.c.l.b16 %v418
    %v836 = vunpack.c.h.b16 %v418
    %v837 = vunpack.c.l.b16 %v419
    %v838 = vunpack.c.h.b16 %v419
    %v839 = vunpack.c.l.b16 %v420
    %v840 = vunpack.c.h.b16 %v420
    %v841 = vunpack.c.l.b16 %v421
    %v842 = vunpack.c.l.b16 %v422
    %v843 = vunpack.c.h.b16 %v422
    %v844 = vunpack.c.l.b16 %v423
    %v845 = vunpack.c.h.b16 %v423
    %v846 = vunpack.c.l.b16 %v424
    %v847 = vunpack.c.h.b16 %v424
    %v848 = vunpack.c.l.b16 %v425
    %v849 = vunpack.c.h.b16 %v425
    %v850 = vunpack.c.l.b16 %v426
    %v851 = vunpack.c.h.b16 %v426
    %v852 = vunpack.c.l.b16 %v427
    %v853 = vunpack.c.l.b16 %v428
    %v854 = vunpack.c.h.b16 %v428
    %v855 = vunpack.c.l.b16 %v429
    %v856 = vunpack.c.h.b16 %v429
    %v857 = vunpack.c.l.b16 %v430
    %v858 = vunpack.c.h.b16 %v430
    %v859 = vunpack.c.l.b16 %v431
    %v860 = vunpack.c.h.b16 %v431
    %v861 = vunpack.c.l.b16 %v432
    %v862 = vunpack.c.h.b16 %v432
    %v863 = vunpack.c.l.b16 %v433
    %v864 = vunpack.c.l.b16 %v434
    %v865 = vunpack.c.h.b16 %v434
    %v866 = vunpack.c.l.b16 %v435
    %v867 = vunpack.c.h.b16 %v435
    %v868 = vunpack.c.l.b16 %v436
    %v869 = vunpack.c.h.b16 %v436
    %v870 = vunpack.c.l.b16 %v437
    %v871 = vunpack.c.h.b16 %v437
    %v872 = vunpack.c.l.b16 %v438
    %v873 = vunpack.c.h.b16 %v438
    %v874 = vunpack.c.l.b16 %v439
    %v875 = vunpack.c.l.b16 %v440
    %v876 = vunpack.c.h.b16 %v440
    %v877 = vunpack.c.l.b16 %v441
    %v878 = vunpack.c.h.b16 %v441
    %v879 = vunpack.c.l.b16 %v442
    %v880 = vunpack.c.h.b16 %v442
    %v881 = vunpack.c.l.b16 %v443
    %v882 = vunpack.c.h.b16 %v443
    %v883 = vunpack.c.l.b16 %v444
    %v884 = vunpack.c.h.b16 %v444
    %v885 = vunpack.c.l.b16 %v445
    %v886 = vunpack.c.l.b16 %v446
    %v887 = vunpack.c.h.b16 %v446
    %v888 = vunpack.c.l.b16 %v447
    %v889 = vunpack.c.h.b16 %v447
    %v890 = vunpack.c.l.b16 %v448
    %v891 = vunpack.c.h.b16 %v448
    %v892 = vunpack.c.l.b16 %v449
    %v893 = vunpack.c.h.b16 %v449
    %v894 = vunpack.c.l.b16 %v450
    %v895 = vunpack.c.h.b16 %v450
    %v896 = vunpack.c.l.b16 %v451
    %v897 = vunpack.c.l.b16 %v452
    %v898 = vunpack.c.h.b16 %v452
    %v899 = vunpack.c.l.b16 %v453
    %v900 = vunpack.c.h.b16 %v453
    %v901 = vunpack.c.l.b16 %v454
    %v902 = vunpack.c.h.b16 %v454
    %v903 = vunpack.c.l.b16 %v455
    %v904 = vunpack.c.h.b16 %v455
    %v905 = vunpack.c.l.b16 %v456
    %v906 = vunpack.c.h.b16 %v456
    %v907 = vunpack.c.l.b16 %v457
    %v908 = vunpack.c.l.b16 %v458
    %v909 = vunpack.c.h.b16 %v458
    %v910 = vunpack.c.l.b16 %v459
    %v911 = vunpack.c.h.b16 %v459
    %v912 = vunpack.c.l.b16 %v460
    %v913 = vunpack.c.h.b16 %v460
    %v914 = vunpack.c.l.b16 %v461
    %v915 = vunpack.c.h.b16 %v461
    %v916 = vunpack.c.l.b16 %v462
    %v917 = vunpack.c.h.b16 %v462
    %v918 = vunpack.c.l.b16 %v463
    %v919 = vunpack.c.l.b16 %v464
    %v920 = vunpack.c.h.b16 %v464
    %v921 = vunpack.c.l.b16 %v465
    %v922 = vunpack.c.h.b16 %v465
    %v923 = vunpack.c.l.b16 %v466
    %v924 = vunpack.c.h.b16 %v466
    %v925 = vunpack.c.l.b16 %v467
    %v926 = vunpack.c.h.b16 %v467
    %v927 = vunpack.c.l.b16 %v468
    %v928 = vunpack.c.h.b16 %v468
    %v929 = vunpack.c.l.b16 %v469
    %v930 = vunpack.c.l.b16 %v470
    %v931 = vunpack.c.h.b16 %v470
    %v932 = vunpack.c.l.b16 %v471
    %v933 = vunpack.c.h.b16 %v471
    %v934 = vunpack.c.l.b16 %v472
    %v935 = vunpack.c.h.b16 %v472
    %v936 = vunpack.c.l.b16 %v473
    %v937 = vunpack.c.h.b16 %v473
    %v938 = vunpack.c.l.b16 %v474
    %v939 = vunpack.c.h.b16 %v474
    %v940 = vunpack.c.l.b16 %v475
    %v941 = vunpack.c.l.b16 %v476
    %v942 = vunpack.c.h.b16 %v476
    %v943 = vunpack.c.l.b16 %v477
    %v944 = vunpack.c.h.b16 %v477
    %v945 = vunpack.c.l.b16 %v478
    %v946 = vunpack.c.h.b16 %v478
    %v947 = vunpack.c.l.b16 %v479
    %v948 = vunpack.c.h.b16 %v479
    %v949 = vunpack.c.l.b16 %v480
    %v950 = vunpack.c.h.b16 %v480
    %v951 = vunpack.c.l.b16 %v481
    %v952 = vunpack.c.l.b16 %v482
    %v953 = vunpack.c.h.b16 %v482
    %v954 = vunpack.c.l.b16 %v483
    %v955 = vunpack.c.h.b16 %v483
    %v956 = vunpack.c.l.b16 %v484
    %v957 = vunpack.c.h.b16 %v484
    %v958 = vunpack.c.l.b16 %v485
    %v959 = vunpack.c.h.b16 %v485
    %v960 = vunpack.c.l.b16 %v486
    %v961 = vunpack.c.h.b16 %v486
    %v962 = vunpack.c.l.b16 %v487
    %v963 = vunpack.c.l.b16 %v488
    %v964 = vunpack.c.h.b16 %v488
    %v965 = vunpack.c.l.b16 %v489
    %v966 = vunpack.c.h.b16 %v489
    %v967 = vunpack.c.l.b16 %v490
    %v968 = vunpack.c.h.b16 %v490
    %v969 = vunpack.c.l.b16 %v491
    %v970 = vunpack.c.h.b16 %v491
    %v971 = vunpack.c.l.b16 %v492
    %v972 = vunpack.c.h.b16 %v492
    %v973 = vunpack.c.l.b16 %v493
    %v974 = vunpack.c.l.b16 %v494
    %v975 = vunpack.c.h.b16 %v494
    %v976 = vunpack.c.l.b16 %v495
    %v977 = vunpack.c.h.b16 %v495
    %v978 = vunpack.c.l.b16 %v496
    %v979 = vunpack.c.h.b16 %v496
    %v980 = vunpack.c.l.b16 %v497
    %v981 = vunpack.c.h.b16 %v497
    %v982 = vunpack.c.l.b16 %v498
    %v983 = vunpack.c.h.b16 %v498
    %v984 = vunpack.c.l.b16 %v499
    %v985 = vunpack.c.l.b16 %v500
    %v986 = vunpack.c.h.b16 %v500
    %v987 = vunpack.c.l.b16 %v501
    %v988 = vunpack.c.h.b16 %v501
    %v989 = vunpack.c.l.b16 %v502
    %v990 = vunpack.c.h.b16 %v502
    %v991 = vunpack.c.l.b16 %v503
    %v992 = vunpack.c.h.b16 %v503
    %v993 = vunpack.c.l.b16 %v504
    %v994 = vunpack.c.h.b16 %v504
    %v995 = vunpack.c.l.b16 %v505
    %v996 = vunpack.c.l.b16 %v506
    %v997 = vunpack.c.h.b16 %v506
    %v998 = vunpack.c.l.b16 %v507
    %v999 = vunpack.c.h.b16 %v507
    %v1000 = vunpack.c.l.b16 %v508
    %v1001 = vunpack.c.h.b16 %v508
    %v1002 = vunpack.c.l.b16 %v509
    %v1003 = vunpack.c.h.b16 %v509
    %v1004 = vunpack.c.l.b16 %v510
    %v1005 = vunpack.c.h.b16 %v510
    %v1006 = vunpack.c.l.b16 %v511
    %v1007 = vunpack.c.l.b16 %v512
    %v1008 = vunpack.c.h.b16 %v512
    %v1009 = vunpack.c.l.b16 %v513
    %v1010 = vunpack.c.h.b16 %v513
    %v1011 = vunpack.c.l.b16 %v514
    %v1012 = vunpack.c.h.b16 %v514
    %v1013 = vunpack.c.l.b16 %v515
    %v1014 = vunpack.c.h.b16 %v515
    %v1015 = vunpack.c.l.b16 %v516
    %v1016 = vunpack.c.h.b16 %v516
    %v1017 = vunpack.c.l.b16 %v517
    %v1018 = vunpack.c.l.b16 %v518
    %v1019 = vunpack.c.h.b16 %v518
    %v1020 = vunpack.c.l.b16 %v519
    %v1021 = vunpack.c.h.b16 %v519
    %v1022 = vunpack.c.l.b16 %v520
    %v1023 = vunpack.c.h.b16 %v520
    %v1024 = vunpack.c.l.b16 %v521
    %v1025 = vunpack.c.h.b16 %v521
    %v1026 = vunpack.c.l.b16 %v522
    %v1027 = vunpack.c.h.b16 %v522
    %v1028 = vunpack.c.l.b16 %v523
    %v1029 = vunpack.c.l.b16 %v524
    %v1030 = vunpack.c.h.b16 %v524
    %v1031 = vunpack.c.l.b16 %v525
    %v1032 = vunpack.c.h.b16 %v525
    %v1033 = vunpack.c.l.b16 %v526
    %v1034 = vunpack.c.h.b16 %v526
    %v1035 = vunpack.c.l.b16 %v527
    %v1036 = vunpack.c.h.b16 %v527
    %v1037 = vunpack.c.l.b16 %v528
    %v1038 = vunpack.c.h.b16 %v528
    %v1039 = vunpack.c.l.b16 %v529
    %v1040 = vunpack.c.l.b16 %v530
    %v1041 = vunpack.c.h.b16 %v530
    %v1042 = vunpack.c.l.b16 %v531
    %v1043 = vunpack.c.h.b16 %v531
    %v1044 = vunpack.c.l.b16 %v532
    %v1045 = vunpack.c.h.b16 %v532
    %v1046 = vunpack.c.l.b16 %v533
    %v1047 = vunpack.c.h.b16 %v533
    %v1048 = vunpack.c.l.b16 %v534
    %v1049 = vunpack.c.h.b16 %v534
    %v1050 = vunpack.c.l.b16 %v535
    %v1051 = vunpack.c.l.b16 %v536
    %v1052 = vunpack.c.h.b16 %v536
    %v1053 = vunpack.c.l.b16 %v537
    %v1054 = vunpack.c.h.b16 %v537
    %v1055 = vunpack.c.l.b16 %v538
    %v1056 = vunpack.c.h.b16 %v538
    %v1057 = vunpack.c.l.b16 %v539
    %v1058 = vunpack.c.h.b16 %v539
    %v1059 = vunpack.c.l.b16 %v540
    %v1060 = vunpack.c.h.b16 %v540
    %v1061 = vunpack.c.l.b16 %v541
    %v1062 = vunpack.c.l.b16 %v542
    %v1063 = vunpack.c.h.b16 %v542
    %v1064 = vunpack.c.l.b16 %v543
    %v1065 = vunpack.c.h.b16 %v543
    %v1066 = vunpack.c.l.b16 %v544
    %v1067 = vunpack.c.h.b16 %v544
    %v1068 = vunpack.c.l.b16 %v545
    %v1069 = vunpack.c.h.b16 %v545
    %v1070 = vunpack.c.l.b16 %v546
    %v1071 = vunpack.c.h.b16 %v546
    %v1072 = vunpack.c.l.b16 %v547
    %v1073 = vunpack.c.l.b16 %v548
    %v1074 = vunpack.c.h.b16 %v548
    %v1075 = vunpack.c.l.b16 %v549
    %v1076 = vunpack.c.h.b16 %v549
    %v1077 = vunpack.c.l.b16 %v550
    %v1078 = vunpack.c.h.b16 %v550
    %v1079 = vunpack.c.l.b16 %v551
    %v1080 = vunpack.c.h.b16 %v551
    %v1081 = vunpack.c.l.b16 %v552
    %v1082 = vunpack.c.h.b16 %v552
    %v1083 = vunpack.c.l.b16 %v553
    %v1084 = vunpack.c.l.b16 %v554
    %v1085 = vunpack.c.h.b16 %v554
    %v1086 = vunpack.c.l.b16 %v555
    %v1087 = vunpack.c.h.b16 %v555
    %v1088 = vunpack.c.l.b16 %v556
    %v1089 = vunpack.c.h.b16 %v556
    %v1090 = vunpack.c.l.b16 %v557
    %v1091 = vunpack.c.h.b16 %v557
    %v1092 = vunpack.c.l.b16 %v558
    %v1093 = vunpack.c.h.b16 %v558
    %v1094 = vunpack.c.l.b16 %v559
    %v1095 = vunpack.c.l.b16 %v560
    %v1096 = vunpack.c.h.b16 %v560
    %v1097 = vunpack.c.l.b16 %v561
    %v1098 = vunpack.c.h.b16 %v561
    %v1099 = vunpack.c.l.b16 %v562
    %v1100 = vunpack.c.h.b16 %v562
    %v1101 = vunpack.c.l.b16 %v563
    %v1102 = vunpack.c.h.b16 %v563
    %v1103 = vunpack.c.l.b16 %v564
    %v1104 = vunpack.c.h.b16 %v564
    %v1105 = vunpack.c.l.b16 %v565
    %v1106 = vunpack.c.l.b16 %v566
    %v1107 = vunpack.c.h.b16 %v566
    %v1108 = vunpack.c.l.b16 %v567
    %v1109 = vunpack.c.h.b16 %v567
    %v1110 = vunpack.c.l.b16 %v568
    %v1111 = vunpack.c.h.b16 %v568
    %v1112 = vunpack.c.l.b16 %v569
    %v1113 = vunpack.c.h.b16 %v569
    %v1114 = vunpack.c.l.b16 %v570
    %v1115 = vunpack.c.h.b16 %v570
    %v1116 = vunpack.c.l.b16 %v571
    %v1117 = vunpack.c.l.b16 %v572
    %v1118 = vunpack.c.h.b16 %v572
    %v1119 = vunpack.c.l.b16 %v573
    %v1120 = vunpack.c.h.b16 %v573
    %v1121 = vunpack.c.l.b16 %v574
    %v1122 = vunpack.c.h.b16 %v574
    %v1123 = vunpack.c.l.b16 %v575
    %v1124 = vunpack.c.h.b16 %v575
    %v1125 = vunpack.c.l.b16 %v576
    %v1126 = vunpack.c.h.b16 %v576
    %v1127 = vunpack.c.l.b16 %v577
    %v1128 = vunpack.c.l.b16 %v578
    %v1129 = vunpack.c.h.b16 %v578
    %v1130 = vunpack.c.l.b16 %v579
    %v1131 = vunpack.c.h.b16 %v579
    %v1132 = vunpack.c.l.b16 %v580
    %v1133 = vunpack.c.h.b16 %v580
    %v1134 = vunpack.c.l.b16 %v581
    %v1135 = vunpack.c.h.b16 %v581
    %v1136 = vunpack.c.l.b16 %v582
    %v1137 = vunpack.c.h.b16 %v582
    %v1138 = vunpack.c.l.b16 %v583
    %v1139 = vunpack.c.l.b16 %v584
    %v1140 = vunpack.c.h.b16 %v584
    %v1141 = vunpack.c.l.b16 %v585
    %v1142 = vunpack.c.h.b16 %v585
    %v1143 = vunpack.c.l.b16 %v586
    %v1144 = vunpack.c.h.b16 %v586
    %v1145 = vunpack.c.l.b16 %v587
    %v1146 = vunpack.c.h.b16 %v587
    %v1147 = vunpack.c.l.b16 %v588
    %v1148 = vunpack.c.h.b16 %v588
    %v1149 = vunpack.c.l.b16 %v589
    %v1150 = vunpack.c.l.b16 %v590
    %v1151 = vunpack.c.h.b16 %v590
    %v1152 = vunpack.c.l.b16 %v591
    %v1153 = vunpack.c.h.b16 %v591
    %v1154 = vunpack.c.l.b16 %v592
    %v1155 = vunpack.c.h.b16 %v592
    %v1156 = vunpack.c.l.b16 %v593
    %v1157 = vunpack.c.h.b16 %v593
    %v1158 = vunpack.c.l.b16 %v594
    %v1159 = vunpack.c.h.b16 %v594
    %v1160 = vunpack.c.l.b16 %v595
    %v1161 = vunpack.c.l.b16 %v596
    %v1162 = vunpack.c.h.b16 %v596
    %v1163 = vunpack.c.l.b16 %v597
    %v1164 = vunpack.c.h.b16 %v597
    %v1165 = vunpack.c.l.b16 %v598
    %v1166 = vunpack.c.h.b16 %v598
    %v1167 = vunpack.c.l.b16 %v599
    %v1168 = vunpack.c.h.b16 %v599
    %v1169 = vunpack.c.l.b16 %v600
    %v1170 = vunpack.c.h.b16 %v600
    %v1171 = vunpack.c.l.b16 %v601
    %v1172 = vpack.c.b16 %v831, %v820
    %v1173 = vpack.c.b16 %v832, %v821
    %v1174 = vpack.c.b16 %v833, %v822
    %v1175 = vpack.c.b16 %v834, %v823
    %v1176 = vpack.c.b16 %v835, %v824
    %v1177 = vpack.c.b16 %v836, %v825
    %v1178 = vpack.c.b16 %v837, %v826
    %v1179 = vpack.c.b16 %v838, %v827
    %v1180 = vpack.c.b16 %v839, %v828
    %v1181 = vpack.c.b16 %v840, %v829
    %v1182 = vpack.c.b16 %v841, %v830
    %v1183 = vpack.c.b16 %v853, %v842
    %v1184 = vpack.c.b16 %v854, %v843
    %v1185 = vpack.c.b16 %v855, %v844
    %v1186 = vpack.c.b16 %v856, %v845
    %v1187 = vpack.c.b16 %v857, %v846
    %v1188 = vpack.c.b16 %v858, %v847
    %v1189 = vpack.c.b16 %v859, %v848
    %v1190 = vpack.c.b16 %v860, %v849
    %v1191 = vpack.c.b16 %v861, %v850
    %v1192 = vpack.c.b16 %v862, %v851
    %v1193 = vpack.c.b16 %v863, %v852
    %v1194 = vpack.c.b16 %v875, %v864
    %v1195 = vpack.c.b16 %v876, %v865
    %v1196 = vpack.c.b16 %v877, %v866
    %v1197 = vpack.c.b16 %v878, %v867
    %v1198 = vpack.c.b16 %v879, %v868
    %v1199 = vpack.c.b16 %v880, %v869
    %v1200 = vpack.c.b16 %v881, %v870
    %v1201 = vpack.c.b16 %v882, %v871
    %v1202 = vpack.c.b16 %v883, %v872
    %v1203 = vpack.c.b16 %v884, %v873
    %v1204 = vpack.c.b16 %v885, %v874
    %v1205 = vpack.c.b16 %v897, %v886
    %v1206 = vpack.c.b16 %v898, %v887
    %v1207 = vpack.c.b16 %v899, %v888
    %v1208 = vpack.c.b16 %v900, %v889
    %v1209 = vpack.c.b16 %v901, %v890
    %v1210 = vpack.c.b16 %v902, %v891
    %v1211 = vpack.c.b16 %v903, %v892
    %v1212 = vpack.c.b16 %v904, %v893
    %v1213 = vpack.c.b16 %v905, %v894
    %v1214 = vpack.c.b16 %v906, %v895
    %v1215 = vpack.c.b16 %v907, %v896
    %v1216 = vpack.c.b16 %v919, %v908
    %v1217 = vpack.c.b16 %v920, %v909
    %v1218 = vpack.c.b16 %v921, %v910
    %v1219 = vpack.c.b16 %v922, %v911
    %v1220 = vpack.c.b16 %v923, %v912
    %v1221 = vpack.c.b16 %v924, %v913
    %v1222 = vpack.c.b16 %v925, %v914
    %v1223 = vpack.c.b16 %v926, %v915
    %v1224 = vpack.c.b16 %v927, %v916
    %v1225 = vpack.c.b16 %v928, %v917
    %v1226 = vpack.c.b16 %v929, %v918
    %v1227 = vpack.c.b16 %v941, %v930
    %v1228 = vpack.c.b16 %v942, %v931
    %v1229 = vpack.c.b16 %v943, %v932
    %v1230 = vpack.c.b16 %v944, %v933
    %v1231 = vpack.c.b16 %v945, %v934
    %v1232 = vpack.c.b16 %v946, %v935
    %v1233 = vpack.c.b16 %v947, %v936
    %v1234 = vpack.c.b16 %v948, %v937
    %v1235 = vpack.c.b16 %v949, %v938
    %v1236 = vpack.c.b16 %v950, %v939
    %v1237 = vpack.c.b16 %v951, %v940
    %v1238 = vpack.c.b16 %v963, %v952
    %v1239 = vpack.c.b16 %v964, %v953
    %v1240 = vpack.c.b16 %v965, %v954
    %v1241 = vpack.c.b16 %v966, %v955
    %v1242 = vpack.c.b16 %v967, %v956
    %v1243 = vpack.c.b16 %v968, %v957
    %v1244 = vpack.c.b16 %v969, %v958
    %v1245 = vpack.c.b16 %v970, %v959
    %v1246 = vpack.c.b16 %v971, %v960
    %v1247 = vpack.c.b16 %v972, %v961
    %v1248 = vpack.c.b16 %v973, %v962
    %v1249 = vpack.c.b16 %v985, %v974
    %v1250 = vpack.c.b16 %v986, %v975
    %v1251 = vpack.c.b16 %v987, %v976
    %v1252 = vpack.c.b16 %v988, %v977
    %v1253 = vpack.c.b16 %v989, %v978
    %v1254 = vpack.c.b16 %v990, %v979
    %v1255 = vpack.c.b16 %v991, %v980
    %v1256 = vpack.c.b16 %v992, %v981
    %v1257 = vpack.c.b16 %v993, %v982
    %v1258 = vpack.c.b16 %v994, %v983
    %v1259 = vpack.c.b16 %v995, %v984
    %v1260 = vpack.c.b16 %v1007, %v996
    %v1261 = vpack.c.b16 %v1008, %v997
    %v1262 = vpack.c.b16 %v1009, %v998
    %v1263 = vpack.c.b16 %v1010, %v999
    %v1264 = vpack.c.b16 %v1011, %v1000
    %v1265 = vpack.c.b16 %v1012, %v1001
    %v1266 = vpack.c.b16 %v1013, %v1002
    %v1267 = vpack.c.b16 %v1014, %v1003
    %v1268 = vpack.c.b16 %v1015, %v1004
    %v1269 = vpack.c.b16 %v1016, %v1005
    %v1270 = vpack.c.b16 %v1017, %v1006
    %v1271 = vpack.c.b16 %v1029, %v1018
    %v1272 = vpack.c.b16 %v1030, %v1019
    %v1273 = vpack.c.b16 %v1031, %v1020
    %v1274 = vpack.c.b16 %v1032, %v1021
    %v1275 = vpack.c.b16 %v1033, %v1022
    %v1276 = vpack.c.b16 %v1034, %v1023
    %v1277 = vpack.c.b16 %v1035, %v1024
    %v1278 = vpack.c.b16 %v1036, %v1025
    %v1279 = vpack.c.b16 %v1037, %v1026
    %v1280 = vpack.c.b16 %v1038, %v1027
    %v1281 = vpack.c.b16 %v1039, %v1028
    %v1282 = vpack.c.b16 %v1051, %v1040
    %v1283 = vpack.c.b16 %v1052, %v1041
    %v1284 = vpack.c.b16 %v1053, %v1042
    %v1285 = vpack.c.b16 %v1054, %v1043
    %v1286 = vpack.c.b16 %v1055, %v1044
    %v1287 = vpack.c.b16 %v1056, %v1045
    %v1288 = vpack.c.b16 %v1057, %v1046
    %v1289 = vpack.c.b16 %v1058, %v1047
    %v1290 = vpack.c.b16 %v1059, %v1048
    %v1291 = vpack.c.b16 %v1060, %v1049
    %v1292 = vpack.c.b16 %v1061, %v1050
    %v1293 = vpack.c.b16 %v1073, %v1062
    %v1294 = vpack.c.b16 %v1074, %v1063
    %v1295 = vpack.c.b16 %v1075, %v1064
    %v1296 = vpack.c.b16 %v1076, %v1065
    %v1297 = vpack.c.b16 %v1077, %v1066
    %v1298 = vpack.c.b16 %v1078, %v1067
    %v1299 = vpack.c.b16 %v1079, %v1068
    %v1300 = vpack.c.b16 %v1080, %v1069
    %v1301 = vpack.c.b16 %v1081, %v1070
    %v1302 = vpack.c.b16 %v1082, %v1071
    %v1303 = vpack.c.b16 %v1083, %v1072
    %v1304 = vpack.c.b16 %v1095, %v1084
    %v1305 = vpack.c.b16 %v1096, %v1085
    %v1306 = vpack.c.b16 %v1097, %v1086
    %v1307 = vpack.c.b16 %v1098, %v1087
    %v1308 = vpack.c.b16 %v1099, %v1088
    %v1309 = vpack.c.b16 %v1100, %v1089
    %v1310 = vpack.c.b16 %v1101, %v1090
    %v1311 = vpack.c.b16 %v1102, %v1091
    %v1312 = vpack.c.b16 %v1103, %v1092
    %v1313 = vpack.c.b16 %v1104, %v1093
    %v1314 = vpack.c.b16 %v1105, %v1094
    %v1315 = vpack.c.b16 %v1117, %v1106
    %v1316 = vpack.c.b16 %v1118, %v1107
    %v1317 = vpack.c.b16 %v1119, %v1108
    %v1318 = vpack.c.b16 %v1120, %v1109
    %v1319 = vpack.c.b16 %v1121, %v1110
    %v1320 = vpack.c.b16 %v1122, %v1111
    %v1321 = vpack.c.b16 %v1123, %v1112
    %v1322 = vpack.c.b16 %v1124, %v1113
    %v1323 = vpack.c.b16 %v1125, %v1114
    %v1324 = vpack.c.b16 %v1126, %v1115
    %v1325 = vpack.c.b16 %v1127, %v1116
    %v1326 = vpack.c.b16 %v1139, %v1128
    %v1327 = vpack.c.b16 %v1140, %v1129
    %v1328 = vpack.c.b16 %v1141, %v1130
    %v1329 = vpack.c.b16 %v1142, %v1131
    %v1330 = vpack.c.b16 %v1143, %v1132
    %v1331 = vpack.c.b16 %v1144, %v1133
    %v1332 = vpack.c.b16 %v1145, %v1134
    %v1333 = vpack.c.b16 %v1146, %v1135
    %v1334 = vpack.c.b16 %v1147, %v1136
    %v1335 = vpack.c.b16 %v1148, %v1137
    %v1336 = vpack.c.b16 %v1149, %v1138
    %v1337 = vpack.c.b16 %v1161, %v1150
    %v1338 = vpack.c.b16 %v1162, %v1151
    %v1339 = vpack.c.b16 %v1163, %v1152
    %v1340 = vpack.c.b16 %v1164, %v1153
    %v1341 = vpack.c.b16 %v1165, %v1154
    %v1342 = vpack.c.b16 %v1166, %v1155
    %v1343 = vpack.c.b16 %v1167, %v1156
    %v1344 = vpack.c.b16 %v1168, %v1157
    %v1345 = vpack.c.b16 %v1169, %v1158
    %v1346 = vpack.c.b16 %v1170, %v1159
    %v1347 = vpack.c.b16 %v1171, %v1160
    %1524 = vmatpush.bf16.msra.mxu0 %v1249
    %1525 = vmatpush.bf16.msra.mxu0 %v1238
    %1526 = vmatpush.bf16.msra.mxu0 %v1227
    %1527 = vmatpush.bf16.msra.mxu0 %v1216
    %1528 = vmatpush.bf16.msra.mxu0 %v1205
    %1529 = vmatpush.bf16.msra.mxu0 %v1194
    %1530 = vmatpush.bf16.msra.mxu0 %v1183
    %1531 = vmatpush.bf16.msra.mxu0 %v1172
    %1532 = vmatmul.bf16.gmra.mxu0 %v408
    %v1533 = vpop.f32.mrf.mxu0
    %v1534 = vadd.f32 %v606, %v1533
    %v1535 = vpop.f32.mrf.mxu0
    %1536 = vdwg.mxu0
    %1537 = vmatpush.bf16.msra.mxu0 %v1337
    %1538 = vmatpush.bf16.msra.mxu0 %v1326
    %1539 = vmatpush.bf16.msra.mxu0 %v1315
    %1540 = vmatpush.bf16.msra.mxu0 %v1304
    %1541 = vmatpush.bf16.msra.mxu0 %v1293
    %1542 = vmatpush.bf16.msra.mxu0 %v1282
    %1543 = vmatpush.bf16.msra.mxu0 %v1271
    %1544 = vmatpush.bf16.msra.mxu0 %v1260
    %1545 = vmatmul.bf16.gmra.mxu0 %v409
    %v1546 = vpop.f32.mrf.mxu0
    %v1547 = vadd.f32 %v1534, %v1546
    %v1548 = vpop.f32.mrf.mxu0
    %1549 = vdwg.mxu0
    %1550 = vmatpush.bf16.msra.mxu0 %v1250
    %1551 = vmatpush.bf16.msra.mxu0 %v1239
    %1552 = vmatpush.bf16.msra.mxu0 %v1228
    %1553 = vmatpush.bf16.msra.mxu0 %v1217
    %1554 = vmatpush.bf16.msra.mxu0 %v1206
    %1555 = vmatpush.bf16.msra.mxu0 %v1195
    %1556 = vmatpush.bf16.msra.mxu0 %v1184
    %1557 = vmatpush.bf16.msra.mxu0 %v1173
    %1558 = vmatmul.bf16.gmra.mxu0 %v408
    %v1559 = vpop.f32.mrf.mxu0
    %v1560 = vadd.f32 %v607, %v1559
    %v1561 = vpop.f32.mrf.mxu0
    %1562 = vdwg.mxu0
    %1563 = vmatpush.bf16.msra.mxu0 %v1338
    %1564 = vmatpush.bf16.msra.mxu0 %v1327
    %1565 = vmatpush.bf16.msra.mxu0 %v1316
    %1566 = vmatpush.bf16.msra.mxu0 %v1305
    %1567 = vmatpush.bf16.msra.mxu0 %v1294
    %1568 = vmatpush.bf16.msra.mxu0 %v1283
    %1569 = vmatpush.bf16.msra.mxu0 %v1272
    %1570 = vmatpush.bf16.msra.mxu0 %v1261
    %1571 = vmatmul.bf16.gmra.mxu0 %v409
    %v1572 = vpop.f32.mrf.mxu0
    %v1573 = vadd.f32 %v1560, %v1572
    %v1574 = vpop.f32.mrf.mxu0
    %1575 = vdwg.mxu0
    %1576 = vmatpush.bf16.msra.mxu0 %v1251
    %1577 = vmatpush.bf16.msra.mxu0 %v1240
    %1578 = vmatpush.bf16.msra.mxu0 %v1229
    %1579 = vmatpush.bf16.msra.mxu0 %v1218
    %1580 = vmatpush.bf16.msra.mxu0 %v1207
    %1581 = vmatpush.bf16.msra.mxu0 %v1196
    %1582 = vmatpush.bf16.msra.mxu0 %v1185
    %1583 = vmatpush.bf16.msra.mxu0 %v1174
    %1584 = vmatmul.bf16.gmra.mxu0 %v408
    %v1585 = vpop.f32.mrf.mxu0
    %v1586 = vadd.f32 %v608, %v1585
    %v1587 = vpop.f32.mrf.mxu0
    %1588 = vdwg.mxu0
    %1589 = vmatpush.bf16.msra.mxu0 %v1339
    %1590 = vmatpush.bf16.msra.mxu0 %v1328
    %1591 = vmatpush.bf16.msra.mxu0 %v1317
    %1592 = vmatpush.bf16.msra.mxu0 %v1306
    %1593 = vmatpush.bf16.msra.mxu0 %v1295
    %1594 = vmatpush.bf16.msra.mxu0 %v1284
    %1595 = vmatpush.bf16.msra.mxu0 %v1273
    %1596 = vmatpush.bf16.msra.mxu0 %v1262
    %1597 = vmatmul.bf16.gmra.mxu0 %v409
    %v1598 = vpop.f32.mrf.mxu0
    %v1599 = vadd.f32 %v1586, %v1598
    %v1600 = vpop.f32.mrf.mxu0
    %1601 = vdwg.mxu0
    %1602 = vmatpush.bf16.msra.mxu0 %v1252
    %1603 = vmatpush.bf16.msra.mxu0 %v1241
    %1604 = vmatpush.bf16.msra.mxu0 %v1230
    %1605 = vmatpush.bf16.msra.mxu0 %v1219
    %1606 = vmatpush.bf16.msra.mxu0 %v1208
    %1607 = vmatpush.bf16.msra.mxu0 %v1197
    %1608 = vmatpush.bf16.msra.mxu0 %v1186
    %1609 = vmatpush.bf16.msra.mxu0 %v1175
    %1610 = vmatmul.bf16.gmra.mxu0 %v408
    %v1611 = vpop.f32.mrf.mxu0
    %v1612 = vadd.f32 %v609, %v1611
    %v1613 = vpop.f32.mrf.mxu0
    %1614 = vdwg.mxu0
    %1615 = vmatpush.bf16.msra.mxu0 %v1340
    %1616 = vmatpush.bf16.msra.mxu0 %v1329
    %1617 = vmatpush.bf16.msra.mxu0 %v1318
    %1618 = vmatpush.bf16.msra.mxu0 %v1307
    %1619 = vmatpush.bf16.msra.mxu0 %v1296
    %1620 = vmatpush.bf16.msra.mxu0 %v1285
    %1621 = vmatpush.bf16.msra.mxu0 %v1274
    %1622 = vmatpush.bf16.msra.mxu0 %v1263
    %1623 = vmatmul.bf16.gmra.mxu0 %v409
    %v1624 = vpop.f32.mrf.mxu0
    %v1625 = vadd.f32 %v1612, %v1624
    %v1626 = vpop.f32.mrf.mxu0
    %1627 = vdwg.mxu0
    %1628 = vmatpush.bf16.msra.mxu0 %v1253
    %1629 = vmatpush.bf16.msra.mxu0 %v1242
    %1630 = vmatpush.bf16.msra.mxu0 %v1231
    %1631 = vmatpush.bf16.msra.mxu0 %v1220
    %1632 = vmatpush.bf16.msra.mxu0 %v1209
    %1633 = vmatpush.bf16.msra.mxu0 %v1198
    %1634 = vmatpush.bf16.msra.mxu0 %v1187
    %1635 = vmatpush.bf16.msra.mxu0 %v1176
    %1636 = vmatmul.bf16.gmra.mxu0 %v408
    %v1637 = vpop.f32.mrf.mxu0
    %v1638 = vadd.f32 %v610, %v1637
    %v1639 = vpop.f32.mrf.mxu0
    %1640 = vdwg.mxu0
    %1641 = vmatpush.bf16.msra.mxu0 %v1341
    %1642 = vmatpush.bf16.msra.mxu0 %v1330
    %1643 = vmatpush.bf16.msra.mxu0 %v1319
    %1644 = vmatpush.bf16.msra.mxu0 %v1308
    %1645 = vmatpush.bf16.msra.mxu0 %v1297
    %1646 = vmatpush.bf16.msra.mxu0 %v1286
    %1647 = vmatpush.bf16.msra.mxu0 %v1275
    %1648 = vmatpush.bf16.msra.mxu0 %v1264
    %1649 = vmatmul.bf16.gmra.mxu0 %v409
    %v1650 = vpop.f32.mrf.mxu0
    %v1651 = vadd.f32 %v1638, %v1650
    %v1652 = vpop.f32.mrf.mxu0
    %1653 = vdwg.mxu0
    %1654 = vmatpush.bf16.msra.mxu0 %v1254
    %1655 = vmatpush.bf16.msra.mxu0 %v1243
    %1656 = vmatpush.bf16.msra.mxu0 %v1232
    %1657 = vmatpush.bf16.msra.mxu0 %v1221
    %1658 = vmatpush.bf16.msra.mxu0 %v1210
    %1659 = vmatpush.bf16.msra.mxu0 %v1199
    %1660 = vmatpush.bf16.msra.mxu0 %v1188
    %1661 = vmatpush.bf16.msra.mxu0 %v1177
    %1662 = vmatmul.bf16.gmra.mxu0 %v408
    %v1663 = vpop.f32.mrf.mxu0
    %v1664 = vadd.f32 %v611, %v1663
    %v1665 = vpop.f32.mrf.mxu0
    %1666 = vdwg.mxu0
    %1667 = vmatpush.bf16.msra.mxu0 %v1342
    %1668 = vmatpush.bf16.msra.mxu0 %v1331
    %1669 = vmatpush.bf16.msra.mxu0 %v1320
    %1670 = vmatpush.bf16.msra.mxu0 %v1309
    %1671 = vmatpush.bf16.msra.mxu0 %v1298
    %1672 = vmatpush.bf16.msra.mxu0 %v1287
    %1673 = vmatpush.bf16.msra.mxu0 %v1276
    %1674 = vmatpush.bf16.msra.mxu0 %v1265
    %1675 = vmatmul.bf16.gmra.mxu0 %v409
    %v1676 = vpop.f32.mrf.mxu0
    %v1677 = vadd.f32 %v1664, %v1676
    %v1678 = vpop.f32.mrf.mxu0
    %1679 = vdwg.mxu0
    %1680 = vmatpush.bf16.msra.mxu0 %v1255
    %1681 = vmatpush.bf16.msra.mxu0 %v1244
    %1682 = vmatpush.bf16.msra.mxu0 %v1233
    %1683 = vmatpush.bf16.msra.mxu0 %v1222
    %1684 = vmatpush.bf16.msra.mxu0 %v1211
    %1685 = vmatpush.bf16.msra.mxu0 %v1200
    %1686 = vmatpush.bf16.msra.mxu0 %v1189
    %1687 = vmatpush.bf16.msra.mxu0 %v1178
    %1688 = vmatmul.bf16.gmra.mxu0 %v408
    %v1689 = vpop.f32.mrf.mxu0
    %v1690 = vadd.f32 %v612, %v1689
    %v1691 = vpop.f32.mrf.mxu0
    %1692 = vdwg.mxu0
    %1693 = vmatpush.bf16.msra.mxu0 %v1343
    %1694 = vmatpush.bf16.msra.mxu0 %v1332
    %1695 = vmatpush.bf16.msra.mxu0 %v1321
    %1696 = vmatpush.bf16.msra.mxu0 %v1310
    %1697 = vmatpush.bf16.msra.mxu0 %v1299
    %1698 = vmatpush.bf16.msra.mxu0 %v1288
    %1699 = vmatpush.bf16.msra.mxu0 %v1277
    %1700 = vmatpush.bf16.msra.mxu0 %v1266
    %1701 = vmatmul.bf16.gmra.mxu0 %v409
    %v1702 = vpop.f32.mrf.mxu0
    %v1703 = vadd.f32 %v1690, %v1702
    %v1704 = vpop.f32.mrf.mxu0
    %1705 = vdwg.mxu0
    %1706 = vmatpush.bf16.msra.mxu0 %v1256
    %1707 = vmatpush.bf16.msra.mxu0 %v1245
    %1708 = vmatpush.bf16.msra.mxu0 %v1234
    %1709 = vmatpush.bf16.msra.mxu0 %v1223
    %1710 = vmatpush.bf16.msra.mxu0 %v1212
    %1711 = vmatpush.bf16.msra.mxu0 %v1201
    %1712 = vmatpush.bf16.msra.mxu0 %v1190
    %1713 = vmatpush.bf16.msra.mxu0 %v1179
    %1714 = vmatmul.bf16.gmra.mxu0 %v408
    %v1715 = vpop.f32.mrf.mxu0
    %v1716 = vadd.f32 %v613, %v1715
    %v1717 = vpop.f32.mrf.mxu0
    %1718 = vdwg.mxu0
    %1719 = vmatpush.bf16.msra.mxu0 %v1344
    %1720 = vmatpush.bf16.msra.mxu0 %v1333
    %1721 = vmatpush.bf16.msra.mxu0 %v1322
    %1722 = vmatpush.bf16.msra.mxu0 %v1311
    %1723 = vmatpush.bf16.msra.mxu0 %v1300
    %1724 = vmatpush.bf16.msra.mxu0 %v1289
    %1725 = vmatpush.bf16.msra.mxu0 %v1278
    %1726 = vmatpush.bf16.msra.mxu0 %v1267
    %1727 = vmatmul.bf16.gmra.mxu0 %v409
    %v1728 = vpop.f32.mrf.mxu0
    %v1729 = vadd.f32 %v1716, %v1728
    %v1730 = vpop.f32.mrf.mxu0
    %1731 = vdwg.mxu0
    %1732 = vmatpush.bf16.msra.mxu0 %v1257
    %1733 = vmatpush.bf16.msra.mxu0 %v1246
    %1734 = vmatpush.bf16.msra.mxu0 %v1235
    %1735 = vmatpush.bf16.msra.mxu0 %v1224
    %1736 = vmatpush.bf16.msra.mxu0 %v1213
    %1737 = vmatpush.bf16.msra.mxu0 %v1202
    %1738 = vmatpush.bf16.msra.mxu0 %v1191
    %1739 = vmatpush.bf16.msra.mxu0 %v1180
    %1740 = vmatmul.bf16.gmra.mxu0 %v408
    %v1741 = vpop.f32.mrf.mxu0
    %v1742 = vadd.f32 %v614, %v1741
    %v1743 = vpop.f32.mrf.mxu0
    %1744 = vdwg.mxu0
    %1745 = vmatpush.bf16.msra.mxu0 %v1345
    %1746 = vmatpush.bf16.msra.mxu0 %v1334
    %1747 = vmatpush.bf16.msra.mxu0 %v1323
    %1748 = vmatpush.bf16.msra.mxu0 %v1312
    %1749 = vmatpush.bf16.msra.mxu0 %v1301
    %1750 = vmatpush.bf16.msra.mxu0 %v1290
    %1751 = vmatpush.bf16.msra.mxu0 %v1279
    %1752 = vmatpush.bf16.msra.mxu0 %v1268
    %1753 = vmatmul.bf16.gmra.mxu0 %v409
    %v1754 = vpop.f32.mrf.mxu0
    %v1755 = vadd.f32 %v1742, %v1754
    %v1756 = vpop.f32.mrf.mxu0
    %1757 = vdwg.mxu0
    %1758 = vmatpush.bf16.msra.mxu0 %v1258
    %1759 = vmatpush.bf16.msra.mxu0 %v1247
    %1760 = vmatpush.bf16.msra.mxu0 %v1236
    %1761 = vmatpush.bf16.msra.mxu0 %v1225
    %1762 = vmatpush.bf16.msra.mxu0 %v1214
    %1763 = vmatpush.bf16.msra.mxu0 %v1203
    %1764 = vmatpush.bf16.msra.mxu0 %v1192
    %1765 = vmatpush.bf16.msra.mxu0 %v1181
    %1766 = vmatmul.bf16.gmra.mxu0 %v408
    %v1767 = vpop.f32.mrf.mxu0
    %v1768 = vadd.f32 %v615, %v1767
    %v1769 = vpop.f32.mrf.mxu0
    %1770 = vdwg.mxu0
    %1771 = vmatpush.bf16.msra.mxu0 %v1346
    %1772 = vmatpush.bf16.msra.mxu0 %v1335
    %1773 = vmatpush.bf16.msra.mxu0 %v1324
    %1774 = vmatpush.bf16.msra.mxu0 %v1313
    %1775 = vmatpush.bf16.msra.mxu0 %v1302
    %1776 = vmatpush.bf16.msra.mxu0 %v1291
    %1777 = vmatpush.bf16.msra.mxu0 %v1280
    %1778 = vmatpush.bf16.msra.mxu0 %v1269
    %1779 = vmatmul.bf16.gmra.mxu0 %v409
    %v1780 = vpop.f32.mrf.mxu0
    %v1781 = vadd.f32 %v1768, %v1780
    %v1782 = vpop.f32.mrf.mxu0
    %1783 = vdwg.mxu0
    %1784 = vmatpush.bf16.msra.mxu0 %v1259
    %1785 = vmatpush.bf16.msra.mxu0 %v1248
    %1786 = vmatpush.bf16.msra.mxu0 %v1237
    %1787 = vmatpush.bf16.msra.mxu0 %v1226
    %1788 = vmatpush.bf16.msra.mxu0 %v1215
    %1789 = vmatpush.bf16.msra.mxu0 %v1204
    %1790 = vmatpush.bf16.msra.mxu0 %v1193
    %1791 = vmatpush.bf16.msra.mxu0 %v1182
    %1792 = vmatmul.bf16.gmra.mxu0 %v408
    %v1793 = vpop.f32.mrf.mxu0
    %v1794 = vadd.f32 %v616, %v1793
    %v1795 = vpop.f32.mrf.mxu0
    %1796 = vdwg.mxu0
    %1797 = vmatpush.bf16.msra.mxu0 %v1347
    %1798 = vmatpush.bf16.msra.mxu0 %v1336
    %1799 = vmatpush.bf16.msra.mxu0 %v1325
    %1800 = vmatpush.bf16.msra.mxu0 %v1314
    %1801 = vmatpush.bf16.msra.mxu0 %v1303
    %1802 = vmatpush.bf16.msra.mxu0 %v1292
    %1803 = vmatpush.bf16.msra.mxu0 %v1281
    %1804 = vmatpush.bf16.msra.mxu0 %v1270
    %1805 = vmatmul.bf16.gmra.mxu0 %v409
    %v1806 = vpop.f32.mrf.mxu0
    %v1807 = vadd.f32 %v1794, %v1806
    %v1808 = vpop.f32.mrf.mxu0
    %1809 = vdwg.mxu0
    %1810 = vst [vmem:[#allocation2] sm:$0xff] %v1547
    %1811 = vst [vmem:[#allocation2 + $0x8] sm:$0xff] %v1573
    %1812 = vst [vmem:[#allocation2 + $0x10] sm:$0xff] %v1599
    %1813 = vst [vmem:[#allocation2 + $0x18] sm:$0xff] %v1625
    %1814 = vst [vmem:[#allocation2 + $0x20] sm:$0xff] %v1651
    %1815 = vst [vmem:[#allocation2 + $0x28] sm:$0xff] %v1677
    %1816 = vst [vmem:[#allocation2 + $0x30] sm:$0xff] %v1703
    %1817 = vst [vmem:[#allocation2 + $0x38] sm:$0xff] %v1729
    %1818 = vst [vmem:[#allocation2 + $0x40] sm:$0xff] %v1755
    %1819 = vst [vmem:[#allocation2 + $0x48] sm:$0xff] %v1781
    %vm1820 = vcmask 416768
    %1821 = vst.msk [vmem:[#allocation2 + $0x50] sm:$0xff] %vm1820, %v1807
    // Predicated region
    $region30: #{tpu_custom_call.1} parent=1 // pred_check
      _
    $region31: #{tpu_custom_call.1} parent=1 // pred_check_branch
      %1823 = sbr.rel (0) target = $region33
    $region32: #{tpu_custom_call.1} parent=1 // pred_region
      %1825 = vsyncadd [#allocation3], 0
      %s1827 = sshll.u32 [#allocation2], 4
      %s1828 = int_to_ptr.vmem [resolvable:$true] %s1827
      %s1829 = sshll.u32 %s7, 4
      %s1830 = int_to_ptr.hbm [resolvable:$true] %s1829
      %1832 = dma.vmem_to_hbm [thread:$0]  %s1828, 1408, %s1830, [#allocation3]
    $region33: #{tpu_custom_call.1} parent=1 // pred_fallthru
      _
    // Predicated region
    $region34: #{tpu_custom_call.1} parent=1 // pred_check
      _
    $region35: #{tpu_custom_call.1} parent=1 // pred_check_branch
      %1834 = sbr.rel (0) target = $region37
    $region36: #{tpu_custom_call.1} parent=1 // pred_region
      %1836 = dma.done [#allocation3], 1408
    $region37: #{tpu_custom_call.1} parent=1 // pred_fallthru
      _
    %1837 = vsyncpa [#allocation3], 1

// kernel: tpu_custom_call.1
$region0: #{tpu_custom_call.1}
  #allocation0 [shape = 'u32[]', space=smem, size = 0x4, offset = 0x4, fixed_abs, tag = 'smem constant byte address 0x4 - core index']
  #allocation1 [shape = 'u32[72,128]{1,0:T(1,128)}', space=vmem, size = 0x9000, scoped, tag = 'internal scratch']
  %s0 = inlined_call_operand.vmem [shape: f32[8,24], index: 0, kind: input, shape index: {}]
  %s1 = inlined_call_operand.vmem [shape: bf16[24,32], index: 1, kind: input, shape index: {}]
  %s2 = inlined_call_operand.vmem [shape: bf16[32,64], index: 2, kind: input, shape index: {}]
  %s3 = inlined_call_operand.vmem [shape: bf16[64,128], index: 3, kind: input, shape index: {}]
  %s4 = inlined_call_operand.vmem [shape: bf16[128,256], index: 4, kind: input, shape index: {}]
  %s5 = inlined_call_operand.vmem [shape: bf16[256,1331], index: 5, kind: input, shape index: {}]
  %s6 = inlined_call_operand.vmem [shape: f32[1,2816], index: 6, kind: input, shape index: {}]
  %s7 = inlined_call_operand.hbm [shape: f32[8,1331], index: 7, kind: output, shape index: {}]
  %s8 = sld [smem:[#allocation0]]
  $region38: #{tpu_custom_call.1} parent=0
    _
  %s10 = ssub.s32 1, %s8
  %s11 = scalar_select 0, %s10, %s8
  $region1: #{tpu_custom_call.1} parent=0
    #allocation2 [shape = 'u8[45056]{0}', space=vmem, size = 0xb000, scoped, tag = 'output window, operand 0, single buffered']
    #allocation3 [shape = 's32[1]{0}', space=sflag, size = 0x4, scoped, tag = 'scoped memory for tpu_custom_call.1']
    %12 = vsyncpa [#allocation3], 0
    // Predicated region
    $region2: #{tpu_custom_call.1} parent=1 // pred_check
      _
    $region3: #{tpu_custom_call.1} parent=1 // pred_check_branch
      %14 = sbr.rel (0) target = $region5
    $region4: #{tpu_custom_call.1} parent=1 // pred_region
      _
    $region5: #{tpu_custom_call.1} parent=1 // pred_fallthru
      _
    // Predicated region
    $region6: #{tpu_custom_call.1} parent=1 // pred_check
      _
    $region7: #{tpu_custom_call.1} parent=1 // pred_check_branch
      %16 = sbr.rel (0) target = $region9
    $region8: #{tpu_custom_call.1} parent=1 // pred_region
      _
    $region9: #{tpu_custom_call.1} parent=1 // pred_fallthru
      _
    // Predicated region
    $region10: #{tpu_custom_call.1} parent=1 // pred_check
      _
    $region11: #{tpu_custom_call.1} parent=1 // pred_check_branch
      %18 = sbr.rel (0) target = $region13
    $region12: #{tpu_custom_call.1} parent=1 // pred_region
      _
    $region13: #{tpu_custom_call.1} parent=1 // pred_fallthru
      _
    // Predicated region
    $region14: #{tpu_custom_call.1} parent=1 // pred_check
      _
    $region15: #{tpu_custom_call.1} parent=1 // pred_check_branch
      %20 = sbr.rel (0) target = $region17
    $region16: #{tpu_custom_call.1} parent=1 // pred_region
      _
    $region17: #{tpu_custom_call.1} parent=1 // pred_fallthru
      _
    // Predicated region
    $region18: #{tpu_custom_call.1} parent=1 // pred_check
      _
    $region19: #{tpu_custom_call.1} parent=1 // pred_check_branch
      %22 = sbr.rel (0) target = $region21
    $region20: #{tpu_custom_call.1} parent=1 // pred_region
      _
    $region21: #{tpu_custom_call.1} parent=1 // pred_fallthru
      _
    // Predicated region
    $region22: #{tpu_custom_call.1} parent=1 // pred_check
      _
    $region23: #{tpu_custom_call.1} parent=1 // pred_check_branch
      %24 = sbr.rel (0) target = $region25
    $region24: #{tpu_custom_call.1} parent=1 // pred_region
      _
    $region25: #{tpu_custom_call.1} parent=1 // pred_fallthru
      _
    // Predicated region
    $region26: #{tpu_custom_call.1} parent=1 // pred_check
      _
    $region27: #{tpu_custom_call.1} parent=1 // pred_check_branch
      %26 = sbr.rel (0) target = $region29
    $region28: #{tpu_custom_call.1} parent=1 // pred_region
      _
    $region29: #{tpu_custom_call.1} parent=1 // pred_fallthru
      _
    %v28 = vld [vmem:[%s0] sm:$0xff]
    %v29 = vpack.c.bf16 %v28, %v28
    %v30 = vld [vmem:[%s1] sm:$0xf]
    %v31 = vld [vmem:[%s1 + $0x4] sm:$0xf]
    %v32 = vld [vmem:[%s1 + $0x8] sm:$0xf]
    %v33 = vld [vmem:[%s6] sm:$0x1]
    %v35 = vperm.slane %v33, 0
    %v40 = vunpack.c.l.b16 %v30
    %v41 = vunpack.c.l.b16 %v31
    %v42 = vunpack.c.l.b16 %v32
    %v43 = vpack.c.b16 %v41, %v40
    %v44 = vpack.c.b16 %v42, %v42
    %vm46 = vcmask 195584
    %v48 = vsel %vm46, %v29, 0
    %vm50 = vcmask 1043456
    %v52 = vsel %vm50, %v44, 0
    %54 = vmatpush.bf16.msra.mxu0 0
    %55 = vmatpush.bf16.msra.mxu0 0
    %56 = vmatpush.bf16.msra.mxu0 0
    %57 = vmatpush.bf16.msra.mxu0 0
    %58 = vmatpush.bf16.msra.mxu0 0
    %59 = vmatpush.bf16.msra.mxu0 0
    %60 = vmatpush.bf16.msra.mxu0 %v52
    %61 = vmatpush.bf16.msra.mxu0 %v43
    %62 = vmatmul.bf16.gmra.mxu0 %v48
    %v63 = vpop.f32.mrf.mxu0
    %v64 = vadd.f32 %v35, %v63
    %v65 = vpop.f32.mrf.mxu0
    %66 = vdwg.mxu0
    %v67 = vld [vmem:[%s6 + $0x1] sm:$0x1]
    %v68 = vld [vmem:[%s6 + $0x2] sm:$0x1]
    %vm69 = vcmask 261120
    %v70 = vsel %vm69, %v64, 0.0
    %71 = vadd.xlane.f32.xlu0 %v70
    %v72 = vpop.xlane.xlu0 %71
    %v73 = vrcp.pop 32.0
    %v74 = vmul.f32 32.0, %v73
    %v75 = vsub.f32 1.0, %v74
    %v76 = vmul.f32 %v73, %v75
    %v77 = vadd.f32 %v73, %v76
    %vm78 = vweird.f32 %v73
    %v79 = vsel %vm78, %v73, %v77
    %v80 = vmul.f32 %v72, %v79
    %v81 = vsub.f32 %v64, %v80
    %v82 = vmul.f32 %v81, %v81
    %v83 = vsel %vm69, %v82, 0.0
    %84 = vadd.xlane.f32.xlu0 %v83
    %v85 = vpop.xlane.xlu0 %84
    %v86 = vmul.f32 %v85, %v79
    %v87 = vadd.f32 %v86, 1e-05
    %v88 = vrsqrt.pop %v87
    %v89 = vmul.f32 %v88, %v87
    %v90 = vmul.f32 %v89, %v88
    %v91 = vmul.f32 0.5, %v90
    %v92 = vsub.f32 1.5, %v91
    %v93 = vmul.f32 %v88, %v92
    %vm94 = vweird.f32 %v87
    %vm95 = vweird.f32 %v88
    %vm96 = vmor %vm94, %vm95
    %v97 = vsel %vm96, %v88, %v93
    %v98 = vmul.f32 %v81, %v97
    %v100 = vperm.slane %v67, 0
    %v102 = vmul.f32 %v98, %v100
    %v104 = vperm.slane %v68, 0
    %v106 = vadd.f32 %v102, %v104
    %v107 = vmax.f32 %v106, 0.0
    %v108 = vpack.c.bf16 %v107, %v107
    %v109 = vld [vmem:[%s2] sm:$0xf]
    %v110 = vld [vmem:[%s2 + $0x4] sm:$0xf]
    %v111 = vld [vmem:[%s2 + $0x8] sm:$0xf]
    %v112 = vld [vmem:[%s2 + $0xc] sm:$0xf]
    %v113 = vld [vmem:[%s6 + $0x3] sm:$0x1]
    %v115 = vperm.slane %v113, 0
    %v121 = vunpack.c.l.b16 %v109
    %v122 = vunpack.c.l.b16 %v110
    %v123 = vunpack.c.l.b16 %v111
    %v124 = vunpack.c.l.b16 %v112
    %v125 = vpack.c.b16 %v122, %v121
    %v126 = vpack.c.b16 %v124, %v123
    %v130 = vsel %vm69, %v108, 0
    %132 = vmatpush.bf16.msra.mxu0 0
    %133 = vmatpush.bf16.msra.mxu0 0
    %134 = vmatpush.bf16.msra.mxu0 0
    %135 = vmatpush.bf16.msra.mxu0 0
    %136 = vmatpush.bf16.msra.mxu0 0
    %137 = vmatpush.bf16.msra.mxu0 0
    %138 = vmatpush.bf16.msra.mxu0 %v126
    %139 = vmatpush.bf16.msra.mxu0 %v125
    %140 = vmatmul.bf16.gmra.mxu0 %v130
    %v141 = vpop.f32.mrf.mxu0
    %v142 = vadd.f32 %v115, %v141
    %v143 = vpop.f32.mrf.mxu0
    %144 = vdwg.mxu0
    %v145 = vld [vmem:[%s6 + $0x4] sm:$0x1]
    %v146 = vld [vmem:[%s6 + $0x5] sm:$0x1]
    %vm147 = vcmask 523264
    %v148 = vsel %vm147, %v142, 0.0
    %149 = vadd.xlane.f32.xlu0 %v148
    %v150 = vpop.xlane.xlu0 %149
    %v151 = vrcp.pop 64.0
    %v152 = vmul.f32 64.0, %v151
    %v153 = vsub.f32 1.0, %v152
    %v154 = vmul.f32 %v151, %v153
    %v155 = vadd.f32 %v151, %v154
    %vm156 = vweird.f32 %v151
    %v157 = vsel %vm156, %v151, %v155
    %v158 = vmul.f32 %v150, %v157
    %v159 = vsub.f32 %v142, %v158
    %v160 = vmul.f32 %v159, %v159
    %v161 = vsel %vm147, %v160, 0.0
    %162 = vadd.xlane.f32.xlu0 %v161
    %v163 = vpop.xlane.xlu0 %162
    %v164 = vmul.f32 %v163, %v157
    %v165 = vadd.f32 %v164, 1e-05
    %v166 = vrsqrt.pop %v165
    %v167 = vmul.f32 %v166, %v165
    %v168 = vmul.f32 %v167, %v166
    %v169 = vmul.f32 0.5, %v168
    %v170 = vsub.f32 1.5, %v169
    %v171 = vmul.f32 %v166, %v170
    %vm172 = vweird.f32 %v165
    %vm173 = vweird.f32 %v166
    %vm174 = vmor %vm172, %vm173
    %v175 = vsel %vm174, %v166, %v171
    %v176 = vmul.f32 %v159, %v175
    %v178 = vperm.slane %v145, 0
    %v180 = vmul.f32 %v176, %v178
    %v182 = vperm.slane %v146, 0
    %v184 = vadd.f32 %v180, %v182
    %v185 = vmax.f32 %v184, 0.0
    %v186 = vpack.c.bf16 %v185, %v185
    %v187 = vld [vmem:[%s3] sm:$0xf]
    %v188 = vld [vmem:[%s3 + $0x4] sm:$0xf]
    %v189 = vld [vmem:[%s3 + $0x8] sm:$0xf]
    %v190 = vld [vmem:[%s3 + $0xc] sm:$0xf]
    %v191 = vld [vmem:[%s3 + $0x10] sm:$0xf]
    %v192 = vld [vmem:[%s3 + $0x14] sm:$0xf]
    %v193 = vld [vmem:[%s3 + $0x18] sm:$0xf]
    %v194 = vld [vmem:[%s3 + $0x1c] sm:$0xf]
    %v195 = vld [vmem:[%s6 + $0x6] sm:$0x1]
    %v197 = vperm.slane %v195, 0
    %v207 = vunpack.c.l.b16 %v187
    %v208 = vunpack.c.l.b16 %v188
    %v209 = vunpack.c.l.b16 %v189
    %v210 = vunpack.c.l.b16 %v190
    %v211 = vunpack.c.l.b16 %v191
    %v212 = vunpack.c.l.b16 %v192
    %v213 = vunpack.c.l.b16 %v193
    %v214 = vunpack.c.l.b16 %v194
    %v215 = vpack.c.b16 %v208, %v207
    %v216 = vpack.c.b16 %v210, %v209
    %v217 = vpack.c.b16 %v212, %v211
    %v218 = vpack.c.b16 %v214, %v213
    %v224 = vsel %vm147, %v186, 0
    %226 = vmatpush.bf16.msra.mxu0 0
    %227 = vmatpush.bf16.msra.mxu0 0
    %228 = vmatpush.bf16.msra.mxu0 0
    %229 = vmatpush.bf16.msra.mxu0 0
    %230 = vmatpush.bf16.msra.mxu0 %v218
    %231 = vmatpush.bf16.msra.mxu0 %v217
    %232 = vmatpush.bf16.msra.mxu0 %v216
    %233 = vmatpush.bf16.msra.mxu0 %v215
    %234 = vmatmul.bf16.gmra.mxu0 %v224
    %v235 = vpop.f32.mrf.mxu0
    %v236 = vadd.f32 %v197, %v235
    %v237 = vpop.f32.mrf.mxu0
    %238 = vdwg.mxu0
    %v239 = vld [vmem:[%s6 + $0x7] sm:$0x1]
    %v240 = vld [vmem:[%s6 + $0x8] sm:$0x1]
    %241 = vadd.xlane.f32.xlu0 %v236
    %v242 = vpop.xlane.xlu0 %241
    %v243 = vrcp.pop 128.0
    %v244 = vmul.f32 128.0, %v243
    %v245 = vsub.f32 1.0, %v244
    %v246 = vmul.f32 %v243, %v245
    %v247 = vadd.f32 %v243, %v246
    %vm248 = vweird.f32 %v243
    %v249 = vsel %vm248, %v243, %v247
    %v250 = vmul.f32 %v242, %v249
    %v251 = vsub.f32 %v236, %v250
    %v252 = vmul.f32 %v251, %v251
    %253 = vadd.xlane.f32.xlu0 %v252
    %v254 = vpop.xlane.xlu0 %253
    %v255 = vmul.f32 %v254, %v249
    %v256 = vadd.f32 %v255, 1e-05
    %v257 = vrsqrt.pop %v256
    %v258 = vmul.f32 %v257, %v256
    %v259 = vmul.f32 %v258, %v257
    %v260 = vmul.f32 0.5, %v259
    %v261 = vsub.f32 1.5, %v260
    %v262 = vmul.f32 %v257, %v261
    %vm263 = vweird.f32 %v256
    %vm264 = vweird.f32 %v257
    %vm265 = vmor %vm263, %vm264
    %v266 = vsel %vm265, %v257, %v262
    %v267 = vmul.f32 %v251, %v266
    %v269 = vperm.slane %v239, 0
    %v271 = vmul.f32 %v267, %v269
    %v273 = vperm.slane %v240, 0
    %v275 = vadd.f32 %v271, %v273
    %v276 = vmax.f32 %v275, 0.0
    %v277 = vpack.c.bf16 %v276, %v276
    %v278 = vld [vmem:[%s4] sm:$0xff]
    %v279 = vld [vmem:[%s4 + $0x8] sm:$0xff]
    %v280 = vld [vmem:[%s4 + $0x10] sm:$0xff]
    %v281 = vld [vmem:[%s4 + $0x18] sm:$0xff]
    %v282 = vld [vmem:[%s4 + $0x20] sm:$0xff]
    %v283 = vld [vmem:[%s4 + $0x28] sm:$0xff]
    %v284 = vld [vmem:[%s4 + $0x30] sm:$0xff]
    %v285 = vld [vmem:[%s4 + $0x38] sm:$0xff]
    %v286 = vld [vmem:[%s4 + $0x40] sm:$0xff]
    %v287 = vld [vmem:[%s4 + $0x48] sm:$0xff]
    %v288 = vld [vmem:[%s4 + $0x50] sm:$0xff]
    %v289 = vld [vmem:[%s4 + $0x58] sm:$0xff]
    %v290 = vld [vmem:[%s4 + $0x60] sm:$0xff]
    %v291 = vld [vmem:[%s4 + $0x68] sm:$0xff]
    %v292 = vld [vmem:[%s4 + $0x70] sm:$0xff]
    %v293 = vld [vmem:[%s4 + $0x78] sm:$0xff]
    %v294 = vld [vmem:[%s6 + $0x9] sm:$0x3]
    %v296 = vperm.slane %v294, 0
    %v297 = vperm.slane %v294, 1
    %v316 = vunpack.c.l.b16 %v278
    %v317 = vunpack.c.h.b16 %v278
    %v318 = vunpack.c.l.b16 %v279
    %v319 = vunpack.c.h.b16 %v279
    %v320 = vunpack.c.l.b16 %v280
    %v321 = vunpack.c.h.b16 %v280
    %v322 = vunpack.c.l.b16 %v281
    %v323 = vunpack.c.h.b16 %v281
    %v324 = vunpack.c.l.b16 %v282
    %v325 = vunpack.c.h.b16 %v282
    %v326 = vunpack.c.l.b16 %v283
    %v327 = vunpack.c.h.b16 %v283
    %v328 = vunpack.c.l.b16 %v284
    %v329 = vunpack.c.h.b16 %v284
    %v330 = vunpack.c.l.b16 %v285
    %v331 = vunpack.c.h.b16 %v285
    %v332 = vunpack.c.l.b16 %v286
    %v333 = vunpack.c.h.b16 %v286
    %v334 = vunpack.c.l.b16 %v287
    %v335 = vunpack.c.h.b16 %v287
    %v336 = vunpack.c.l.b16 %v288
    %v337 = vunpack.c.h.b16 %v288
    %v338 = vunpack.c.l.b16 %v289
    %v339 = vunpack.c.h.b16 %v289
    %v340 = vunpack.c.l.b16 %v290
    %v341 = vunpack.c.h.b16 %v290
    %v342 = vunpack.c.l.b16 %v291
    %v343 = vunpack.c.h.b16 %v291
    %v344 = vunpack.c.l.b16 %v292
    %v345 = vunpack.c.h.b16 %v292
    %v346 = vunpack.c.l.b16 %v293
    %v347 = vunpack.c.h.b16 %v293
    %v348 = vpack.c.b16 %v318, %v316
    %v349 = vpack.c.b16 %v319, %v317
    %v350 = vpack.c.b16 %v322, %v320
    %v351 = vpack.c.b16 %v323, %v321
    %v352 = vpack.c.b16 %v326, %v324
    %v353 = vpack.c.b16 %v327, %v325
    %v354 = vpack.c.b16 %v330, %v328
    %v355 = vpack.c.b16 %v331, %v329
    %v356 = vpack.c.b16 %v334, %v332
    %v357 = vpack.c.b16 %v335, %v333
    %v358 = vpack.c.b16 %v338, %v336
    %v359 = vpack.c.b16 %v339, %v337
    %v360 = vpack.c.b16 %v342, %v340
    %v361 = vpack.c.b16 %v343, %v341
    %v362 = vpack.c.b16 %v346, %v344
    %v363 = vpack.c.b16 %v347, %v345
    %380 = vmatpush.bf16.msra.mxu0 %v362
    %381 = vmatpush.bf16.msra.mxu0 %v360
    %382 = vmatpush.bf16.msra.mxu0 %v358
    %383 = vmatpush.bf16.msra.mxu0 %v356
    %384 = vmatpush.bf16.msra.mxu0 %v354
    %385 = vmatpush.bf16.msra.mxu0 %v352
    %386 = vmatpush.bf16.msra.mxu0 %v350
    %387 = vmatpush.bf16.msra.mxu0 %v348
    %388 = vmatmul.bf16.gmra.mxu0 %v277
    %v389 = vpop.f32.mrf.mxu0
    %v390 = vadd.f32 %v296, %v389
    %v391 = vpop.f32.mrf.mxu0
    %392 = vdwg.mxu0
    %393 = vmatpush.bf16.msra.mxu0 %v363
    %394 = vmatpush.bf16.msra.mxu0 %v361
    %395 = vmatpush.bf16.msra.mxu0 %v359
    %396 = vmatpush.bf16.msra.mxu0 %v357
    %397 = vmatpush.bf16.msra.mxu0 %v355
    %398 = vmatpush.bf16.msra.mxu0 %v353
    %399 = vmatpush.bf16.msra.mxu0 %v351
    %400 = vmatpush.bf16.msra.mxu0 %v349
    %401 = vmatmul.bf16.gmra.mxu0 %v277
    %v402 = vpop.f32.mrf.mxu0
    %v403 = vadd.f32 %v297, %v402
    %v404 = vpop.f32.mrf.mxu0
    %405 = vdwg.mxu0
    %v406 = vmax.f32 %v390, 0.0
    %v407 = vmax.f32 %v403, 0.0
    %v408 = vpack.c.bf16 %v406, %v406
    %v409 = vpack.c.bf16 %v407, %v407
    %v410 = vld [vmem:[%s5] sm:$0xff]
    %v411 = vld [vmem:[%s5 + $0x8] sm:$0xff]
    %v412 = vld [vmem:[%s5 + $0x10] sm:$0xff]
    %v413 = vld [vmem:[%s5 + $0x18] sm:$0xff]
    %v414 = vld [vmem:[%s5 + $0x20] sm:$0xff]
    %v415 = vld [vmem:[%s5 + $0x28] sm:$0xf]
    %v416 = vld [vmem:[%s5 + $0x2c] sm:$0xff]
    %v417 = vld [vmem:[%s5 + $0x34] sm:$0xff]
    %v418 = vld [vmem:[%s5 + $0x3c] sm:$0xff]
    %v419 = vld [vmem:[%s5 + $0x44] sm:$0xff]
    %v420 = vld [vmem:[%s5 + $0x4c] sm:$0xff]
    %v421 = vld [vmem:[%s5 + $0x54] sm:$0xf]
    %v422 = vld [vmem:[%s5 + $0x58] sm:$0xff]
    %v423 = vld [vmem:[%s5 + $0x60] sm:$0xff]
    %v424 = vld [vmem:[%s5 + $0x68] sm:$0xff]
    %v425 = vld [vmem:[%s5 + $0x70] sm:$0xff]
    %v426 = vld [vmem:[%s5 + $0x78] sm:$0xff]
    %v427 = vld [vmem:[%s5 + $0x80] sm:$0xf]
    %v428 = vld [vmem:[%s5 + $0x84] sm:$0xff]
    %v429 = vld [vmem:[%s5 + $0x8c] sm:$0xff]
    %v430 = vld [vmem:[%s5 + $0x94] sm:$0xff]
    %v431 = vld [vmem:[%s5 + $0x9c] sm:$0xff]
    %v432 = vld [vmem:[%s5 + $0xa4] sm:$0xff]
    %v433 = vld [vmem:[%s5 + $0xac] sm:$0xf]
    %v434 = vld [vmem:[%s5 + $0xb0] sm:$0xff]
    %v435 = vld [vmem:[%s5 + $0xb8] sm:$0xff]
    %v436 = vld [vmem:[%s5 + $0xc0] sm:$0xff]
    %v437 = vld [vmem:[%s5 + $0xc8] sm:$0xff]
    %v438 = vld [vmem:[%s5 + $0xd0] sm:$0xff]
    %v439 = vld [vmem:[%s5 + $0xd8] sm:$0xf]
    %v440 = vld [vmem:[%s5 + $0xdc] sm:$0xff]
    %v441 = vld [vmem:[%s5 + $0xe4] sm:$0xff]
    %v442 = vld [vmem:[%s5 + $0xec] sm:$0xff]
    %v443 = vld [vmem:[%s5 + $0xf4] sm:$0xff]
    %v444 = vld [vmem:[%s5 + $0xfc] sm:$0xff]
    %v445 = vld [vmem:[%s5 + $0x104] sm:$0xf]
    %v446 = vld [vmem:[%s5 + $0x108] sm:$0xff]
    %v447 = vld [vmem:[%s5 + $0x110] sm:$0xff]
    %v448 = vld [vmem:[%s5 + $0x118] sm:$0xff]
    %v449 = vld [vmem:[%s5 + $0x120] sm:$0xff]
    %v450 = vld [vmem:[%s5 + $0x128] sm:$0xff]
    %v451 = vld [vmem:[%s5 + $0x130] sm:$0xf]
    %v452 = vld [vmem:[%s5 + $0x134] sm:$0xff]
    %v453 = vld [vmem:[%s5 + $0x13c] sm:$0xff]
    %v454 = vld [vmem:[%s5 + $0x144] sm:$0xff]
    %v455 = vld [vmem:[%s5 + $0x14c] sm:$0xff]
    %v456 = vld [vmem:[%s5 + $0x154] sm:$0xff]
    %v457 = vld [vmem:[%s5 + $0x15c] sm:$0xf]
    %v458 = vld [vmem:[%s5 + $0x160] sm:$0xff]
    %v459 = vld [vmem:[%s5 + $0x168] sm:$0xff]
    %v460 = vld [vmem:[%s5 + $0x170] sm:$0xff]
    %v461 = vld [vmem:[%s5 + $0x178] sm:$0xff]
    %v462 = vld [vmem:[%s5 + $0x180] sm:$0xff]
    %v463 = vld [vmem:[%s5 + $0x188] sm:$0xf]
    %v464 = vld [vmem:[%s5 + $0x18c] sm:$0xff]
    %v465 = vld [vmem:[%s5 + $0x194] sm:$0xff]
    %v466 = vld [vmem:[%s5 + $0x19c] sm:$0xff]
    %v467 = vld [vmem:[%s5 + $0x1a4] sm:$0xff]
    %v468 = vld [vmem:[%s5 + $0x1ac] sm:$0xff]
    %v469 = vld [vmem:[%s5 + $0x1b4] sm:$0xf]
    %v470 = vld [vmem:[%s5 + $0x1b8] sm:$0xff]
    %v471 = vld [vmem:[%s5 + $0x1c0] sm:$0xff]
    %v472 = vld [vmem:[%s5 + $0x1c8] sm:$0xff]
    %v473 = vld [vmem:[%s5 + $0x1d0] sm:$0xff]
    %v474 = vld [vmem:[%s5 + $0x1d8] sm:$0xff]
    %v475 = vld [vmem:[%s5 + $0x1e0] sm:$0xf]
    %v476 = vld [vmem:[%s5 + $0x1e4] sm:$0xff]
    %v477 = vld [vmem:[%s5 + $0x1ec] sm:$0xff]
    %v478 = vld [vmem:[%s5 + $0x1f4] sm:$0xff]
    %v479 = vld [vmem:[%s5 + $0x1fc] sm:$0xff]
    %v480 = vld [vmem:[%s5 + $0x204] sm:$0xff]
    %v481 = vld [vmem:[%s5 + $0x20c] sm:$0xf]
    %v482 = vld [vmem:[%s5 + $0x210] sm:$0xff]
    %v483 = vld [vmem:[%s5 + $0x218] sm:$0xff]
    %v484 = vld [vmem:[%s5 + $0x220] sm:$0xff]
    %v485 = vld [vmem:[%s5 + $0x228] sm:$0xff]
    %v486 = vld [vmem:[%s5 + $0x230] sm:$0xff]
    %v487 = vld [vmem:[%s5 + $0x238] sm:$0xf]
    %v488 = vld [vmem:[%s5 + $0x23c] sm:$0xff]
    %v489 = vld [vmem:[%s5 + $0x244] sm:$0xff]
    %v490 = vld [vmem:[%s5 + $0x24c] sm:$0xff]
    %v491 = vld [vmem:[%s5 + $0x254] sm:$0xff]
    %v492 = vld [vmem:[%s5 + $0x25c] sm:$0xff]
    %v493 = vld [vmem:[%s5 + $0x264] sm:$0xf]
    %v494 = vld [vmem:[%s5 + $0x268] sm:$0xff]
    %v495 = vld [vmem:[%s5 + $0x270] sm:$0xff]
    %v496 = vld [vmem:[%s5 + $0x278] sm:$0xff]
    %v497 = vld [vmem:[%s5 + $0x280] sm:$0xff]
    %v498 = vld [vmem:[%s5 + $0x288] sm:$0xff]
    %v499 = vld [vmem:[%s5 + $0x290] sm:$0xf]
    %v500 = vld [vmem:[%s5 + $0x294] sm:$0xff]
    %v501 = vld [vmem:[%s5 + $0x29c] sm:$0xff]
    %v502 = vld [vmem:[%s5 + $0x2a4] sm:$0xff]
    %v503 = vld [vmem:[%s5 + $0x2ac] sm:$0xff]
    %v504 = vld [vmem:[%s5 + $0x2b4] sm:$0xff]
    %v505 = vld [vmem:[%s5 + $0x2bc] sm:$0xf]
    %v506 = vld [vmem:[%s5 + $0x2c0] sm:$0xff]
    %v507 = vld [vmem:[%s5 + $0x2c8] sm:$0xff]
    %v508 = vld [vmem:[%s5 + $0x2d0] sm:$0xff]
    %v509 = vld [vmem:[%s5 + $0x2d8] sm:$0xff]
    %v510 = vld [vmem:[%s5 + $0x2e0] sm:$0xff]
    %v511 = vld [vmem:[%s5 + $0x2e8] sm:$0xf]
    %v512 = vld [vmem:[%s5 + $0x2ec] sm:$0xff]
    %v513 = vld [vmem:[%s5 + $0x2f4] sm:$0xff]
    %v514 = vld [vmem:[%s5 + $0x2fc] sm:$0xff]
    %v515 = vld [vmem:[%s5 + $0x304] sm:$0xff]
    %v516 = vld [vmem:[%s5 + $0x30c] sm:$0xff]
    %v517 = vld [vmem:[%s5 + $0x314] sm:$0xf]
    %v518 = vld [vmem:[%s5 + $0x318] sm:$0xff]
    %v519 = vld [vmem:[%s5 + $0x320] sm:$0xff]
    %v520 = vld [vmem:[%s5 + $0x328] sm:$0xff]
    %v521 = vld [vmem:[%s5 + $0x330] sm:$0xff]
    %v522 = vld [vmem:[%s5 + $0x338] sm:$0xff]
    %v523 = vld [vmem:[%s5 + $0x340] sm:$0xf]
    %v524 = vld [vmem:[%s5 + $0x344] sm:$0xff]
    %v525 = vld [vmem:[%s5 + $0x34c] sm:$0xff]
    %v526 = vld [vmem:[%s5 + $0x354] sm:$0xff]
    %v527 = vld [vmem:[%s5 + $0x35c] sm:$0xff]
    %v528 = vld [vmem:[%s5 + $0x364] sm:$0xff]
    %v529 = vld [vmem:[%s5 + $0x36c] sm:$0xf]
    %v530 = vld [vmem:[%s5 + $0x370] sm:$0xff]
    %v531 = vld [vmem:[%s5 + $0x378] sm:$0xff]
    %v532 = vld [vmem:[%s5 + $0x380] sm:$0xff]
    %v533 = vld [vmem:[%s5 + $0x388] sm:$0xff]
    %v534 = vld [vmem:[%s5 + $0x390] sm:$0xff]
    %v535 = vld [vmem:[%s5 + $0x398] sm:$0xf]
    %v536 = vld [vmem:[%s5 + $0x39c] sm:$0xff]
    %v537 = vld [vmem:[%s5 + $0x3a4] sm:$0xff]
    %v538 = vld [vmem:[%s5 + $0x3ac] sm:$0xff]
    %v539 = vld [vmem:[%s5 + $0x3b4] sm:$0xff]
    %v540 = vld [vmem:[%s5 + $0x3bc] sm:$0xff]
    %v541 = vld [vmem:[%s5 + $0x3c4] sm:$0xf]
    %v542 = vld [vmem:[%s5 + $0x3c8] sm:$0xff]
    %v543 = vld [vmem:[%s5 + $0x3d0] sm:$0xff]
    %v544 = vld [vmem:[%s5 + $0x3d8] sm:$0xff]
    %v545 = vld [vmem:[%s5 + $0x3e0] sm:$0xff]
    %v546 = vld [vmem:[%s5 + $0x3e8] sm:$0xff]
    %v547 = vld [vmem:[%s5 + $0x3f0] sm:$0xf]
    %v548 = vld [vmem:[%s5 + $0x3f4] sm:$0xff]
    %v549 = vld [vmem:[%s5 + $0x3fc] sm:$0xff]
    %v550 = vld [vmem:[%s5 + $0x404] sm:$0xff]
    %v551 = vld [vmem:[%s5 + $0x40c] sm:$0xff]
    %v552 = vld [vmem:[%s5 + $0x414] sm:$0xff]
    %v553 = vld [vmem:[%s5 + $0x41c] sm:$0xf]
    %v554 = vld [vmem:[%s5 + $0x420] sm:$0xff]
    %v555 = vld [vmem:[%s5 + $0x428] sm:$0xff]
    %v556 = vld [vmem:[%s5 + $0x430] sm:$0xff]
    %v557 = vld [vmem:[%s5 + $0x438] sm:$0xff]
    %v558 = vld [vmem:[%s5 + $0x440] sm:$0xff]
    %v559 = vld [vmem:[%s5 + $0x448] sm:$0xf]
    %v560 = vld [vmem:[%s5 + $0x44c] sm:$0xff]
    %v561 = vld [vmem:[%s5 + $0x454] sm:$0xff]
    %v562 = vld [vmem:[%s5 + $0x45c] sm:$0xff]
    %v563 = vld [vmem:[%s5 + $0x464] sm:$0xff]
    %v564 = vld [vmem:[%s5 + $0x46c] sm:$0xff]
    %v565 = vld [vmem:[%s5 + $0x474] sm:$0xf]
    %v566 = vld [vmem:[%s5 + $0x478] sm:$0xff]
    %v567 = vld [vmem:[%s5 + $0x480] sm:$0xff]
    %v568 = vld [vmem:[%s5 + $0x488] sm:$0xff]
    %v569 = vld [vmem:[%s5 + $0x490] sm:$0xff]
    %v570 = vld [vmem:[%s5 + $0x498] sm:$0xff]
    %v571 = vld [vmem:[%s5 + $0x4a0] sm:$0xf]
    %v572 = vld [vmem:[%s5 + $0x4a4] sm:$0xff]
    %v573 = vld [vmem:[%s5 + $0x4ac] sm:$0xff]
    %v574 = vld [vmem:[%s5 + $0x4b4] sm:$0xff]
    %v575 = vld [vmem:[%s5 + $0x4bc] sm:$0xff]
    %v576 = vld [vmem:[%s5 + $0x4c4] sm:$0xff]
    %v577 = vld [vmem:[%s5 + $0x4cc] sm:$0xf]
    %v578 = vld [vmem:[%s5 + $0x4d0] sm:$0xff]
    %v579 = vld [vmem:[%s5 + $0x4d8] sm:$0xff]
    %v580 = vld [vmem:[%s5 + $0x4e0] sm:$0xff]
    %v581 = vld [vmem:[%s5 + $0x4e8] sm:$0xff]
    %v582 = vld [vmem:[%s5 + $0x4f0] sm:$0xff]
    %v583 = vld [vmem:[%s5 + $0x4f8] sm:$0xf]
    %v584 = vld [vmem:[%s5 + $0x4fc] sm:$0xff]
    %v585 = vld [vmem:[%s5 + $0x504] sm:$0xff]
    %v586 = vld [vmem:[%s5 + $0x50c] sm:$0xff]
    %v587 = vld [vmem:[%s5 + $0x514] sm:$0xff]
    %v588 = vld [vmem:[%s5 + $0x51c] sm:$0xff]
    %v589 = vld [vmem:[%s5 + $0x524] sm:$0xf]
    %v590 = vld [vmem:[%s5 + $0x528] sm:$0xff]
    %v591 = vld [vmem:[%s5 + $0x530] sm:$0xff]
    %v592 = vld [vmem:[%s5 + $0x538] sm:$0xff]
    %v593 = vld [vmem:[%s5 + $0x540] sm:$0xff]
    %v594 = vld [vmem:[%s5 + $0x548] sm:$0xff]
    %v595 = vld [vmem:[%s5 + $0x550] sm:$0xf]
    %v596 = vld [vmem:[%s5 + $0x554] sm:$0xff]
    %v597 = vld [vmem:[%s5 + $0x55c] sm:$0xff]
    %v598 = vld [vmem:[%s5 + $0x564] sm:$0xff]
    %v599 = vld [vmem:[%s5 + $0x56c] sm:$0xff]
    %v600 = vld [vmem:[%s5 + $0x574] sm:$0xff]
    %v601 = vld [vmem:[%s5 + $0x57c] sm:$0xf]
    %v602 = vld [vmem:[%s6 + $0xb] sm:$0xff]
    %v603 = vld [vmem:[%s6 + $0x13] sm:$0x7]
    %v606 = vperm.slane %v602, 0
    %v607 = vperm.slane %v602, 1
    %v608 = vperm.slane %v602, 2
    %v609 = vperm.slane %v602, 3
    %v610 = vperm.slane %v602, 4
    %v611 = vperm.slane %v602, 5
    %v612 = vperm.slane %v602, 6
    %v613 = vperm.slane %v602, 7
    %v614 = vperm.slane %v603, 0
    %v615 = vperm.slane %v603, 1
    %v616 = vperm.slane %v603, 2
    %v820 = vunpack.c.l.b16 %v410
    %v821 = vunpack.c.h.b16 %v410
    %v822 = vunpack.c.l.b16 %v411
    %v823 = vunpack.c.h.b16 %v411
    %v824 = vunpack.c.l.b16 %v412
    %v825 = vunpack.c.h.b16 %v412
    %v826 = vunpack.c.l.b16 %v413
    %v827 = vunpack.c.h.b16 %v413
    %v828 = vunpack.c.l.b16 %v414
    %v829 = vunpack.c.h.b16 %v414
    %v830 = vunpack.c.l.b16 %v415
    %v831 = vunpack.c.l.b16 %v416
    %v832 = vunpack.c.h.b16 %v416
    %v833 = vunpack.c.l.b16 %v417
    %v834 = vunpack.c.h.b16 %v417
    %v835 = vunpack.c.l.b16 %v418
    %v836 = vunpack.c.h.b16 %v418
    %v837 = vunpack.c.l.b16 %v419
    %v838 = vunpack.c.h.b16 %v419
    %v839 = vunpack.c.l.b16 %v420
    %v840 = vunpack.c.h.b16 %v420
    %v841 = vunpack.c.l.b16 %v421
    %v842 = vunpack.c.l.b16 %v422
    %v843 = vunpack.c.h.b16 %v422
    %v844 = vunpack.c.l.b16 %v423
    %v845 = vunpack.c.h.b16 %v423
    %v846 = vunpack.c.l.b16 %v424
    %v847 = vunpack.c.h.b16 %v424
    %v848 = vunpack.c.l.b16 %v425
    %v849 = vunpack.c.h.b16 %v425
    %v850 = vunpack.c.l.b16 %v426
    %v851 = vunpack.c.h.b16 %v426
    %v852 = vunpack.c.l.b16 %v427
    %v853 = vunpack.c.l.b16 %v428
    %v854 = vunpack.c.h.b16 %v428
    %v855 = vunpack.c.l.b16 %v429
    %v856 = vunpack.c.h.b16 %v429
    %v857 = vunpack.c.l.b16 %v430
    %v858 = vunpack.c.h.b16 %v430
    %v859 = vunpack.c.l.b16 %v431
    %v860 = vunpack.c.h.b16 %v431
    %v861 = vunpack.c.l.b16 %v432
    %v862 = vunpack.c.h.b16 %v432
    %v863 = vunpack.c.l.b16 %v433
    %v864 = vunpack.c.l.b16 %v434
    %v865 = vunpack.c.h.b16 %v434
    %v866 = vunpack.c.l.b16 %v435
    %v867 = vunpack.c.h.b16 %v435
    %v868 = vunpack.c.l.b16 %v436
    %v869 = vunpack.c.h.b16 %v436
    %v870 = vunpack.c.l.b16 %v437
    %v871 = vunpack.c.h.b16 %v437
    %v872 = vunpack.c.l.b16 %v438
    %v873 = vunpack.c.h.b16 %v438
    %v874 = vunpack.c.l.b16 %v439
    %v875 = vunpack.c.l.b16 %v440
    %v876 = vunpack.c.h.b16 %v440
    %v877 = vunpack.c.l.b16 %v441
    %v878 = vunpack.c.h.b16 %v441
    %v879 = vunpack.c.l.b16 %v442
    %v880 = vunpack.c.h.b16 %v442
    %v881 = vunpack.c.l.b16 %v443
    %v882 = vunpack.c.h.b16 %v443
    %v883 = vunpack.c.l.b16 %v444
    %v884 = vunpack.c.h.b16 %v444
    %v885 = vunpack.c.l.b16 %v445
    %v886 = vunpack.c.l.b16 %v446
    %v887 = vunpack.c.h.b16 %v446
    %v888 = vunpack.c.l.b16 %v447
    %v889 = vunpack.c.h.b16 %v447
    %v890 = vunpack.c.l.b16 %v448
    %v891 = vunpack.c.h.b16 %v448
    %v892 = vunpack.c.l.b16 %v449
    %v893 = vunpack.c.h.b16 %v449
    %v894 = vunpack.c.l.b16 %v450
    %v895 = vunpack.c.h.b16 %v450
    %v896 = vunpack.c.l.b16 %v451
    %v897 = vunpack.c.l.b16 %v452
    %v898 = vunpack.c.h.b16 %v452
    %v899 = vunpack.c.l.b16 %v453
    %v900 = vunpack.c.h.b16 %v453
    %v901 = vunpack.c.l.b16 %v454
    %v902 = vunpack.c.h.b16 %v454
    %v903 = vunpack.c.l.b16 %v455
    %v904 = vunpack.c.h.b16 %v455
    %v905 = vunpack.c.l.b16 %v456
    %v906 = vunpack.c.h.b16 %v456
    %v907 = vunpack.c.l.b16 %v457
    %v908 = vunpack.c.l.b16 %v458
    %v909 = vunpack.c.h.b16 %v458
    %v910 = vunpack.c.l.b16 %v459
    %v911 = vunpack.c.h.b16 %v459
    %v912 = vunpack.c.l.b16 %v460
    %v913 = vunpack.c.h.b16 %v460
    %v914 = vunpack.c.l.b16 %v461
    %v915 = vunpack.c.h.b16 %v461
    %v916 = vunpack.c.l.b16 %v462
    %v917 = vunpack.c.h.b16 %v462
    %v918 = vunpack.c.l.b16 %v463
    %v919 = vunpack.c.l.b16 %v464
    %v920 = vunpack.c.h.b16 %v464
    %v921 = vunpack.c.l.b16 %v465
    %v922 = vunpack.c.h.b16 %v465
    %v923 = vunpack.c.l.b16 %v466
    %v924 = vunpack.c.h.b16 %v466
    %v925 = vunpack.c.l.b16 %v467
    %v926 = vunpack.c.h.b16 %v467
    %v927 = vunpack.c.l.b16 %v468
    %v928 = vunpack.c.h.b16 %v468
    %v929 = vunpack.c.l.b16 %v469
    %v930 = vunpack.c.l.b16 %v470
    %v931 = vunpack.c.h.b16 %v470
    %v932 = vunpack.c.l.b16 %v471
    %v933 = vunpack.c.h.b16 %v471
    %v934 = vunpack.c.l.b16 %v472
    %v935 = vunpack.c.h.b16 %v472
    %v936 = vunpack.c.l.b16 %v473
    %v937 = vunpack.c.h.b16 %v473
    %v938 = vunpack.c.l.b16 %v474
    %v939 = vunpack.c.h.b16 %v474
    %v940 = vunpack.c.l.b16 %v475
    %v941 = vunpack.c.l.b16 %v476
    %v942 = vunpack.c.h.b16 %v476
    %v943 = vunpack.c.l.b16 %v477
    %v944 = vunpack.c.h.b16 %v477
    %v945 = vunpack.c.l.b16 %v478
    %v946 = vunpack.c.h.b16 %v478
    %v947 = vunpack.c.l.b16 %v479
    %v948 = vunpack.c.h.b16 %v479
    %v949 = vunpack.c.l.b16 %v480
    %v950 = vunpack.c.h.b16 %v480
    %v951 = vunpack.c.l.b16 %v481
    %v952 = vunpack.c.l.b16 %v482
    %v953 = vunpack.c.h.b16 %v482
    %v954 = vunpack.c.l.b16 %v483
    %v955 = vunpack.c.h.b16 %v483
    %v956 = vunpack.c.l.b16 %v484
    %v957 = vunpack.c.h.b16 %v484
    %v958 = vunpack.c.l.b16 %v485
    %v959 = vunpack.c.h.b16 %v485
    %v960 = vunpack.c.l.b16 %v486
    %v961 = vunpack.c.h.b16 %v486
    %v962 = vunpack.c.l.b16 %v487
    %v963 = vunpack.c.l.b16 %v488
    %v964 = vunpack.c.h.b16 %v488
    %v965 = vunpack.c.l.b16 %v489
    %v966 = vunpack.c.h.b16 %v489
    %v967 = vunpack.c.l.b16 %v490
    %v968 = vunpack.c.h.b16 %v490
    %v969 = vunpack.c.l.b16 %v491
    %v970 = vunpack.c.h.b16 %v491
    %v971 = vunpack.c.l.b16 %v492
    %v972 = vunpack.c.h.b16 %v492
    %v973 = vunpack.c.l.b16 %v493
    %v974 = vunpack.c.l.b16 %v494
    %v975 = vunpack.c.h.b16 %v494
    %v976 = vunpack.c.l.b16 %v495
    %v977 = vunpack.c.h.b16 %v495
    %v978 = vunpack.c.l.b16 %v496
    %v979 = vunpack.c.h.b16 %v496
    %v980 = vunpack.c.l.b16 %v497
    %v981 = vunpack.c.h.b16 %v497
    %v982 = vunpack.c.l.b16 %v498
    %v983 = vunpack.c.h.b16 %v498
    %v984 = vunpack.c.l.b16 %v499
    %v985 = vunpack.c.l.b16 %v500
    %v986 = vunpack.c.h.b16 %v500
    %v987 = vunpack.c.l.b16 %v501
    %v988 = vunpack.c.h.b16 %v501
    %v989 = vunpack.c.l.b16 %v502
    %v990 = vunpack.c.h.b16 %v502
    %v991 = vunpack.c.l.b16 %v503
    %v992 = vunpack.c.h.b16 %v503
    %v993 = vunpack.c.l.b16 %v504
    %v994 = vunpack.c.h.b16 %v504
    %v995 = vunpack.c.l.b16 %v505
    %v996 = vunpack.c.l.b16 %v506
    %v997 = vunpack.c.h.b16 %v506
    %v998 = vunpack.c.l.b16 %v507
    %v999 = vunpack.c.h.b16 %v507
    %v1000 = vunpack.c.l.b16 %v508
    %v1001 = vunpack.c.h.b16 %v508
    %v1002 = vunpack.c.l.b16 %v509
    %v1003 = vunpack.c.h.b16 %v509
    %v1004 = vunpack.c.l.b16 %v510
    %v1005 = vunpack.c.h.b16 %v510
    %v1006 = vunpack.c.l.b16 %v511
    %v1007 = vunpack.c.l.b16 %v512
    %v1008 = vunpack.c.h.b16 %v512
    %v1009 = vunpack.c.l.b16 %v513
    %v1010 = vunpack.c.h.b16 %v513
    %v1011 = vunpack.c.l.b16 %v514
    %v1012 = vunpack.c.h.b16 %v514
    %v1013 = vunpack.c.l.b16 %v515
    %v1014 = vunpack.c.h.b16 %v515
    %v1015 = vunpack.c.l.b16 %v516
    %v1016 = vunpack.c.h.b16 %v516
    %v1017 = vunpack.c.l.b16 %v517
    %v1018 = vunpack.c.l.b16 %v518
    %v1019 = vunpack.c.h.b16 %v518
    %v1020 = vunpack.c.l.b16 %v519
    %v1021 = vunpack.c.h.b16 %v519
    %v1022 = vunpack.c.l.b16 %v520
    %v1023 = vunpack.c.h.b16 %v520
    %v1024 = vunpack.c.l.b16 %v521
    %v1025 = vunpack.c.h.b16 %v521
    %v1026 = vunpack.c.l.b16 %v522
    %v1027 = vunpack.c.h.b16 %v522
    %v1028 = vunpack.c.l.b16 %v523
    %v1029 = vunpack.c.l.b16 %v524
    %v1030 = vunpack.c.h.b16 %v524
    %v1031 = vunpack.c.l.b16 %v525
    %v1032 = vunpack.c.h.b16 %v525
    %v1033 = vunpack.c.l.b16 %v526
    %v1034 = vunpack.c.h.b16 %v526
    %v1035 = vunpack.c.l.b16 %v527
    %v1036 = vunpack.c.h.b16 %v527
    %v1037 = vunpack.c.l.b16 %v528
    %v1038 = vunpack.c.h.b16 %v528
    %v1039 = vunpack.c.l.b16 %v529
    %v1040 = vunpack.c.l.b16 %v530
    %v1041 = vunpack.c.h.b16 %v530
    %v1042 = vunpack.c.l.b16 %v531
    %v1043 = vunpack.c.h.b16 %v531
    %v1044 = vunpack.c.l.b16 %v532
    %v1045 = vunpack.c.h.b16 %v532
    %v1046 = vunpack.c.l.b16 %v533
    %v1047 = vunpack.c.h.b16 %v533
    %v1048 = vunpack.c.l.b16 %v534
    %v1049 = vunpack.c.h.b16 %v534
    %v1050 = vunpack.c.l.b16 %v535
    %v1051 = vunpack.c.l.b16 %v536
    %v1052 = vunpack.c.h.b16 %v536
    %v1053 = vunpack.c.l.b16 %v537
    %v1054 = vunpack.c.h.b16 %v537
    %v1055 = vunpack.c.l.b16 %v538
    %v1056 = vunpack.c.h.b16 %v538
    %v1057 = vunpack.c.l.b16 %v539
    %v1058 = vunpack.c.h.b16 %v539
    %v1059 = vunpack.c.l.b16 %v540
    %v1060 = vunpack.c.h.b16 %v540
    %v1061 = vunpack.c.l.b16 %v541
    %v1062 = vunpack.c.l.b16 %v542
    %v1063 = vunpack.c.h.b16 %v542
    %v1064 = vunpack.c.l.b16 %v543
    %v1065 = vunpack.c.h.b16 %v543
    %v1066 = vunpack.c.l.b16 %v544
    %v1067 = vunpack.c.h.b16 %v544
    %v1068 = vunpack.c.l.b16 %v545
    %v1069 = vunpack.c.h.b16 %v545
    %v1070 = vunpack.c.l.b16 %v546
    %v1071 = vunpack.c.h.b16 %v546
    %v1072 = vunpack.c.l.b16 %v547
    %v1073 = vunpack.c.l.b16 %v548
    %v1074 = vunpack.c.h.b16 %v548
    %v1075 = vunpack.c.l.b16 %v549
    %v1076 = vunpack.c.h.b16 %v549
    %v1077 = vunpack.c.l.b16 %v550
    %v1078 = vunpack.c.h.b16 %v550
    %v1079 = vunpack.c.l.b16 %v551
    %v1080 = vunpack.c.h.b16 %v551
    %v1081 = vunpack.c.l.b16 %v552
    %v1082 = vunpack.c.h.b16 %v552
    %v1083 = vunpack.c.l.b16 %v553
    %v1084 = vunpack.c.l.b16 %v554
    %v1085 = vunpack.c.h.b16 %v554
    %v1086 = vunpack.c.l.b16 %v555
    %v1087 = vunpack.c.h.b16 %v555
    %v1088 = vunpack.c.l.b16 %v556
    %v1089 = vunpack.c.h.b16 %v556
    %v1090 = vunpack.c.l.b16 %v557
    %v1091 = vunpack.c.h.b16 %v557
    %v1092 = vunpack.c.l.b16 %v558
    %v1093 = vunpack.c.h.b16 %v558
    %v1094 = vunpack.c.l.b16 %v559
    %v1095 = vunpack.c.l.b16 %v560
    %v1096 = vunpack.c.h.b16 %v560
    %v1097 = vunpack.c.l.b16 %v561
    %v1098 = vunpack.c.h.b16 %v561
    %v1099 = vunpack.c.l.b16 %v562
    %v1100 = vunpack.c.h.b16 %v562
    %v1101 = vunpack.c.l.b16 %v563
    %v1102 = vunpack.c.h.b16 %v563
    %v1103 = vunpack.c.l.b16 %v564
    %v1104 = vunpack.c.h.b16 %v564
    %v1105 = vunpack.c.l.b16 %v565
    %v1106 = vunpack.c.l.b16 %v566
    %v1107 = vunpack.c.h.b16 %v566
    %v1108 = vunpack.c.l.b16 %v567
    %v1109 = vunpack.c.h.b16 %v567
    %v1110 = vunpack.c.l.b16 %v568
    %v1111 = vunpack.c.h.b16 %v568
    %v1112 = vunpack.c.l.b16 %v569
    %v1113 = vunpack.c.h.b16 %v569
    %v1114 = vunpack.c.l.b16 %v570
    %v1115 = vunpack.c.h.b16 %v570
    %v1116 = vunpack.c.l.b16 %v571
    %v1117 = vunpack.c.l.b16 %v572
    %v1118 = vunpack.c.h.b16 %v572
    %v1119 = vunpack.c.l.b16 %v573
    %v1120 = vunpack.c.h.b16 %v573
    %v1121 = vunpack.c.l.b16 %v574
    %v1122 = vunpack.c.h.b16 %v574
    %v1123 = vunpack.c.l.b16 %v575
    %v1124 = vunpack.c.h.b16 %v575
    %v1125 = vunpack.c.l.b16 %v576
    %v1126 = vunpack.c.h.b16 %v576
    %v1127 = vunpack.c.l.b16 %v577
    %v1128 = vunpack.c.l.b16 %v578
    %v1129 = vunpack.c.h.b16 %v578
    %v1130 = vunpack.c.l.b16 %v579
    %v1131 = vunpack.c.h.b16 %v579
    %v1132 = vunpack.c.l.b16 %v580
    %v1133 = vunpack.c.h.b16 %v580
    %v1134 = vunpack.c.l.b16 %v581
    %v1135 = vunpack.c.h.b16 %v581
    %v1136 = vunpack.c.l.b16 %v582
    %v1137 = vunpack.c.h.b16 %v582
    %v1138 = vunpack.c.l.b16 %v583
    %v1139 = vunpack.c.l.b16 %v584
    %v1140 = vunpack.c.h.b16 %v584
    %v1141 = vunpack.c.l.b16 %v585
    %v1142 = vunpack.c.h.b16 %v585
    %v1143 = vunpack.c.l.b16 %v586
    %v1144 = vunpack.c.h.b16 %v586
    %v1145 = vunpack.c.l.b16 %v587
    %v1146 = vunpack.c.h.b16 %v587
    %v1147 = vunpack.c.l.b16 %v588
    %v1148 = vunpack.c.h.b16 %v588
    %v1149 = vunpack.c.l.b16 %v589
    %v1150 = vunpack.c.l.b16 %v590
    %v1151 = vunpack.c.h.b16 %v590
    %v1152 = vunpack.c.l.b16 %v591
    %v1153 = vunpack.c.h.b16 %v591
    %v1154 = vunpack.c.l.b16 %v592
    %v1155 = vunpack.c.h.b16 %v592
    %v1156 = vunpack.c.l.b16 %v593
    %v1157 = vunpack.c.h.b16 %v593
    %v1158 = vunpack.c.l.b16 %v594
    %v1159 = vunpack.c.h.b16 %v594
    %v1160 = vunpack.c.l.b16 %v595
    %v1161 = vunpack.c.l.b16 %v596
    %v1162 = vunpack.c.h.b16 %v596
    %v1163 = vunpack.c.l.b16 %v597
    %v1164 = vunpack.c.h.b16 %v597
    %v1165 = vunpack.c.l.b16 %v598
    %v1166 = vunpack.c.h.b16 %v598
    %v1167 = vunpack.c.l.b16 %v599
    %v1168 = vunpack.c.h.b16 %v599
    %v1169 = vunpack.c.l.b16 %v600
    %v1170 = vunpack.c.h.b16 %v600
    %v1171 = vunpack.c.l.b16 %v601
    %v1172 = vpack.c.b16 %v831, %v820
    %v1173 = vpack.c.b16 %v832, %v821
    %v1174 = vpack.c.b16 %v833, %v822
    %v1175 = vpack.c.b16 %v834, %v823
    %v1176 = vpack.c.b16 %v835, %v824
    %v1177 = vpack.c.b16 %v836, %v825
    %v1178 = vpack.c.b16 %v837, %v826
    %v1179 = vpack.c.b16 %v838, %v827
    %v1180 = vpack.c.b16 %v839, %v828
    %v1181 = vpack.c.b16 %v840, %v829
    %v1182 = vpack.c.b16 %v841, %v830
    %v1183 = vpack.c.b16 %v853, %v842
    %v1184 = vpack.c.b16 %v854, %v843
    %v1185 = vpack.c.b16 %v855, %v844
    %v1186 = vpack.c.b16 %v856, %v845
    %v1187 = vpack.c.b16 %v857, %v846
    %v1188 = vpack.c.b16 %v858, %v847
    %v1189 = vpack.c.b16 %v859, %v848
    %v1190 = vpack.c.b16 %v860, %v849
    %v1191 = vpack.c.b16 %v861, %v850
    %v1192 = vpack.c.b16 %v862, %v851
    %v1193 = vpack.c.b16 %v863, %v852
    %v1194 = vpack.c.b16 %v875, %v864
    %v1195 = vpack.c.b16 %v876, %v865
    %v1196 = vpack.c.b16 %v877, %v866
    %v1197 = vpack.c.b16 %v878, %v867
    %v1198 = vpack.c.b16 %v879, %v868
    %v1199 = vpack.c.b16 %v880, %v869
    %v1200 = vpack.c.b16 %v881, %v870
    %v1201 = vpack.c.b16 %v882, %v871
    %v1202 = vpack.c.b16 %v883, %v872
    %v1203 = vpack.c.b16 %v884, %v873
    %v1204 = vpack.c.b16 %v885, %v874
    %v1205 = vpack.c.b16 %v897, %v886
    %v1206 = vpack.c.b16 %v898, %v887
    %v1207 = vpack.c.b16 %v899, %v888
    %v1208 = vpack.c.b16 %v900, %v889
    %v1209 = vpack.c.b16 %v901, %v890
    %v1210 = vpack.c.b16 %v902, %v891
    %v1211 = vpack.c.b16 %v903, %v892
    %v1212 = vpack.c.b16 %v904, %v893
    %v1213 = vpack.c.b16 %v905, %v894
    %v1214 = vpack.c.b16 %v906, %v895
    %v1215 = vpack.c.b16 %v907, %v896
    %v1216 = vpack.c.b16 %v919, %v908
    %v1217 = vpack.c.b16 %v920, %v909
    %v1218 = vpack.c.b16 %v921, %v910
    %v1219 = vpack.c.b16 %v922, %v911
    %v1220 = vpack.c.b16 %v923, %v912
    %v1221 = vpack.c.b16 %v924, %v913
    %v1222 = vpack.c.b16 %v925, %v914
    %v1223 = vpack.c.b16 %v926, %v915
    %v1224 = vpack.c.b16 %v927, %v916
    %v1225 = vpack.c.b16 %v928, %v917
    %v1226 = vpack.c.b16 %v929, %v918
    %v1227 = vpack.c.b16 %v941, %v930
    %v1228 = vpack.c.b16 %v942, %v931
    %v1229 = vpack.c.b16 %v943, %v932
    %v1230 = vpack.c.b16 %v944, %v933
    %v1231 = vpack.c.b16 %v945, %v934
    %v1232 = vpack.c.b16 %v946, %v935
    %v1233 = vpack.c.b16 %v947, %v936
    %v1234 = vpack.c.b16 %v948, %v937
    %v1235 = vpack.c.b16 %v949, %v938
    %v1236 = vpack.c.b16 %v950, %v939
    %v1237 = vpack.c.b16 %v951, %v940
    %v1238 = vpack.c.b16 %v963, %v952
    %v1239 = vpack.c.b16 %v964, %v953
    %v1240 = vpack.c.b16 %v965, %v954
    %v1241 = vpack.c.b16 %v966, %v955
    %v1242 = vpack.c.b16 %v967, %v956
    %v1243 = vpack.c.b16 %v968, %v957
    %v1244 = vpack.c.b16 %v969, %v958
    %v1245 = vpack.c.b16 %v970, %v959
    %v1246 = vpack.c.b16 %v971, %v960
    %v1247 = vpack.c.b16 %v972, %v961
    %v1248 = vpack.c.b16 %v973, %v962
    %v1249 = vpack.c.b16 %v985, %v974
    %v1250 = vpack.c.b16 %v986, %v975
    %v1251 = vpack.c.b16 %v987, %v976
    %v1252 = vpack.c.b16 %v988, %v977
    %v1253 = vpack.c.b16 %v989, %v978
    %v1254 = vpack.c.b16 %v990, %v979
    %v1255 = vpack.c.b16 %v991, %v980
    %v1256 = vpack.c.b16 %v992, %v981
    %v1257 = vpack.c.b16 %v993, %v982
    %v1258 = vpack.c.b16 %v994, %v983
    %v1259 = vpack.c.b16 %v995, %v984
    %v1260 = vpack.c.b16 %v1007, %v996
    %v1261 = vpack.c.b16 %v1008, %v997
    %v1262 = vpack.c.b16 %v1009, %v998
    %v1263 = vpack.c.b16 %v1010, %v999
    %v1264 = vpack.c.b16 %v1011, %v1000
    %v1265 = vpack.c.b16 %v1012, %v1001
    %v1266 = vpack.c.b16 %v1013, %v1002
    %v1267 = vpack.c.b16 %v1014, %v1003
    %v1268 = vpack.c.b16 %v1015, %v1004
    %v1269 = vpack.c.b16 %v1016, %v1005
    %v1270 = vpack.c.b16 %v1017, %v1006
    %v1271 = vpack.c.b16 %v1029, %v1018
    %v1272 = vpack.c.b16 %v1030, %v1019
    %v1273 = vpack.c.b16 %v1031, %v1020
    %v1274 = vpack.c.b16 %v1032, %v1021
    %v1275 = vpack.c.b16 %v1033, %v1022
    %v1276 = vpack.c.b16 %v1034, %v1023
    %v1277 = vpack.c.b16 %v1035, %v1024
    %v1278 = vpack.c.b16 %v1036, %v1025
    %v1279 = vpack.c.b16 %v1037, %v1026
    %v1280 = vpack.c.b16 %v1038, %v1027
    %v1281 = vpack.c.b16 %v1039, %v1028
    %v1282 = vpack.c.b16 %v1051, %v1040
    %v1283 = vpack.c.b16 %v1052, %v1041
    %v1284 = vpack.c.b16 %v1053, %v1042
    %v1285 = vpack.c.b16 %v1054, %v1043
    %v1286 = vpack.c.b16 %v1055, %v1044
    %v1287 = vpack.c.b16 %v1056, %v1045
    %v1288 = vpack.c.b16 %v1057, %v1046
    %v1289 = vpack.c.b16 %v1058, %v1047
    %v1290 = vpack.c.b16 %v1059, %v1048
    %v1291 = vpack.c.b16 %v1060, %v1049
    %v1292 = vpack.c.b16 %v1061, %v1050
    %v1293 = vpack.c.b16 %v1073, %v1062
    %v1294 = vpack.c.b16 %v1074, %v1063
    %v1295 = vpack.c.b16 %v1075, %v1064
    %v1296 = vpack.c.b16 %v1076, %v1065
    %v1297 = vpack.c.b16 %v1077, %v1066
    %v1298 = vpack.c.b16 %v1078, %v1067
    %v1299 = vpack.c.b16 %v1079, %v1068
    %v1300 = vpack.c.b16 %v1080, %v1069
    %v1301 = vpack.c.b16 %v1081, %v1070
    %v1302 = vpack.c.b16 %v1082, %v1071
    %v1303 = vpack.c.b16 %v1083, %v1072
    %v1304 = vpack.c.b16 %v1095, %v1084
    %v1305 = vpack.c.b16 %v1096, %v1085
    %v1306 = vpack.c.b16 %v1097, %v1086
    %v1307 = vpack.c.b16 %v1098, %v1087
    %v1308 = vpack.c.b16 %v1099, %v1088
    %v1309 = vpack.c.b16 %v1100, %v1089
    %v1310 = vpack.c.b16 %v1101, %v1090
    %v1311 = vpack.c.b16 %v1102, %v1091
    %v1312 = vpack.c.b16 %v1103, %v1092
    %v1313 = vpack.c.b16 %v1104, %v1093
    %v1314 = vpack.c.b16 %v1105, %v1094
    %v1315 = vpack.c.b16 %v1117, %v1106
    %v1316 = vpack.c.b16 %v1118, %v1107
    %v1317 = vpack.c.b16 %v1119, %v1108
    %v1318 = vpack.c.b16 %v1120, %v1109
    %v1319 = vpack.c.b16 %v1121, %v1110
    %v1320 = vpack.c.b16 %v1122, %v1111
    %v1321 = vpack.c.b16 %v1123, %v1112
    %v1322 = vpack.c.b16 %v1124, %v1113
    %v1323 = vpack.c.b16 %v1125, %v1114
    %v1324 = vpack.c.b16 %v1126, %v1115
    %v1325 = vpack.c.b16 %v1127, %v1116
    %v1326 = vpack.c.b16 %v1139, %v1128
    %v1327 = vpack.c.b16 %v1140, %v1129
    %v1328 = vpack.c.b16 %v1141, %v1130
    %v1329 = vpack.c.b16 %v1142, %v1131
    %v1330 = vpack.c.b16 %v1143, %v1132
    %v1331 = vpack.c.b16 %v1144, %v1133
    %v1332 = vpack.c.b16 %v1145, %v1134
    %v1333 = vpack.c.b16 %v1146, %v1135
    %v1334 = vpack.c.b16 %v1147, %v1136
    %v1335 = vpack.c.b16 %v1148, %v1137
    %v1336 = vpack.c.b16 %v1149, %v1138
    %v1337 = vpack.c.b16 %v1161, %v1150
    %v1338 = vpack.c.b16 %v1162, %v1151
    %v1339 = vpack.c.b16 %v1163, %v1152
    %v1340 = vpack.c.b16 %v1164, %v1153
    %v1341 = vpack.c.b16 %v1165, %v1154
    %v1342 = vpack.c.b16 %v1166, %v1155
    %v1343 = vpack.c.b16 %v1167, %v1156
    %v1344 = vpack.c.b16 %v1168, %v1157
    %v1345 = vpack.c.b16 %v1169, %v1158
    %v1346 = vpack.c.b16 %v1170, %v1159
    %v1347 = vpack.c.b16 %v1171, %v1160
    %1524 = vmatpush.bf16.msra.mxu0 %v1249
    %1525 = vmatpush.bf16.msra.mxu0 %v1238
    %1526 = vmatpush.bf16.msra.mxu0 %v1227
    %1527 = vmatpush.bf16.msra.mxu0 %v1216
    %1528 = vmatpush.bf16.msra.mxu0 %v1205
    %1529 = vmatpush.bf16.msra.mxu0 %v1194
    %1530 = vmatpush.bf16.msra.mxu0 %v1183
    %1531 = vmatpush.bf16.msra.mxu0 %v1172
    %1532 = vmatmul.bf16.gmra.mxu0 %v408
    %v1533 = vpop.f32.mrf.mxu0
    %v1534 = vadd.f32 %v606, %v1533
    %v1535 = vpop.f32.mrf.mxu0
    %1536 = vdwg.mxu0
    %1537 = vmatpush.bf16.msra.mxu0 %v1337
    %1538 = vmatpush.bf16.msra.mxu0 %v1326
    %1539 = vmatpush.bf16.msra.mxu0 %v1315
    %1540 = vmatpush.bf16.msra.mxu0 %v1304
    %1541 = vmatpush.bf16.msra.mxu0 %v1293
    %1542 = vmatpush.bf16.msra.mxu0 %v1282
    %1543 = vmatpush.bf16.msra.mxu0 %v1271
    %1544 = vmatpush.bf16.msra.mxu0 %v1260
    %1545 = vmatmul.bf16.gmra.mxu0 %v409
    %v1546 = vpop.f32.mrf.mxu0
    %v1547 = vadd.f32 %v1534, %v1546
    %v1548 = vpop.f32.mrf.mxu0
    %1549 = vdwg.mxu0
    %1550 = vmatpush.bf16.msra.mxu0 %v1250
    %1551 = vmatpush.bf16.msra.mxu0 %v1239
    %1552 = vmatpush.bf16.msra.mxu0 %v1228
    %1553 = vmatpush.bf16.msra.mxu0 %v1217
    %1554 = vmatpush.bf16.msra.mxu0 %v1206
    %1555 = vmatpush.bf16.msra.mxu0 %v1195
    %1556 = vmatpush.bf16.msra.mxu0 %v1184
    %1557 = vmatpush.bf16.msra.mxu0 %v1173
    %1558 = vmatmul.bf16.gmra.mxu0 %v408
    %v1559 = vpop.f32.mrf.mxu0
    %v1560 = vadd.f32 %v607, %v1559
    %v1561 = vpop.f32.mrf.mxu0
    %1562 = vdwg.mxu0
    %1563 = vmatpush.bf16.msra.mxu0 %v1338
    %1564 = vmatpush.bf16.msra.mxu0 %v1327
    %1565 = vmatpush.bf16.msra.mxu0 %v1316
    %1566 = vmatpush.bf16.msra.mxu0 %v1305
    %1567 = vmatpush.bf16.msra.mxu0 %v1294
    %1568 = vmatpush.bf16.msra.mxu0 %v1283
    %1569 = vmatpush.bf16.msra.mxu0 %v1272
    %1570 = vmatpush.bf16.msra.mxu0 %v1261
    %1571 = vmatmul.bf16.gmra.mxu0 %v409
    %v1572 = vpop.f32.mrf.mxu0
    %v1573 = vadd.f32 %v1560, %v1572
    %v1574 = vpop.f32.mrf.mxu0
    %1575 = vdwg.mxu0
    %1576 = vmatpush.bf16.msra.mxu0 %v1251
    %1577 = vmatpush.bf16.msra.mxu0 %v1240
    %1578 = vmatpush.bf16.msra.mxu0 %v1229
    %1579 = vmatpush.bf16.msra.mxu0 %v1218
    %1580 = vmatpush.bf16.msra.mxu0 %v1207
    %1581 = vmatpush.bf16.msra.mxu0 %v1196
    %1582 = vmatpush.bf16.msra.mxu0 %v1185
    %1583 = vmatpush.bf16.msra.mxu0 %v1174
    %1584 = vmatmul.bf16.gmra.mxu0 %v408
    %v1585 = vpop.f32.mrf.mxu0
    %v1586 = vadd.f32 %v608, %v1585
    %v1587 = vpop.f32.mrf.mxu0
    %1588 = vdwg.mxu0
    %1589 = vmatpush.bf16.msra.mxu0 %v1339
    %1590 = vmatpush.bf16.msra.mxu0 %v1328
    %1591 = vmatpush.bf16.msra.mxu0 %v1317
    %1592 = vmatpush.bf16.msra.mxu0 %v1306
    %1593 = vmatpush.bf16.msra.mxu0 %v1295
    %1594 = vmatpush.bf16.msra.mxu0 %v1284
    %1595 = vmatpush.bf16.msra.mxu0 %v1273
    %1596 = vmatpush.bf16.msra.mxu0 %v1262
    %1597 = vmatmul.bf16.gmra.mxu0 %v409
    %v1598 = vpop.f32.mrf.mxu0
    %v1599 = vadd.f32 %v1586, %v1598
    %v1600 = vpop.f32.mrf.mxu0
    %1601 = vdwg.mxu0
    %1602 = vmatpush.bf16.msra.mxu0 %v1252
    %1603 = vmatpush.bf16.msra.mxu0 %v1241
    %1604 = vmatpush.bf16.msra.mxu0 %v1230
    %1605 = vmatpush.bf16.msra.mxu0 %v1219
    %1606 = vmatpush.bf16.msra.mxu0 %v1208
    %1607 = vmatpush.bf16.msra.mxu0 %v1197
    %1608 = vmatpush.bf16.msra.mxu0 %v1186
    %1609 = vmatpush.bf16.msra.mxu0 %v1175
    %1610 = vmatmul.bf16.gmra.mxu0 %v408
    %v1611 = vpop.f32.mrf.mxu0
    %v1612 = vadd.f32 %v609, %v1611
    %v1613 = vpop.f32.mrf.mxu0
    %1614 = vdwg.mxu0
    %1615 = vmatpush.bf16.msra.mxu0 %v1340
    %1616 = vmatpush.bf16.msra.mxu0 %v1329
    %1617 = vmatpush.bf16.msra.mxu0 %v1318
    %1618 = vmatpush.bf16.msra.mxu0 %v1307
    %1619 = vmatpush.bf16.msra.mxu0 %v1296
    %1620 = vmatpush.bf16.msra.mxu0 %v1285
    %1621 = vmatpush.bf16.msra.mxu0 %v1274
    %1622 = vmatpush.bf16.msra.mxu0 %v1263
    %1623 = vmatmul.bf16.gmra.mxu0 %v409
    %v1624 = vpop.f32.mrf.mxu0
    %v1625 = vadd.f32 %v1612, %v1624
    %v1626 = vpop.f32.mrf.mxu0
    %1627 = vdwg.mxu0
    %1628 = vmatpush.bf16.msra.mxu0 %v1253
    %1629 = vmatpush.bf16.msra.mxu0 %v1242
    %1630 = vmatpush.bf16.msra.mxu0 %v1231
    %1631 = vmatpush.bf16.msra.mxu0 %v1220
    %1632 = vmatpush.bf16.msra.mxu0 %v1209
    %1633 = vmatpush.bf16.msra.mxu0 %v1198
    %1634 = vmatpush.bf16.msra.mxu0 %v1187
    %1635 = vmatpush.bf16.msra.mxu0 %v1176
    %1636 = vmatmul.bf16.gmra.mxu0 %v408
    %v1637 = vpop.f32.mrf.mxu0
    %v1638 = vadd.f32 %v610, %v1637
    %v1639 = vpop.f32.mrf.mxu0
    %1640 = vdwg.mxu0
    %1641 = vmatpush.bf16.msra.mxu0 %v1341
    %1642 = vmatpush.bf16.msra.mxu0 %v1330
    %1643 = vmatpush.bf16.msra.mxu0 %v1319
    %1644 = vmatpush.bf16.msra.mxu0 %v1308
    %1645 = vmatpush.bf16.msra.mxu0 %v1297
    %1646 = vmatpush.bf16.msra.mxu0 %v1286
    %1647 = vmatpush.bf16.msra.mxu0 %v1275
    %1648 = vmatpush.bf16.msra.mxu0 %v1264
    %1649 = vmatmul.bf16.gmra.mxu0 %v409
    %v1650 = vpop.f32.mrf.mxu0
    %v1651 = vadd.f32 %v1638, %v1650
    %v1652 = vpop.f32.mrf.mxu0
    %1653 = vdwg.mxu0
    %1654 = vmatpush.bf16.msra.mxu0 %v1254
    %1655 = vmatpush.bf16.msra.mxu0 %v1243
    %1656 = vmatpush.bf16.msra.mxu0 %v1232
    %1657 = vmatpush.bf16.msra.mxu0 %v1221
    %1658 = vmatpush.bf16.msra.mxu0 %v1210
    %1659 = vmatpush.bf16.msra.mxu0 %v1199
    %1660 = vmatpush.bf16.msra.mxu0 %v1188
    %1661 = vmatpush.bf16.msra.mxu0 %v1177
    %1662 = vmatmul.bf16.gmra.mxu0 %v408
    %v1663 = vpop.f32.mrf.mxu0
    %v1664 = vadd.f32 %v611, %v1663
    %v1665 = vpop.f32.mrf.mxu0
    %1666 = vdwg.mxu0
    %1667 = vmatpush.bf16.msra.mxu0 %v1342
    %1668 = vmatpush.bf16.msra.mxu0 %v1331
    %1669 = vmatpush.bf16.msra.mxu0 %v1320
    %1670 = vmatpush.bf16.msra.mxu0 %v1309
    %1671 = vmatpush.bf16.msra.mxu0 %v1298
    %1672 = vmatpush.bf16.msra.mxu0 %v1287
    %1673 = vmatpush.bf16.msra.mxu0 %v1276
    %1674 = vmatpush.bf16.msra.mxu0 %v1265
    %1675 = vmatmul.bf16.gmra.mxu0 %v409
    %v1676 = vpop.f32.mrf.mxu0
    %v1677 = vadd.f32 %v1664, %v1676
    %v1678 = vpop.f32.mrf.mxu0
    %1679 = vdwg.mxu0
    %1680 = vmatpush.bf16.msra.mxu0 %v1255
    %1681 = vmatpush.bf16.msra.mxu0 %v1244
    %1682 = vmatpush.bf16.msra.mxu0 %v1233
    %1683 = vmatpush.bf16.msra.mxu0 %v1222
    %1684 = vmatpush.bf16.msra.mxu0 %v1211
    %1685 = vmatpush.bf16.msra.mxu0 %v1200
    %1686 = vmatpush.bf16.msra.mxu0 %v1189
    %1687 = vmatpush.bf16.msra.mxu0 %v1178
    %1688 = vmatmul.bf16.gmra.mxu0 %v408
    %v1689 = vpop.f32.mrf.mxu0
    %v1690 = vadd.f32 %v612, %v1689
    %v1691 = vpop.f32.mrf.mxu0
    %1692 = vdwg.mxu0
    %1693 = vmatpush.bf16.msra.mxu0 %v1343
    %1694 = vmatpush.bf16.msra.mxu0 %v1332
    %1695 = vmatpush.bf16.msra.mxu0 %v1321
    %1696 = vmatpush.bf16.msra.mxu0 %v1310
    %1697 = vmatpush.bf16.msra.mxu0 %v1299
    %1698 = vmatpush.bf16.msra.mxu0 %v1288
    %1699 = vmatpush.bf16.msra.mxu0 %v1277
    %1700 = vmatpush.bf16.msra.mxu0 %v1266
    %1701 = vmatmul.bf16.gmra.mxu0 %v409
    %v1702 = vpop.f32.mrf.mxu0
    %v1703 = vadd.f32 %v1690, %v1702
    %v1704 = vpop.f32.mrf.mxu0
    %1705 = vdwg.mxu0
    %1706 = vmatpush.bf16.msra.mxu0 %v1256
    %1707 = vmatpush.bf16.msra.mxu0 %v1245
    %1708 = vmatpush.bf16.msra.mxu0 %v1234
    %1709 = vmatpush.bf16.msra.mxu0 %v1223
    %1710 = vmatpush.bf16.msra.mxu0 %v1212
    %1711 = vmatpush.bf16.msra.mxu0 %v1201
    %1712 = vmatpush.bf16.msra.mxu0 %v1190
    %1713 = vmatpush.bf16.msra.mxu0 %v1179
    %1714 = vmatmul.bf16.gmra.mxu0 %v408
    %v1715 = vpop.f32.mrf.mxu0
    %v1716 = vadd.f32 %v613, %v1715
    %v1717 = vpop.f32.mrf.mxu0
    %1718 = vdwg.mxu0
    %1719 = vmatpush.bf16.msra.mxu0 %v1344
    %1720 = vmatpush.bf16.msra.mxu0 %v1333
    %1721 = vmatpush.bf16.msra.mxu0 %v1322
    %1722 = vmatpush.bf16.msra.mxu0 %v1311
    %1723 = vmatpush.bf16.msra.mxu0 %v1300
    %1724 = vmatpush.bf16.msra.mxu0 %v1289
    %1725 = vmatpush.bf16.msra.mxu0 %v1278
    %1726 = vmatpush.bf16.msra.mxu0 %v1267
    %1727 = vmatmul.bf16.gmra.mxu0 %v409
    %v1728 = vpop.f32.mrf.mxu0
    %v1729 = vadd.f32 %v1716, %v1728
    %v1730 = vpop.f32.mrf.mxu0
    %1731 = vdwg.mxu0
    %1732 = vmatpush.bf16.msra.mxu0 %v1257
    %1733 = vmatpush.bf16.msra.mxu0 %v1246
    %1734 = vmatpush.bf16.msra.mxu0 %v1235
    %1735 = vmatpush.bf16.msra.mxu0 %v1224
    %1736 = vmatpush.bf16.msra.mxu0 %v1213
    %1737 = vmatpush.bf16.msra.mxu0 %v1202
    %1738 = vmatpush.bf16.msra.mxu0 %v1191
    %1739 = vmatpush.bf16.msra.mxu0 %v1180
    %1740 = vmatmul.bf16.gmra.mxu0 %v408
    %v1741 = vpop.f32.mrf.mxu0
    %v1742 = vadd.f32 %v614, %v1741
    %v1743 = vpop.f32.mrf.mxu0
    %1744 = vdwg.mxu0
    %1745 = vmatpush.bf16.msra.mxu0 %v1345
    %1746 = vmatpush.bf16.msra.mxu0 %v1334
    %1747 = vmatpush.bf16.msra.mxu0 %v1323
    %1748 = vmatpush.bf16.msra.mxu0 %v1312
    %1749 = vmatpush.bf16.msra.mxu0 %v1301
    %1750 = vmatpush.bf16.msra.mxu0 %v1290
    %1751 = vmatpush.bf16.msra.mxu0 %v1279
    %1752 = vmatpush.bf16.msra.mxu0 %v1268
    %1753 = vmatmul.bf16.gmra.mxu0 %v409
    %v1754 = vpop.f32.mrf.mxu0
    %v1755 = vadd.f32 %v1742, %v1754
    %v1756 = vpop.f32.mrf.mxu0
    %1757 = vdwg.mxu0
    %1758 = vmatpush.bf16.msra.mxu0 %v1258
    %1759 = vmatpush.bf16.msra.mxu0 %v1247
    %1760 = vmatpush.bf16.msra.mxu0 %v1236
    %1761 = vmatpush.bf16.msra.mxu0 %v1225
    %1762 = vmatpush.bf16.msra.mxu0 %v1214
    %1763 = vmatpush.bf16.msra.mxu0 %v1203
    %1764 = vmatpush.bf16.msra.mxu0 %v1192
    %1765 = vmatpush.bf16.msra.mxu0 %v1181
    %1766 = vmatmul.bf16.gmra.mxu0 %v408
    %v1767 = vpop.f32.mrf.mxu0
    %v1768 = vadd.f32 %v615, %v1767
    %v1769 = vpop.f32.mrf.mxu0
    %1770 = vdwg.mxu0
    %1771 = vmatpush.bf16.msra.mxu0 %v1346
    %1772 = vmatpush.bf16.msra.mxu0 %v1335
    %1773 = vmatpush.bf16.msra.mxu0 %v1324
    %1774 = vmatpush.bf16.msra.mxu0 %v1313
    %1775 = vmatpush.bf16.msra.mxu0 %v1302
    %1776 = vmatpush.bf16.msra.mxu0 %v1291
    %1777 = vmatpush.bf16.msra.mxu0 %v1280
    %1778 = vmatpush.bf16.msra.mxu0 %v1269
    %1779 = vmatmul.bf16.gmra.mxu0 %v409
    %v1780 = vpop.f32.mrf.mxu0
    %v1781 = vadd.f32 %v1768, %v1780
    %v1782 = vpop.f32.mrf.mxu0
    %1783 = vdwg.mxu0
    %1784 = vmatpush.bf16.msra.mxu0 %v1259
    %1785 = vmatpush.bf16.msra.mxu0 %v1248
    %1786 = vmatpush.bf16.msra.mxu0 %v1237
    %1787 = vmatpush.bf16.msra.mxu0 %v1226
    %1788 = vmatpush.bf16.msra.mxu0 %v1215
    %1789 = vmatpush.bf16.msra.mxu0 %v1204
    %1790 = vmatpush.bf16.msra.mxu0 %v1193
    %1791 = vmatpush.bf16.msra.mxu0 %v1182
    %1792 = vmatmul.bf16.gmra.mxu0 %v408
    %v1793 = vpop.f32.mrf.mxu0
    %v1794 = vadd.f32 %v616, %v1793
    %v1795 = vpop.f32.mrf.mxu0
    %1796 = vdwg.mxu0
    %1797 = vmatpush.bf16.msra.mxu0 %v1347
    %1798 = vmatpush.bf16.msra.mxu0 %v1336
    %1799 = vmatpush.bf16.msra.mxu0 %v1325
    %1800 = vmatpush.bf16.msra.mxu0 %v1314
    %1801 = vmatpush.bf16.msra.mxu0 %v1303
    %1802 = vmatpush.bf16.msra.mxu0 %v1292
    %1803 = vmatpush.bf16.msra.mxu0 %v1281
    %1804 = vmatpush.bf16.msra.mxu0 %v1270
    %1805 = vmatmul.bf16.gmra.mxu0 %v409
    %v1806 = vpop.f32.mrf.mxu0
    %v1807 = vadd.f32 %v1794, %v1806
    %v1808 = vpop.f32.mrf.mxu0
    %1809 = vdwg.mxu0
    %1810 = vst [vmem:[#allocation2] sm:$0xff] %v1547
    %1811 = vst [vmem:[#allocation2 + $0x8] sm:$0xff] %v1573
    %1812 = vst [vmem:[#allocation2 + $0x10] sm:$0xff] %v1599
    %1813 = vst [vmem:[#allocation2 + $0x18] sm:$0xff] %v1625
    %1814 = vst [vmem:[#allocation2 + $0x20] sm:$0xff] %v1651
    %1815 = vst [vmem:[#allocation2 + $0x28] sm:$0xff] %v1677
    %1816 = vst [vmem:[#allocation2 + $0x30] sm:$0xff] %v1703
    %1817 = vst [vmem:[#allocation2 + $0x38] sm:$0xff] %v1729
    %1818 = vst [vmem:[#allocation2 + $0x40] sm:$0xff] %v1755
    %1819 = vst [vmem:[#allocation2 + $0x48] sm:$0xff] %v1781
    %vm1820 = vcmask 416768
    %1821 = vst.msk [vmem:[#allocation2 + $0x50] sm:$0xff] %vm1820, %v1807
    // Predicated region
    $region30: #{tpu_custom_call.1} parent=1 // pred_check
      _
    $region31: #{tpu_custom_call.1} parent=1 // pred_check_branch
      %1823 = sbr.rel (0) target = $region33
    $region32: #{tpu_custom_call.1} parent=1 // pred_region
      %1825 = vsyncadd [#allocation3], 0
      %s1827 = sshll.u32 [#allocation2], 4
      %s1828 = int_to_ptr.vmem [resolvable:$true] %s1827
      %s1829 = sshll.u32 %s7, 4
      %s1830 = int_to_ptr.hbm [resolvable:$true] %s1829
      %1832 = dma.vmem_to_hbm [thread:$0]  %s1828, 1408, %s1830, [#allocation3]
    $region33: #{tpu_custom_call.1} parent=1 // pred_fallthru
      _
    // Predicated region
    $region34: #{tpu_custom_call.1} parent=1 // pred_check
      _
    $region35: #{tpu_custom_call.1} parent=1 // pred_check_branch
      %1834 = sbr.rel (0) target = $region37
    $region36: #{tpu_custom_call.1} parent=1 // pred_region
      %1836 = dma.done [#allocation3], 1408
    $region37: #{tpu_custom_call.1} parent=1 // pred_fallthru
      _
    %1837 = vsyncpa [#allocation3], 1

</llo_original>
